<compile_context>
chip_gen: v6e
topology: v6e:2x2x1
jax: 0.10.0
libtpu: 0.0.40
codegen_flags: <defaults>
</compile_context>

<pallas_src>
import jax
import jax.numpy as jnp
from jax.experimental import pallas as pl
from jax.experimental.pallas import tpu as pltpu


LANE = 128


def _round_up(x, m):
    return ((x + m - 1) // m) * m


def _vmem_capacity_bytes():
    """Physical VMEM of the local TPU; conservative (v7x) fallback if the query fails."""
    try:
        return int(pltpu.get_tpu_info().vmem_capacity_bytes)
    except Exception:
        return 64 * 1024 * 1024


def _tile_vmem_bytes(tm, tk, dp, msg_bytes):
    """Conservative per-call VMEM estimate (double-buffered inputs/outputs + scratch)."""
    adj = 2 * 2 * tm * tk * msg_bytes              # node + edge adjacency tiles, 2 buffers
    hk = 2 * tk * dp * msg_bytes                   # matmul RHS tile
    hi = 2 * tm * dp * 4                           # f32 hidden-state row tile
    diag = 2 * 2 * tm * 4                          # diag vectors
    weights = 2 * (2 * dp * 3 * dp + dp * 6 * dp) * 4
    biases = 2 * (2 * 3 * dp + 6 * dp) * 4
    out = 2 * tm * dp * 4
    acc = 2 * tm * dp * 4                          # two (TM,Dp) f32 accumulators
    temps = 6 * tm * dp * 4                        # bounded finalize temporaries
    return adj + hk + hi + diag + weights + biases + out + acc + temps


def _choose_tiles(np_rows, dp, msg_bytes, budget):
    cands = [t for t in (512, 256, 128) if np_rows % t == 0] or [np_rows]
    # Prefer >= 2 row tiles so the "parallel" row axis can shard across v7x's 2 TCs.
    m_cands = [t for t in cands if np_rows // t >= 2] or cands
    for tm in m_cands:
        for tk in cands:
            if _tile_vmem_bytes(tm, tk, dp, msg_bytes) <= budget:
                return tm, tk
    return m_cands[-1], cands[-1]


def _pad_gru_weight(w, D, Dp):
    """(D, 3*D) -> (Dp, 3*Dp), each gate block placed lane-aligned at multiples of Dp."""
    out = jnp.zeros((Dp, 3 * Dp), jnp.float32)
    for g in range(3):
        out = out.at[:D, g * Dp:g * Dp + D].set(w[:, g * D:(g + 1) * D].astype(jnp.float32))
    return out


def _pad_gru_bias(b, D, Dp):
    """(1, 3*D) -> (1, 3*Dp), gate blocks lane-aligned at multiples of Dp."""
    out = jnp.zeros((1, 3 * Dp), jnp.float32)
    for g in range(3):
        out = out.at[:, g * Dp:g * Dp + D].set(b[:, g * D:(g + 1) * D].astype(jnp.float32))
    return out


def prepare_weights(params, nhidden):
    """Pad / concatenate GRU weights ONCE (reused across forward calls)."""
    D = nhidden
    Dp = _round_up(max(D, LANE), LANE)
    return {
        "D": D,
        "Dp": Dp,
        "wih_e": _pad_gru_weight(params["wih_e"], D, Dp),
        "wih_n": _pad_gru_weight(params["wih_n"], D, Dp),
        "whh": jnp.concatenate([_pad_gru_weight(params["whh_e"], D, Dp),
                                _pad_gru_weight(params["whh_n"], D, Dp)], axis=1),
        "bih_e": _pad_gru_bias(params["bih_e"], D, Dp),
        "bih_n": _pad_gru_bias(params["bih_n"], D, Dp),
        "bhh": jnp.concatenate([_pad_gru_bias(params["bhh_e"], D, Dp),
                                _pad_gru_bias(params["bhh_n"], D, Dp)], axis=1),
    }


def fggru_kernel(nadj_ref, eadj_ref, hk_ref, hi_ref, dn_ref, de_ref,
                 wih_e_ref, wih_n_ref, whh_ref,
                 bih_e_ref, bih_n_ref, bhh_ref,
                 out_ref, acc_n_ref, acc_e_ref):
    """Grid = (row_tiles, k_tiles).
       acc_n_ref accumulates node_adj @ h (feeds the EDGE GRU cell);
       acc_e_ref accumulates edge_adj @ h (feeds the NODE GRU cell).
       Diagonal contribution is removed at finalize: support = acc - diag * h."""
    k = pl.program_id(1)
    dp = hi_ref.shape[1]

    @pl.when(k == 0)
    def _init():
        acc_n_ref[...] = jnp.zeros_like(acc_n_ref)
        acc_e_ref[...] = jnp.zeros_like(acc_e_ref)

    # Two MXU pushes per grid step (bf16/f32 inputs, f32 accumulation); no reshape copy.
    acc_n_ref[...] += jnp.dot(nadj_ref[...], hk_ref[...], preferred_element_type=jnp.float32)
    acc_e_ref[...] += jnp.dot(eadj_ref[...], hk_ref[...], preferred_element_type=jnp.float32)

    @pl.when(k == pl.num_programs(1) - 1)
    def _finalize():
        h_t = hi_ref[...]                           # (TM, Dp) f32
        dn = dn_ref[...]                            # (TM, 1)  diag(node_adj)
        de = de_ref[...]                            # (TM, 1)  diag(edge_adj)

        # In-kernel diagonal subtraction (one VPU fma per row tile).
        node_support = acc_n_ref[...] - dn * h_t    # (node_adj - I_node) @ h  -> edge GRU
        edge_support = acc_e_ref[...] - de * h_t    # (edge_adj - I_edge) @ h  -> node GRU

        def gate_pair(support, wih_ref, bih_ref, hh_off, g):
            # Per-gate (TM,Dp)@(Dp,Dp) matmuls keep finalize temporaries ~(TM,Dp).
            gi = jnp.dot(support, wih_ref[:, g * dp:(g + 1) * dp],
                         preferred_element_type=jnp.float32) + bih_ref[:, g * dp:(g + 1) * dp]
            gh = jnp.dot(h_t, whh_ref[:, hh_off + g * dp:hh_off + (g + 1) * dp],
                         preferred_element_type=jnp.float32) + bhh_ref[:, hh_off + g * dp:hh_off + (g + 1) * dp]
            return gi, gh

        def gru_cell(support, wih_ref, bih_ref, hh_off):
            # PyTorch nn.GRUCell: gates ordered (r, z, n); n = tanh(i_n + r*(h_n + b_hn)).
            gi_r, gh_r = gate_pair(support, wih_ref, bih_ref, hh_off, 0)
            r = jax.nn.sigmoid(gi_r + gh_r)
            gi_z, gh_z = gate_pair(support, wih_ref, bih_ref, hh_off, 1)
            z = jax.nn.sigmoid(gi_z + gh_z)
            gi_n, gh_n = gate_pair(support, wih_ref, bih_ref, hh_off, 2)
            n = jnp.tanh(gi_n + r * gh_n)
            return (1.0 - z) * n + z * h_t

        # Finish the edge cell and fold it into the output before the node cell runs
        # (keeps peak live temporaries low).
        edge_out = gru_cell(node_support, wih_e_ref, bih_e_ref, 0)
        out = de * edge_out
        node_out = gru_cell(edge_support, wih_n_ref, bih_n_ref, 3 * dp)
        out_ref[...] = out + dn * node_out

    # TODO(synk): GraphAttentionLayer path (nattheads > 0, with dropout) and
    # msg_type='concat' are not implemented; this kernel reproduces the module's
    # default nattheads=0 / msg_type='diff' path (attention=None).


def factor_graph_gru(h, node_adj, edge_adj, weights, *, use_bf16_msgs=True):
    """Returns (output (N, D), attention=None) matching FactorGraphGRU.forward.
       `weights` must come from prepare_weights()."""
    D, Dp = weights["D"], weights["Dp"]
    h = h.astype(jnp.float32)
    node_adj = node_adj.astype(jnp.float32)
    edge_adj = edge_adj.astype(jnp.float32)
    N = h.shape[0]
    assert h.shape[1] == D

    Np = _round_up(N, LANE)
    msg_dtype = jnp.bfloat16 if use_bf16_msgs else jnp.float32
    msg_bytes = jnp.dtype(msg_dtype).itemsize

    budget = int(_vmem_capacity_bytes() * 0.85)
    TM, TK = _choose_tiles(Np, Dp, msg_bytes, budget)

    # ---- hoisted prep: only diagonals and (if needed) zero-padding -----------------
    diag_n = jnp.diagonal(node_adj)[:, None]
    diag_e = jnp.diagonal(edge_adj)[:, None]
    pad_r = Np - N

    hp = jnp.pad(h, ((0, pad_r), (0, Dp - D))) if (pad_r or Dp != D) else h
    if pad_r:
        nadj = jnp.pad(node_adj, ((0, pad_r), (0, pad_r)))
        eadj = jnp.pad(edge_adj, ((0, pad_r), (0, pad_r)))
        diag_n = jnp.pad(diag_n, ((0, pad_r), (0, 0)))
        diag_e = jnp.pad(diag_e, ((0, pad_r), (0, 0)))
    else:
        nadj, eadj = node_adj, edge_adj
    nadj = nadj.astype(msg_dtype)
    eadj = eadj.astype(msg_dtype)
    h_msg = hp.astype(msg_dtype)

    grid = (Np // TM, Np // TK)

    def const2():
        return lambda i, k: (0, 0)

    in_specs = [
        pl.BlockSpec((TM, TK), lambda i, k: (i, k)),      # node_adj tile
        pl.BlockSpec((TM, TK), lambda i, k: (i, k)),      # edge_adj tile
        pl.BlockSpec((TK, Dp), lambda i, k: (k, 0)),      # h (matmul RHS, K tile)
        pl.BlockSpec((TM, Dp), lambda i, k: (i, 0)),      # h (GRU hidden state, f32 row tile)
        pl.BlockSpec((TM, 1), lambda i, k: (i, 0)),       # diag(node_adj)
        pl.BlockSpec((TM, 1), lambda i, k: (i, 0)),       # diag(edge_adj)
        pl.BlockSpec((Dp, 3 * Dp), const2()),             # wih_e
        pl.BlockSpec((Dp, 3 * Dp), const2()),             # wih_n
        pl.BlockSpec((Dp, 6 * Dp), const2()),             # whh (edge|node fused)
        pl.BlockSpec((1, 3 * Dp), const2()),              # bih_e
        pl.BlockSpec((1, 3 * Dp), const2()),              # bih_n
        pl.BlockSpec((1, 6 * Dp), const2()),              # bhh (edge|node fused)
    ]
    out_spec = pl.BlockSpec((TM, Dp), lambda i, k: (i, 0))

    w_bytes = (weights["wih_e"].size + weights["wih_n"].size + weights["whh"].size
               + weights["bih_e"].size + weights["bih_n"].size + weights["bhh"].size) * 4
    cost = pl.CostEstimate(
        flops=int(4 * Np * Np * Dp + 24 * Np * Dp * Dp + 24 * Np * Dp),
        transcendentals=int(6 * Np * Dp),
        bytes_accessed=int(2 * Np * Np * msg_bytes            # adjacency stream
                           + grid[0] * Np * Dp * msg_bytes    # h_msg re-read per row tile
                           + Np * Dp * 4                      # hidden state
                           + Np * Dp * 4                      # output writes
                           + 2 * Np * 4                       # diag vectors
                           + w_bytes),
    )

    need = _tile_vmem_bytes(TM, TK, Dp, msg_bytes)
    vmem_limit = int(min(budget, max(int(need * 1.3) + (4 << 20), 32 << 20)))

    out_padded = pl.pallas_call(
        fggru_kernel,
        out_shape=jax.ShapeDtypeStruct((Np, Dp), jnp.float32),
        grid_spec=pltpu.PrefetchScalarGridSpec(
            num_scalar_prefetch=0,
            grid=grid,
            in_specs=in_specs,
            out_specs=out_spec,
            scratch_shapes=[pltpu.VMEM((TM, Dp), jnp.float32),   # node_adj @ h accumulator
                            pltpu.VMEM((TM, Dp), jnp.float32)],  # edge_adj @ h accumulator
        ),
        compiler_params=pltpu.CompilerParams(
            dimension_semantics=("parallel", "arbitrary"),
            vmem_limit_bytes=vmem_limit,
        ),
        cost_estimate=cost,
    )(nadj, eadj, h_msg, hp, diag_n, diag_e,
      weights["wih_e"], weights["wih_n"], weights["whh"],
      weights["bih_e"], weights["bih_n"], weights["bhh"])

    return out_padded[:N, :D], None   # (output, attention) — attention is None (nattheads=0)


def init_params(key, nhidden):
    """Deterministic init matching FactorGraphGRU.reset_parameters():
       GRU weights ~ N(0, 0.01), biases = 0. Weights stored transposed (in, 3*hidden)."""
    k1, k2, k3, k4 = jax.random.split(key, 4)
    std = 0.01
    D = nhidden
    return {
        "wih_e": (std * jax.random.normal(k1, (3 * D, D), jnp.float32)).T,  # (D, 3D)
        "whh_e": (std * jax.random.normal(k2, (3 * D, D), jnp.float32)).T,
        "bih_e": jnp.zeros((1, 3 * D), jnp.float32),
        "bhh_e": jnp.zeros((1, 3 * D), jnp.float32),
        "wih_n": (std * jax.random.normal(k3, (3 * D, D), jnp.float32)).T,
        "whh_n": (std * jax.random.normal(k4, (3 * D, D), jnp.float32)).T,
        "bih_n": jnp.zeros((1, 3 * D), jnp.float32),
        "bhh_n": jnp.zeros((1, 3 * D), jnp.float32),
    }


def reference_forward(h, node_adj, edge_adj, params):
    """Plain-JAX reference mirroring the PyTorch module (for correctness check)."""
    D = h.shape[1]
    diag_n = jnp.diag(node_adj)[:, None]
    diag_e = jnp.diag(edge_adj)[:, None]
    nadj_norm = node_adj - jnp.diag(jnp.diag(node_adj))
    eadj_norm = edge_adj - jnp.diag(jnp.diag(edge_adj))

    def gru(x, hh, wih, whh, bih, bhh):
        gi = x @ wih + bih
        gh = hh @ whh + bhh
        r = jax.nn.sigmoid(gi[:, :D] + gh[:, :D])
        z = jax.nn.sigmoid(gi[:, D:2 * D] + gh[:, D:2 * D])
        n = jnp.tanh(gi[:, 2 * D:] + r * gh[:, 2 * D:])
        return (1 - z) * n + z * hh

    edge_out = gru(nadj_norm @ h, h, params["wih_e"], params["whh_e"],
                   params["bih_e"], params["bhh_e"])
    node_out = gru(eadj_norm @ h, h, params["wih_n"], params["whh_n"],
                   params["bih_n"], params["bhh_n"])
    return diag_e * edge_out + diag_n * node_out


if __name__ == "__main__":
    N, D = 16, 32  # N graph nodes+factors, hidden size D
    key = jax.random.PRNGKey(0)
    kh, kn, ke, kp = jax.random.split(key, 4)

    h = jax.random.normal(kh, (N, D), jnp.float32)
    # Dense adjacency matrices with signed entries and nonzero diagonals
    node_adj = jnp.round(jax.random.uniform(kn, (N, N), minval=-1.0, maxval=1.0)) \
               + jnp.eye(N, dtype=jnp.float32)
    edge_adj = jnp.round(jax.random.uniform(ke, (N, N), minval=-1.0, maxval=1.0)) \
               + jnp.eye(N, dtype=jnp.float32)

    params = init_params(kp, D)
    weights = prepare_weights(params, D)   # padded/concatenated ONCE, reused per call
    ref = reference_forward(h, node_adj, edge_adj, params)

    # f32 message-passing path (tight check vs reference)
    out_f32, attention = factor_graph_gru(h, node_adj, edge_adj, weights, use_bf16_msgs=False)
    out_f32 = jax.block_until_ready(out_f32)
    assert out_f32.shape == (N, D)
    assert attention is None
    assert jnp.allclose(out_f32, ref, atol=1e-4, rtol=1e-4)

    # Default path: bf16 message-passing matmuls (f32 accumulation) — MXU/HBM friendly
    out_bf16, _ = factor_graph_gru(h, node_adj, edge_adj, weights)
    out_bf16 = jax.block_until_ready(out_bf16)
    assert jnp.allclose(out_bf16, ref, atol=5e-2, rtol=5e-2)

    print("KERNEL_OK")
</pallas_src>

<mosaic_0001>
module attributes {stable_mosaic.version = 11 : i64} {
  func.func @fggru_kernel(%arg0: i32, %arg1: i32, %arg2: memref<128x128xf32, #tpu.memory_space<vmem>>, %arg3: memref<128x128xf32, #tpu.memory_space<vmem>>, %arg4: memref<128x128xf32, #tpu.memory_space<vmem>>, %arg5: memref<128x128xf32, #tpu.memory_space<vmem>>, %arg6: memref<128x1xf32, #tpu.memory_space<vmem>>, %arg7: memref<128x1xf32, #tpu.memory_space<vmem>>, %arg8: memref<128x384xf32, #tpu.memory_space<vmem>>, %arg9: memref<128x384xf32, #tpu.memory_space<vmem>>, %arg10: memref<128x768xf32, #tpu.memory_space<vmem>>, %arg11: memref<1x384xf32, #tpu.memory_space<vmem>>, %arg12: memref<1x384xf32, #tpu.memory_space<vmem>>, %arg13: memref<1x768xf32, #tpu.memory_space<vmem>>, %arg14: memref<128x128xf32, #tpu.memory_space<vmem>>, %arg15: memref<128x128xf32, #tpu.memory_space<vmem>>, %arg16: memref<128x128xf32, #tpu.memory_space<vmem>>) attributes {dimension_semantics = [#tpu.dimension_semantics<parallel>, #tpu.dimension_semantics<arbitrary>], iteration_bounds = array<i64: 1, 1>, scalar_prefetch = 0 : i64, scratch_operands = 2 : i64, tpu.core_type = #tpu.core_type<tc>, window_params = [{transform_indices = @transform_0, window_bounds = array<i64: 128, 128>}, {transform_indices = @transform_1, window_bounds = array<i64: 128, 128>}, {transform_indices = @transform_2, window_bounds = array<i64: 128, 128>}, {transform_indices = @transform_3, window_bounds = array<i64: 128, 128>}, {transform_indices = @transform_4, window_bounds = array<i64: 128, 1>}, {transform_indices = @transform_5, window_bounds = array<i64: 128, 1>}, {pipeline_mode = #tpu.pipeline_mode<synchronous>, transform_indices = @transform_6, window_bounds = array<i64: 128, 384>}, {pipeline_mode = #tpu.pipeline_mode<synchronous>, transform_indices = @transform_7, window_bounds = array<i64: 128, 384>}, {pipeline_mode = #tpu.pipeline_mode<synchronous>, transform_indices = @transform_8, window_bounds = array<i64: 128, 768>}, {pipeline_mode = #tpu.pipeline_mode<synchronous>, transform_indices = @transform_9, window_bounds = array<i64: 1, 384>}, {pipeline_mode = #tpu.pipeline_mode<synchronous>, transform_indices = @transform_10, window_bounds = array<i64: 1, 384>}, {pipeline_mode = #tpu.pipeline_mode<synchronous>, transform_indices = @transform_11, window_bounds = array<i64: 1, 768>}, {transform_indices = @transform_12, window_bounds = array<i64: 128, 128>}]} {
    %c0_i32 = arith.constant 0 : i32
    %0 = arith.cmpi eq, %arg1, %c0_i32 : i32
    %1 = arith.extui %0 : i1 to i32
    %c0_i32_0 = arith.constant 0 : i32
    %2 = arith.cmpi ne, %1, %c0_i32_0 : i32
    scf.if %2 {
      %cst_19 = arith.constant 0.000000e+00 : f32
      %18 = vector.broadcast %cst_19 : f32 to vector<128x128xf32>
      %c0_20 = arith.constant 0 : index
      %c0_21 = arith.constant 0 : index
      %19 = vector.load %arg15[%c0_20, %c0_21] : memref<128x128xf32, #tpu.memory_space<vmem>>, vector<128x128xf32>
      tpu.vector_store %arg15[%c0_20, %c0_21], %18 {strides = array<i32>} : memref<128x128xf32, #tpu.memory_space<vmem>>, vector<128x128xf32>,
      %cst_22 = arith.constant 0.000000e+00 : f32
      %20 = vector.broadcast %cst_22 : f32 to vector<128x128xf32>
      %c0_23 = arith.constant 0 : index
      %c0_24 = arith.constant 0 : index
      %21 = vector.load %arg16[%c0_23, %c0_24] : memref<128x128xf32, #tpu.memory_space<vmem>>, vector<128x128xf32>
      tpu.vector_store %arg16[%c0_23, %c0_24], %20 {strides = array<i32>} : memref<128x128xf32, #tpu.memory_space<vmem>>, vector<128x128xf32>,
    } else {
    }
    %c0 = arith.constant 0 : index
    %c0_1 = arith.constant 0 : index
    %3 = vector.load %arg15[%c0, %c0_1] : memref<128x128xf32, #tpu.memory_space<vmem>>, vector<128x128xf32>
    %c0_2 = arith.constant 0 : index
    %c0_3 = arith.constant 0 : index
    %4 = vector.load %arg2[%c0_2, %c0_3] : memref<128x128xf32, #tpu.memory_space<vmem>>, vector<128x128xf32>
    %c0_4 = arith.constant 0 : index
    %c0_5 = arith.constant 0 : index
    %5 = vector.load %arg4[%c0_4, %c0_5] : memref<128x128xf32, #tpu.memory_space<vmem>>, vector<128x128xf32>
    %cst = arith.constant dense<0.000000e+00> : vector<128x128xf32>
    %6 = tpu.matmul %4, %5, %cst {dimension_numbers = #tpu.dot_dimension_numbers<[1], [0], [0], [1], [0, 0, 1, 1], [], []>} : vector<128x128xf32>, vector<128x128xf32>, vector<128x128xf32> -> vector<128x128xf32>
    %7 = arith.addf %3, %6 : vector<128x128xf32>
    %c0_6 = arith.constant 0 : index
    %c0_7 = arith.constant 0 : index
    %8 = vector.load %arg15[%c0_6, %c0_7] : memref<128x128xf32, #tpu.memory_space<vmem>>, vector<128x128xf32>
    tpu.vector_store %arg15[%c0_6, %c0_7], %7 {strides = array<i32>} : memref<128x128xf32, #tpu.memory_space<vmem>>, vector<128x128xf32>,
    %c0_8 = arith.constant 0 : index
    %c0_9 = arith.constant 0 : index
    %9 = vector.load %arg16[%c0_8, %c0_9] : memref<128x128xf32, #tpu.memory_space<vmem>>, vector<128x128xf32>
    %c0_10 = arith.constant 0 : index
    %c0_11 = arith.constant 0 : index
    %10 = vector.load %arg3[%c0_10, %c0_11] : memref<128x128xf32, #tpu.memory_space<vmem>>, vector<128x128xf32>
    %c0_12 = arith.constant 0 : index
    %c0_13 = arith.constant 0 : index
    %11 = vector.load %arg4[%c0_12, %c0_13] : memref<128x128xf32, #tpu.memory_space<vmem>>, vector<128x128xf32>
    %cst_14 = arith.constant dense<0.000000e+00> : vector<128x128xf32>
    %12 = tpu.matmul %10, %11, %cst_14 {dimension_numbers = #tpu.dot_dimension_numbers<[1], [0], [0], [1], [0, 0, 1, 1], [], []>} : vector<128x128xf32>, vector<128x128xf32>, vector<128x128xf32> -> vector<128x128xf32>
    %13 = arith.addf %9, %12 : vector<128x128xf32>
    %c0_15 = arith.constant 0 : index
    %c0_16 = arith.constant 0 : index
    %14 = vector.load %arg16[%c0_15, %c0_16] : memref<128x128xf32, #tpu.memory_space<vmem>>, vector<128x128xf32>
    tpu.vector_store %arg16[%c0_15, %c0_16], %13 {strides = array<i32>} : memref<128x128xf32, #tpu.memory_space<vmem>>, vector<128x128xf32>,
    %c0_i32_17 = arith.constant 0 : i32
    %15 = arith.cmpi eq, %arg1, %c0_i32_17 : i32
    %16 = arith.extui %15 : i1 to i32
    %c0_i32_18 = arith.constant 0 : i32
    %17 = arith.cmpi ne, %16, %c0_i32_18 : i32
    scf.if %17 {
      %c0_19 = arith.constant 0 : index
      %c0_20 = arith.constant 0 : index
      %18 = vector.load %arg5[%c0_19, %c0_20] : memref<128x128xf32, #tpu.memory_space<vmem>>, vector<128x128xf32>
      %c0_21 = arith.constant 0 : index
      %c0_22 = arith.constant 0 : index
      %19 = vector.load %arg6[%c0_21, %c0_22] : memref<128x1xf32, #tpu.memory_space<vmem>>, vector<128x1xf32>
      %c0_23 = arith.constant 0 : index
      %c0_24 = arith.constant 0 : index
      %20 = vector.load %arg7[%c0_23, %c0_24] : memref<128x1xf32, #tpu.memory_space<vmem>>, vector<128x1xf32>
      %c0_25 = arith.constant 0 : index
      %c0_26 = arith.constant 0 : index
      %21 = vector.load %arg15[%c0_25, %c0_26] : memref<128x128xf32, #tpu.memory_space<vmem>>, vector<128x128xf32>
      %22 = vector.broadcast %19 : vector<128x1xf32> to vector<128x128xf32>
      %23 = arith.mulf %22, %18 : vector<128x128xf32>
      %24 = arith.subf %21, %23 : vector<128x128xf32>
      %c0_27 = arith.constant 0 : index
      %c0_28 = arith.constant 0 : index
      %25 = vector.load %arg16[%c0_27, %c0_28] : memref<128x128xf32, #tpu.memory_space<vmem>>, vector<128x128xf32>
      %26 = vector.broadcast %20 : vector<128x1xf32> to vector<128x128xf32>
      %27 = arith.mulf %26, %18 : vector<128x128xf32>
      %28 = arith.subf %25, %27 : vector<128x128xf32>
      %c0_29 = arith.constant 0 : index
      %c0_30 = arith.constant 0 : index
      %29 = vector.load %arg8[%c0_29, %c0_30] : memref<128x384xf32, #tpu.memory_space<vmem>>, vector<128x128xf32>
      %cst_31 = arith.constant dense<0.000000e+00> : vector<128x128xf32>
      %30 = tpu.matmul %24, %29, %cst_31 {dimension_numbers = #tpu.dot_dimension_numbers<[1], [0], [0], [1], [0, 0, 1, 1], [], []>} : vector<128x128xf32>, vector<128x128xf32>, vector<128x128xf32> -> vector<128x128xf32>
      %c0_32 = arith.constant 0 : index
      %c0_33 = arith.constant 0 : index
      %31 = vector.load %arg11[%c0_32, %c0_33] : memref<1x384xf32, #tpu.memory_space<vmem>>, vector<1x128xf32>
      %32 = vector.broadcast %31 : vector<1x128xf32> to vector<128x128xf32>
      %33 = arith.addf %30, %32 : vector<128x128xf32>
      %c0_34 = arith.constant 0 : index
      %c0_35 = arith.constant 0 : index
      %34 = vector.load %arg10[%c0_34, %c0_35] : memref<128x768xf32, #tpu.memory_space<vmem>>, vector<128x128xf32>
      %cst_36 = arith.constant dense<0.000000e+00> : vector<128x128xf32>
      %35 = tpu.matmul %18, %34, %cst_36 {dimension_numbers = #tpu.dot_dimension_numbers<[1], [0], [0], [1], [0, 0, 1, 1], [], []>} : vector<128x128xf32>, vector<128x128xf32>, vector<128x128xf32> -> vector<128x128xf32>
      %c0_37 = arith.constant 0 : index
      %c0_38 = arith.constant 0 : index
      %36 = vector.load %arg13[%c0_37, %c0_38] : memref<1x768xf32, #tpu.memory_space<vmem>>, vector<1x128xf32>
      %37 = vector.broadcast %36 : vector<1x128xf32> to vector<128x128xf32>
      %38 = arith.addf %35, %37 : vector<128x128xf32>
      %39 = arith.addf %33, %38 : vector<128x128xf32>
      %40 = arith.negf %39 : vector<128x128xf32>
      %41 = math.exp %40 : vector<128x128xf32>
      %cst_39 = arith.constant 1.000000e+00 : f32
      %42 = vector.broadcast %cst_39 : f32 to vector<128x128xf32>
      %43 = arith.addf %42, %41 : vector<128x128xf32>
      %44 = arith.divf %42, %43 : vector<128x128xf32>
      %c0_40 = arith.constant 0 : index
      %c128 = arith.constant 128 : index
      %45 = vector.load %arg8[%c0_40, %c128] : memref<128x384xf32, #tpu.memory_space<vmem>>, vector<128x128xf32>
      %cst_41 = arith.constant dense<0.000000e+00> : vector<128x128xf32>
      %46 = tpu.matmul %24, %45, %cst_41 {dimension_numbers = #tpu.dot_dimension_numbers<[1], [0], [0], [1], [0, 0, 1, 1], [], []>} : vector<128x128xf32>, vector<128x128xf32>, vector<128x128xf32> -> vector<128x128xf32>
      %c0_42 = arith.constant 0 : index
      %c128_43 = arith.constant 128 : index
      %47 = vector.load %arg11[%c0_42, %c128_43] : memref<1x384xf32, #tpu.memory_space<vmem>>, vector<1x128xf32>
      %48 = vector.broadcast %47 : vector<1x128xf32> to vector<128x128xf32>
      %49 = arith.addf %46, %48 : vector<128x128xf32>
      %c0_44 = arith.constant 0 : index
      %c128_45 = arith.constant 128 : index
      %50 = vector.load %arg10[%c0_44, %c128_45] : memref<128x768xf32, #tpu.memory_space<vmem>>, vector<128x128xf32>
      %cst_46 = arith.constant dense<0.000000e+00> : vector<128x128xf32>
      %51 = tpu.matmul %18, %50, %cst_46 {dimension_numbers = #tpu.dot_dimension_numbers<[1], [0], [0], [1], [0, 0, 1, 1], [], []>} : vector<128x128xf32>, vector<128x128xf32>, vector<128x128xf32> -> vector<128x128xf32>
      %c0_47 = arith.constant 0 : index
      %c128_48 = arith.constant 128 : index
      %52 = vector.load %arg13[%c0_47, %c128_48] : memref<1x768xf32, #tpu.memory_space<vmem>>, vector<1x128xf32>
      %53 = vector.broadcast %52 : vector<1x128xf32> to vector<128x128xf32>
      %54 = arith.addf %51, %53 : vector<128x128xf32>
      %55 = arith.addf %49, %54 : vector<128x128xf32>
      %56 = arith.negf %55 : vector<128x128xf32>
      %57 = math.exp %56 : vector<128x128xf32>
      %cst_49 = arith.constant 1.000000e+00 : f32
      %58 = vector.broadcast %cst_49 : f32 to vector<128x128xf32>
      %59 = arith.addf %58, %57 : vector<128x128xf32>
      %60 = arith.divf %58, %59 : vector<128x128xf32>
      %c0_50 = arith.constant 0 : index
      %c256 = arith.constant 256 : index
      %61 = vector.load %arg8[%c0_50, %c256] : memref<128x384xf32, #tpu.memory_space<vmem>>, vector<128x128xf32>
      %cst_51 = arith.constant dense<0.000000e+00> : vector<128x128xf32>
      %62 = tpu.matmul %24, %61, %cst_51 {dimension_numbers = #tpu.dot_dimension_numbers<[1], [0], [0], [1], [0, 0, 1, 1], [], []>} : vector<128x128xf32>, vector<128x128xf32>, vector<128x128xf32> -> vector<128x128xf32>
      %c0_52 = arith.constant 0 : index
      %c256_53 = arith.constant 256 : index
      %63 = vector.load %arg11[%c0_52, %c256_53] : memref<1x384xf32, #tpu.memory_space<vmem>>, vector<1x128xf32>
      %64 = vector.broadcast %63 : vector<1x128xf32> to vector<128x128xf32>
      %65 = arith.addf %62, %64 : vector<128x128xf32>
      %c0_54 = arith.constant 0 : index
      %c256_55 = arith.constant 256 : index
      %66 = vector.load %arg10[%c0_54, %c256_55] : memref<128x768xf32, #tpu.memory_space<vmem>>, vector<128x128xf32>
      %cst_56 = arith.constant dense<0.000000e+00> : vector<128x128xf32>
      %67 = tpu.matmul %18, %66, %cst_56 {dimension_numbers = #tpu.dot_dimension_numbers<[1], [0], [0], [1], [0, 0, 1, 1], [], []>} : vector<128x128xf32>, vector<128x128xf32>, vector<128x128xf32> -> vector<128x128xf32>
      %c0_57 = arith.constant 0 : index
      %c256_58 = arith.constant 256 : index
      %68 = vector.load %arg13[%c0_57, %c256_58] : memref<1x768xf32, #tpu.memory_space<vmem>>, vector<1x128xf32>
      %69 = vector.broadcast %68 : vector<1x128xf32> to vector<128x128xf32>
      %70 = arith.addf %67, %69 : vector<128x128xf32>
      %71 = arith.mulf %44, %70 : vector<128x128xf32>
      %72 = arith.addf %65, %71 : vector<128x128xf32>
      %73 = math.tanh %72 : vector<128x128xf32>
      %cst_59 = arith.constant 1.000000e+00 : f32
      %74 = vector.broadcast %cst_59 : f32 to vector<128x128xf32>
      %75 = arith.subf %74, %60 : vector<128x128xf32>
      %76 = arith.mulf %75, %73 : vector<128x128xf32>
      %77 = arith.mulf %60, %18 : vector<128x128xf32>
      %78 = arith.addf %76, %77 : vector<128x128xf32>
      %79 = vector.broadcast %20 : vector<128x1xf32> to vector<128x128xf32>
      %80 = arith.mulf %79, %78 : vector<128x128xf32>
      %c0_60 = arith.constant 0 : index
      %c0_61 = arith.constant 0 : index
      %81 = vector.load %arg9[%c0_60, %c0_61] : memref<128x384xf32, #tpu.memory_space<vmem>>, vector<128x128xf32>
      %cst_62 = arith.constant dense<0.000000e+00> : vector<128x128xf32>
      %82 = tpu.matmul %28, %81, %cst_62 {dimension_numbers = #tpu.dot_dimension_numbers<[1], [0], [0], [1], [0, 0, 1, 1], [], []>} : vector<128x128xf32>, vector<128x128xf32>, vector<128x128xf32> -> vector<128x128xf32>
      %c0_63 = arith.constant 0 : index
      %c0_64 = arith.constant 0 : index
      %83 = vector.load %arg12[%c0_63, %c0_64] : memref<1x384xf32, #tpu.memory_space<vmem>>, vector<1x128xf32>
      %84 = vector.broadcast %83 : vector<1x128xf32> to vector<128x128xf32>
      %85 = arith.addf %82, %84 : vector<128x128xf32>
      %c0_65 = arith.constant 0 : index
      %c384 = arith.constant 384 : index
      %86 = vector.load %arg10[%c0_65, %c384] : memref<128x768xf32, #tpu.memory_space<vmem>>, vector<128x128xf32>
      %cst_66 = arith.constant dense<0.000000e+00> : vector<128x128xf32>
      %87 = tpu.matmul %18, %86, %cst_66 {dimension_numbers = #tpu.dot_dimension_numbers<[1], [0], [0], [1], [0, 0, 1, 1], [], []>} : vector<128x128xf32>, vector<128x128xf32>, vector<128x128xf32> -> vector<128x128xf32>
      %c0_67 = arith.constant 0 : index
      %c384_68 = arith.constant 384 : index
      %88 = vector.load %arg13[%c0_67, %c384_68] : memref<1x768xf32, #tpu.memory_space<vmem>>, vector<1x128xf32>
      %89 = vector.broadcast %88 : vector<1x128xf32> to vector<128x128xf32>
      %90 = arith.addf %87, %89 : vector<128x128xf32>
      %91 = arith.addf %85, %90 : vector<128x128xf32>
      %92 = arith.negf %91 : vector<128x128xf32>
      %93 = math.exp %92 : vector<128x128xf32>
      %cst_69 = arith.constant 1.000000e+00 : f32
      %94 = vector.broadcast %cst_69 : f32 to vector<128x128xf32>
      %95 = arith.addf %94, %93 : vector<128x128xf32>
      %96 = arith.divf %94, %95 : vector<128x128xf32>
      %c0_70 = arith.constant 0 : index
      %c128_71 = arith.constant 128 : index
      %97 = vector.load %arg9[%c0_70, %c128_71] : memref<128x384xf32, #tpu.memory_space<vmem>>, vector<128x128xf32>
      %cst_72 = arith.constant dense<0.000000e+00> : vector<128x128xf32>
      %98 = tpu.matmul %28, %97, %cst_72 {dimension_numbers = #tpu.dot_dimension_numbers<[1], [0], [0], [1], [0, 0, 1, 1], [], []>} : vector<128x128xf32>, vector<128x128xf32>, vector<128x128xf32> -> vector<128x128xf32>
      %c0_73 = arith.constant 0 : index
      %c128_74 = arith.constant 128 : index
      %99 = vector.load %arg12[%c0_73, %c128_74] : memref<1x384xf32, #tpu.memory_space<vmem>>, vector<1x128xf32>
      %100 = vector.broadcast %99 : vector<1x128xf32> to vector<128x128xf32>
      %101 = arith.addf %98, %100 : vector<128x128xf32>
      %c0_75 = arith.constant 0 : index
      %c512 = arith.constant 512 : index
      %102 = vector.load %arg10[%c0_75, %c512] : memref<128x768xf32, #tpu.memory_space<vmem>>, vector<128x128xf32>
      %cst_76 = arith.constant dense<0.000000e+00> : vector<128x128xf32>
      %103 = tpu.matmul %18, %102, %cst_76 {dimension_numbers = #tpu.dot_dimension_numbers<[1], [0], [0], [1], [0, 0, 1, 1], [], []>} : vector<128x128xf32>, vector<128x128xf32>, vector<128x128xf32> -> vector<128x128xf32>
      %c0_77 = arith.constant 0 : index
      %c512_78 = arith.constant 512 : index
      %104 = vector.load %arg13[%c0_77, %c512_78] : memref<1x768xf32, #tpu.memory_space<vmem>>, vector<1x128xf32>
      %105 = vector.broadcast %104 : vector<1x128xf32> to vector<128x128xf32>
      %106 = arith.addf %103, %105 : vector<128x128xf32>
      %107 = arith.addf %101, %106 : vector<128x128xf32>
      %108 = arith.negf %107 : vector<128x128xf32>
      %109 = math.exp %108 : vector<128x128xf32>
      %cst_79 = arith.constant 1.000000e+00 : f32
      %110 = vector.broadcast %cst_79 : f32 to vector<128x128xf32>
      %111 = arith.addf %110, %109 : vector<128x128xf32>
      %112 = arith.divf %110, %111 : vector<128x128xf32>
      %c0_80 = arith.constant 0 : index
      %c256_81 = arith.constant 256 : index
      %113 = vector.load %arg9[%c0_80, %c256_81] : memref<128x384xf32, #tpu.memory_space<vmem>>, vector<128x128xf32>
      %cst_82 = arith.constant dense<0.000000e+00> : vector<128x128xf32>
      %114 = tpu.matmul %28, %113, %cst_82 {dimension_numbers = #tpu.dot_dimension_numbers<[1], [0], [0], [1], [0, 0, 1, 1], [], []>} : vector<128x128xf32>, vector<128x128xf32>, vector<128x128xf32> -> vector<128x128xf32>
      %c0_83 = arith.constant 0 : index
      %c256_84 = arith.constant 256 : index
      %115 = vector.load %arg12[%c0_83, %c256_84] : memref<1x384xf32, #tpu.memory_space<vmem>>, vector<1x128xf32>
      %116 = vector.broadcast %115 : vector<1x128xf32> to vector<128x128xf32>
      %117 = arith.addf %114, %116 : vector<128x128xf32>
      %c0_85 = arith.constant 0 : index
      %c640 = arith.constant 640 : index
      %118 = vector.load %arg10[%c0_85, %c640] : memref<128x768xf32, #tpu.memory_space<vmem>>, vector<128x128xf32>
      %cst_86 = arith.constant dense<0.000000e+00> : vector<128x128xf32>
      %119 = tpu.matmul %18, %118, %cst_86 {dimension_numbers = #tpu.dot_dimension_numbers<[1], [0], [0], [1], [0, 0, 1, 1], [], []>} : vector<128x128xf32>, vector<128x128xf32>, vector<128x128xf32> -> vector<128x128xf32>
      %c0_87 = arith.constant 0 : index
      %c640_88 = arith.constant 640 : index
      %120 = vector.load %arg13[%c0_87, %c640_88] : memref<1x768xf32, #tpu.memory_space<vmem>>, vector<1x128xf32>
      %121 = vector.broadcast %120 : vector<1x128xf32> to vector<128x128xf32>
      %122 = arith.addf %119, %121 : vector<128x128xf32>
      %123 = arith.mulf %96, %122 : vector<128x128xf32>
      %124 = arith.addf %117, %123 : vector<128x128xf32>
      %125 = math.tanh %124 : vector<128x128xf32>
      %cst_89 = arith.constant 1.000000e+00 : f32
      %126 = vector.broadcast %cst_89 : f32 to vector<128x128xf32>
      %127 = arith.subf %126, %112 : vector<128x128xf32>
      %128 = arith.mulf %127, %125 : vector<128x128xf32>
      %129 = arith.mulf %112, %18 : vector<128x128xf32>
      %130 = arith.addf %128, %129 : vector<128x128xf32>
      %131 = vector.broadcast %19 : vector<128x1xf32> to vector<128x128xf32>
      %132 = arith.mulf %131, %130 : vector<128x128xf32>
      %133 = arith.addf %80, %132 : vector<128x128xf32>
      %c0_90 = arith.constant 0 : index
      %c0_91 = arith.constant 0 : index
      %134 = vector.load %arg14[%c0_90, %c0_91] : memref<128x128xf32, #tpu.memory_space<vmem>>, vector<128x128xf32>
      tpu.vector_store %arg14[%c0_90, %c0_91], %133 {strides = array<i32>} : memref<128x128xf32, #tpu.memory_space<vmem>>, vector<128x128xf32>,
    } else {
    }
    return
  }
  func.func @transform_0(%arg0: i32, %arg1: i32) -> (i32, i32) {
    %c0_i32 = arith.constant 0 : i32
    return %arg0, %arg1 : i32, i32
  }
  func.func @transform_1(%arg0: i32, %arg1: i32) -> (i32, i32) {
    %c0_i32 = arith.constant 0 : i32
    return %arg0, %arg1 : i32, i32
  }
  func.func @transform_2(%arg0: i32, %arg1: i32) -> (i32, i32) {
    %c0_i32 = arith.constant 0 : i32
    %c0_i32_0 = arith.constant 0 : i32
    return %arg1, %c0_i32 : i32, i32
  }
  func.func @transform_3(%arg0: i32, %arg1: i32) -> (i32, i32) {
    %c0_i32 = arith.constant 0 : i32
    %c0_i32_0 = arith.constant 0 : i32
    return %arg0, %c0_i32 : i32, i32
  }
  func.func @transform_4(%arg0: i32, %arg1: i32) -> (i32, i32) {
    %c0_i32 = arith.constant 0 : i32
    %c0_i32_0 = arith.constant 0 : i32
    return %arg0, %c0_i32 : i32, i32
  }
  func.func @transform_5(%arg0: i32, %arg1: i32) -> (i32, i32) {
    %c0_i32 = arith.constant 0 : i32
    %c0_i32_0 = arith.constant 0 : i32
    return %arg0, %c0_i32 : i32, i32
  }
  func.func @transform_6(%arg0: i32, %arg1: i32) -> (i32, i32) {
    %c0_i32 = arith.constant 0 : i32
    %c0_i32_0 = arith.constant 0 : i32
    %c0_i32_1 = arith.constant 0 : i32
    return %c0_i32, %c0_i32_0 : i32, i32
  }
  func.func @transform_7(%arg0: i32, %arg1: i32) -> (i32, i32) {
    %c0_i32 = arith.constant 0 : i32
    %c0_i32_0 = arith.constant 0 : i32
    %c0_i32_1 = arith.constant 0 : i32
    return %c0_i32, %c0_i32_0 : i32, i32
  }
  func.func @transform_8(%arg0: i32, %arg1: i32) -> (i32, i32) {
    %c0_i32 = arith.constant 0 : i32
    %c0_i32_0 = arith.constant 0 : i32
    %c0_i32_1 = arith.constant 0 : i32
    return %c0_i32, %c0_i32_0 : i32, i32
  }
  func.func @transform_9(%arg0: i32, %arg1: i32) -> (i32, i32) {
    %c0_i32 = arith.constant 0 : i32
    %c0_i32_0 = arith.constant 0 : i32
    %c0_i32_1 = arith.constant 0 : i32
    return %c0_i32, %c0_i32_0 : i32, i32
  }
  func.func @transform_10(%arg0: i32, %arg1: i32) -> (i32, i32) {
    %c0_i32 = arith.constant 0 : i32
    %c0_i32_0 = arith.constant 0 : i32
    %c0_i32_1 = arith.constant 0 : i32
    return %c0_i32, %c0_i32_0 : i32, i32
  }
  func.func @transform_11(%arg0: i32, %arg1: i32) -> (i32, i32) {
    %c0_i32 = arith.constant 0 : i32
    %c0_i32_0 = arith.constant 0 : i32
    %c0_i32_1 = arith.constant 0 : i32
    return %c0_i32, %c0_i32_0 : i32, i32
  }
  func.func @transform_12(%arg0: i32, %arg1: i32) -> (i32, i32) {
    %c0_i32 = arith.constant 0 : i32
    %c0_i32_0 = arith.constant 0 : i32
    return %arg0, %c0_i32 : i32, i32
  }
}

</mosaic_0001>

<llo_original>
// kernel: tpu_custom_call.1
$region0: #{tpu_custom_call.1}
  #allocation0 [shape = 'u32[]', space=smem, size = 0x4, offset = 0x4, fixed_abs, tag = 'smem constant byte address 0x4 - core index']
  #allocation1 [shape = 'u32[144,128]{1,0:T(1,128)}', space=vmem, size = 0x12000, scoped, tag = 'internal scratch']
  #allocation2 [shape = 'f32[128,128]{1,0:T(8,128)}', space=vmem, size = 0x10000, scoped, tag = 'scratch operand']
  #allocation3 [shape = 'f32[128,128]{1,0:T(8,128)}', space=vmem, size = 0x10000, scoped, tag = 'scratch operand']
  %s0 = inlined_call_operand.vmem [shape: f32[128,128], index: 0, kind: input, shape index: {}]
  %s1 = inlined_call_operand.vmem [shape: f32[128,128], index: 1, kind: input, shape index: {}]
  %s2 = inlined_call_operand.hbm [shape: f32[128,128], index: 2, kind: input, shape index: {}]
  %s3 = inlined_call_operand.hbm [shape: f32[128,128], index: 3, kind: input, shape index: {}]
  %s4 = inlined_call_operand.vmem [shape: f32[128,1], index: 4, kind: input, shape index: {}]
  %s5 = inlined_call_operand.vmem [shape: f32[128,1], index: 5, kind: input, shape index: {}]
  %s6 = inlined_call_operand.hbm [shape: f32[128,384], index: 6, kind: input, shape index: {}]
  %s7 = inlined_call_operand.hbm [shape: f32[128,384], index: 7, kind: input, shape index: {}]
  %s8 = inlined_call_operand.hbm [shape: f32[128,768], index: 8, kind: input, shape index: {}]
  %s9 = inlined_call_operand.vmem [shape: f32[1,384], index: 9, kind: input, shape index: {}]
  %s10 = inlined_call_operand.vmem [shape: f32[1,384], index: 10, kind: input, shape index: {}]
  %s11 = inlined_call_operand.vmem [shape: f32[1,768], index: 11, kind: input, shape index: {}]
  %s12 = inlined_call_operand.hbm [shape: f32[128,128], index: 12, kind: output, shape index: {}]
  %s13 = sld [smem:[#allocation0]]
  $region86: #{tpu_custom_call.1} parent=0
    _
  %s15 = ssub.s32 1, %s13
  %s16 = scalar_select 0, %s15, %s13
  $region1: #{tpu_custom_call.1} parent=0
    #allocation4 [shape = 'u8[65536]{0}', space=vmem, size = 0x10000, scoped, tag = 'input window, operand 2, single buffered']
    #allocation5 [shape = 's32[1]{0}', space=sflag, size = 0x4, scoped, tag = 'scoped memory for tpu_custom_call.1']
    #allocation6 [shape = 's32[1]{0}', space=sflag, size = 0x4, scoped, tag = 'scoped memory for tpu_custom_call.1']
    #allocation7 [shape = 'u8[65536]{0}', space=vmem, size = 0x10000, scoped, tag = 'input window, operand 3, single buffered']
    #allocation8 [shape = 's32[1]{0}', space=sflag, size = 0x4, scoped, tag = 'scoped memory for tpu_custom_call.1']
    #allocation9 [shape = 'u8[196608]{0}', space=vmem, size = 0x30000, scoped, tag = 'input window, operand 6, single buffered']
    #allocation10 [shape = 'u8[196608]{0}', space=vmem, size = 0x30000, scoped, tag = 'input window, operand 7, single buffered']
    #allocation11 [shape = 's32[1]{0}', space=sflag, size = 0x4, scoped, tag = 'scoped memory for tpu_custom_call.1']
    #allocation12 [shape = 'u8[393216]{0}', space=vmem, size = 0x60000, scoped, tag = 'input window, operand 8, single buffered']
    #allocation13 [shape = 'u8[65536]{0}', space=vmem, size = 0x10000, scoped, tag = 'output window, operand 0, single buffered']
    %17 = vsyncpa [#allocation5], 0
    %18 = vsyncpa [#allocation8], 0
    %19 = vsyncpa [#allocation11], 0
    %20 = vsyncpa [#allocation6], 0
    // Predicated region
    $region2: #{tpu_custom_call.1} parent=1 // pred_check
      _
    $region3: #{tpu_custom_call.1} parent=1 // pred_check_branch
      %22 = sbr.rel (0) target = $region5
    $region4: #{tpu_custom_call.1} parent=1 // pred_region
      _
    $region5: #{tpu_custom_call.1} parent=1 // pred_fallthru
      _
    // Predicated region
    $region6: #{tpu_custom_call.1} parent=1 // pred_check
      _
    $region7: #{tpu_custom_call.1} parent=1 // pred_check_branch
      %24 = sbr.rel (0) target = $region9
    $region8: #{tpu_custom_call.1} parent=1 // pred_region
      _
    $region9: #{tpu_custom_call.1} parent=1 // pred_fallthru
      _
    // Predicated region
    $region10: #{tpu_custom_call.1} parent=1 // pred_check
      _
    $region11: #{tpu_custom_call.1} parent=1 // pred_check_branch
      %26 = sbr.rel (0) target = $region13
    $region12: #{tpu_custom_call.1} parent=1 // pred_region
      %s28 = ssub.s32 2048, 2048
      %29 = vsyncadd [#allocation5], %s28
      %s30 = sshll.u32 [#allocation4], 4
      %s31 = int_to_ptr.vmem [resolvable:$true] %s30
      %36 = dma.hbm_to_vmem [thread:$0]  %s2, 2048, %s31, [#allocation5], 128, 128, 8
    $region13: #{tpu_custom_call.1} parent=1 // pred_fallthru
      _
    // Predicated region
    $region14: #{tpu_custom_call.1} parent=1 // pred_check
      _
    $region15: #{tpu_custom_call.1} parent=1 // pred_check_branch
      %38 = sbr.rel (0) target = $region17
    $region16: #{tpu_custom_call.1} parent=1 // pred_region
      %s40 = ssub.s32 2048, 2048
      %41 = vsyncadd [#allocation8], %s40
      %s42 = sshll.u32 [#allocation7], 4
      %s43 = int_to_ptr.vmem [resolvable:$true] %s42
      %48 = dma.hbm_to_vmem [thread:$0]  %s3, 2048, %s43, [#allocation8], 128, 128, 8
    $region17: #{tpu_custom_call.1} parent=1 // pred_fallthru
      _
    // Predicated region
    $region18: #{tpu_custom_call.1} parent=1 // pred_check
      _
    $region19: #{tpu_custom_call.1} parent=1 // pred_check_branch
      %50 = sbr.rel (0) target = $region21
    $region20: #{tpu_custom_call.1} parent=1 // pred_region
      _
    $region21: #{tpu_custom_call.1} parent=1 // pred_fallthru
      _
    // Predicated region
    $region22: #{tpu_custom_call.1} parent=1 // pred_check
      _
    $region23: #{tpu_custom_call.1} parent=1 // pred_check_branch
      %52 = sbr.rel (0) target = $region25
    $region24: #{tpu_custom_call.1} parent=1 // pred_region
      _
    $region25: #{tpu_custom_call.1} parent=1 // pred_fallthru
      _
    // Predicated region
    $region26: #{tpu_custom_call.1} parent=1 // pred_check
      _
    $region27: #{tpu_custom_call.1} parent=1 // pred_check_branch
      %54 = sbr.rel (0) target = $region29
    $region28: #{tpu_custom_call.1} parent=1 // pred_region
      %s56 = ssub.s32 6144, 6144
      %57 = vsyncadd [#allocation8], %s56
      %s58 = sshll.u32 [#allocation9], 4
      %s59 = int_to_ptr.vmem [resolvable:$true] %s58
      %64 = dma.hbm_to_vmem [thread:$0]  %s6, 6144, %s59, [#allocation8], 384, 384, 24
    $region29: #{tpu_custom_call.1} parent=1 // pred_fallthru
      _
    // Predicated region
    $region30: #{tpu_custom_call.1} parent=1 // pred_check
      _
    $region31: #{tpu_custom_call.1} parent=1 // pred_check_branch
      %66 = sbr.rel (0) target = $region33
    $region32: #{tpu_custom_call.1} parent=1 // pred_region
      %s68 = ssub.s32 6144, 6144
      %69 = vsyncadd [#allocation11], %s68
      %s70 = sshll.u32 [#allocation10], 4
      %s71 = int_to_ptr.vmem [resolvable:$true] %s70
      %76 = dma.hbm_to_vmem [thread:$0]  %s7, 6144, %s71, [#allocation11], 384, 384, 24
    $region33: #{tpu_custom_call.1} parent=1 // pred_fallthru
      _
    // Predicated region
    $region34: #{tpu_custom_call.1} parent=1 // pred_check
      _
    $region35: #{tpu_custom_call.1} parent=1 // pred_check_branch
      %78 = sbr.rel (0) target = $region37
    $region36: #{tpu_custom_call.1} parent=1 // pred_region
      %s80 = ssub.s32 12288, 12288
      %81 = vsyncadd [#allocation11], %s80
      %s82 = sshll.u32 [#allocation12], 4
      %s83 = int_to_ptr.vmem [resolvable:$true] %s82
      %88 = dma.hbm_to_vmem [thread:$0]  %s8, 12288, %s83, [#allocation11], 768, 768, 48
    $region37: #{tpu_custom_call.1} parent=1 // pred_fallthru
      _
    // Predicated region
    $region38: #{tpu_custom_call.1} parent=1 // pred_check
      _
    $region39: #{tpu_custom_call.1} parent=1 // pred_check_branch
      %90 = sbr.rel (0) target = $region41
    $region40: #{tpu_custom_call.1} parent=1 // pred_region
      _
    $region41: #{tpu_custom_call.1} parent=1 // pred_fallthru
      _
    // Predicated region
    $region42: #{tpu_custom_call.1} parent=1 // pred_check
      _
    $region43: #{tpu_custom_call.1} parent=1 // pred_check_branch
      %92 = sbr.rel (0) target = $region45
    $region44: #{tpu_custom_call.1} parent=1 // pred_region
      _
    $region45: #{tpu_custom_call.1} parent=1 // pred_fallthru
      _
    // Predicated region
    $region46: #{tpu_custom_call.1} parent=1 // pred_check
      _
    $region47: #{tpu_custom_call.1} parent=1 // pred_check_branch
      %94 = sbr.rel (0) target = $region49
    $region48: #{tpu_custom_call.1} parent=1 // pred_region
      _
    $region49: #{tpu_custom_call.1} parent=1 // pred_fallthru
      _
    // Predicated region
    $region50: #{tpu_custom_call.1} parent=1 // pred_check
      _
    $region51: #{tpu_custom_call.1} parent=1 // pred_check_branch
      %96 = sbr.rel (0) target = $region53
    $region52: #{tpu_custom_call.1} parent=1 // pred_region
      %97 = dma.done [#allocation5], 2048
    $region53: #{tpu_custom_call.1} parent=1 // pred_fallthru
      _
    // Predicated region
    $region54: #{tpu_custom_call.1} parent=1 // pred_check
      _
    $region55: #{tpu_custom_call.1} parent=1 // pred_check_branch
      %99 = sbr.rel (0) target = $region57
    $region56: #{tpu_custom_call.1} parent=1 // pred_region
      %100 = dma.done [#allocation8], 2048
    $region57: #{tpu_custom_call.1} parent=1 // pred_fallthru
      _
    // Predicated region
    $region58: #{tpu_custom_call.1} parent=1 // pred_check
      _
    $region59: #{tpu_custom_call.1} parent=1 // pred_check_branch
      %102 = sbr.rel (0) target = $region61
    $region60: #{tpu_custom_call.1} parent=1 // pred_region
      %103 = dma.done [#allocation8], 6144
    $region61: #{tpu_custom_call.1} parent=1 // pred_fallthru
      _
    // Predicated region
    $region62: #{tpu_custom_call.1} parent=1 // pred_check
      _
    $region63: #{tpu_custom_call.1} parent=1 // pred_check_branch
      %105 = sbr.rel (0) target = $region65
    $region64: #{tpu_custom_call.1} parent=1 // pred_region
      %106 = dma.done [#allocation11], 6144
    $region65: #{tpu_custom_call.1} parent=1 // pred_fallthru
      _
    // Predicated region
    $region66: #{tpu_custom_call.1} parent=1 // pred_check
      _
    $region67: #{tpu_custom_call.1} parent=1 // pred_check_branch
      %108 = sbr.rel (0) target = $region69
    $region68: #{tpu_custom_call.1} parent=1 // pred_region
      %109 = dma.done [#allocation11], 12288
    $region69: #{tpu_custom_call.1} parent=1 // pred_fallthru
      _
    %p110 = scmp.eq.s32.totalorder 0, 0
    // Predicated region
    $region70: #{tpu_custom_call.1} parent=1 // pred_check
      %p111 = pneg %p110
    $region71: #{tpu_custom_call.1} parent=1 // pred_check_branch
      %113 = sbr.rel (%p111) target = $region73
    $region72: #{tpu_custom_call.1} parent=1 // pred_region
      %114 = vst [vmem:[#allocation2] sm:$0xff] 0.0
      %115 = vst [vmem:[#allocation2 + $0x8] sm:$0xff] 0.0
      %116 = vst [vmem:[#allocation2 + $0x10] sm:$0xff] 0.0
      %117 = vst [vmem:[#allocation2 + $0x18] sm:$0xff] 0.0
      %118 = vst [vmem:[#allocation2 + $0x20] sm:$0xff] 0.0
      %119 = vst [vmem:[#allocation2 + $0x28] sm:$0xff] 0.0
      %120 = vst [vmem:[#allocation2 + $0x30] sm:$0xff] 0.0
      %121 = vst [vmem:[#allocation2 + $0x38] sm:$0xff] 0.0
      %122 = vst [vmem:[#allocation2 + $0x40] sm:$0xff] 0.0
      %123 = vst [vmem:[#allocation2 + $0x48] sm:$0xff] 0.0
      %124 = vst [vmem:[#allocation2 + $0x50] sm:$0xff] 0.0
      %125 = vst [vmem:[#allocation2 + $0x58] sm:$0xff] 0.0
      %126 = vst [vmem:[#allocation2 + $0x60] sm:$0xff] 0.0
      %127 = vst [vmem:[#allocation2 + $0x68] sm:$0xff] 0.0
      %128 = vst [vmem:[#allocation2 + $0x70] sm:$0xff] 0.0
      %129 = vst [vmem:[#allocation2 + $0x78] sm:$0xff] 0.0
      %130 = vst [vmem:[#allocation3] sm:$0xff] 0.0
      %131 = vst [vmem:[#allocation3 + $0x8] sm:$0xff] 0.0
      %132 = vst [vmem:[#allocation3 + $0x10] sm:$0xff] 0.0
      %133 = vst [vmem:[#allocation3 + $0x18] sm:$0xff] 0.0
      %134 = vst [vmem:[#allocation3 + $0x20] sm:$0xff] 0.0
      %135 = vst [vmem:[#allocation3 + $0x28] sm:$0xff] 0.0
      %136 = vst [vmem:[#allocation3 + $0x30] sm:$0xff] 0.0
      %137 = vst [vmem:[#allocation3 + $0x38] sm:$0xff] 0.0
      %138 = vst [vmem:[#allocation3 + $0x40] sm:$0xff] 0.0
      %139 = vst [vmem:[#allocation3 + $0x48] sm:$0xff] 0.0
      %140 = vst [vmem:[#allocation3 + $0x50] sm:$0xff] 0.0
      %141 = vst [vmem:[#allocation3 + $0x58] sm:$0xff] 0.0
      %142 = vst [vmem:[#allocation3 + $0x60] sm:$0xff] 0.0
      %143 = vst [vmem:[#allocation3 + $0x68] sm:$0xff] 0.0
      %144 = vst [vmem:[#allocation3 + $0x70] sm:$0xff] 0.0
      %145 = vst [vmem:[#allocation3 + $0x78] sm:$0xff] 0.0
    $region73: #{tpu_custom_call.1} parent=1 // pred_fallthru
      _
    %v146 = vld [vmem:[#allocation2] sm:$0xff]
    %v147 = vld [vmem:[#allocation2 + $0x8] sm:$0xff]
    %v148 = vld [vmem:[#allocation2 + $0x10] sm:$0xff]
    %v149 = vld [vmem:[#allocation2 + $0x18] sm:$0xff]
    %v150 = vld [vmem:[#allocation2 + $0x20] sm:$0xff]
    %v151 = vld [vmem:[#allocation2 + $0x28] sm:$0xff]
    %v152 = vld [vmem:[#allocation2 + $0x30] sm:$0xff]
    %v153 = vld [vmem:[#allocation2 + $0x38] sm:$0xff]
    %v154 = vld [vmem:[#allocation2 + $0x40] sm:$0xff]
    %v155 = vld [vmem:[#allocation2 + $0x48] sm:$0xff]
    %v156 = vld [vmem:[#allocation2 + $0x50] sm:$0xff]
    %v157 = vld [vmem:[#allocation2 + $0x58] sm:$0xff]
    %v158 = vld [vmem:[#allocation2 + $0x60] sm:$0xff]
    %v159 = vld [vmem:[#allocation2 + $0x68] sm:$0xff]
    %v160 = vld [vmem:[#allocation2 + $0x70] sm:$0xff]
    %v161 = vld [vmem:[#allocation2 + $0x78] sm:$0xff]
    %v162 = vld [vmem:[%s0] sm:$0xff]
    %v163 = vld [vmem:[%s0 + $0x8] sm:$0xff]
    %v164 = vld [vmem:[%s0 + $0x10] sm:$0xff]
    %v165 = vld [vmem:[%s0 + $0x18] sm:$0xff]
    %v166 = vld [vmem:[%s0 + $0x20] sm:$0xff]
    %v167 = vld [vmem:[%s0 + $0x28] sm:$0xff]
    %v168 = vld [vmem:[%s0 + $0x30] sm:$0xff]
    %v169 = vld [vmem:[%s0 + $0x38] sm:$0xff]
    %v170 = vld [vmem:[%s0 + $0x40] sm:$0xff]
    %v171 = vld [vmem:[%s0 + $0x48] sm:$0xff]
    %v172 = vld [vmem:[%s0 + $0x50] sm:$0xff]
    %v173 = vld [vmem:[%s0 + $0x58] sm:$0xff]
    %v174 = vld [vmem:[%s0 + $0x60] sm:$0xff]
    %v175 = vld [vmem:[%s0 + $0x68] sm:$0xff]
    %v176 = vld [vmem:[%s0 + $0x70] sm:$0xff]
    %v177 = vld [vmem:[%s0 + $0x78] sm:$0xff]
    %v178 = vld [vmem:[#allocation4] sm:$0xff]
    %v179 = vld [vmem:[#allocation4 + $0x8] sm:$0xff]
    %v180 = vld [vmem:[#allocation4 + $0x10] sm:$0xff]
    %v181 = vld [vmem:[#allocation4 + $0x18] sm:$0xff]
    %v182 = vld [vmem:[#allocation4 + $0x20] sm:$0xff]
    %v183 = vld [vmem:[#allocation4 + $0x28] sm:$0xff]
    %v184 = vld [vmem:[#allocation4 + $0x30] sm:$0xff]
    %v185 = vld [vmem:[#allocation4 + $0x38] sm:$0xff]
    %v186 = vld [vmem:[#allocation4 + $0x40] sm:$0xff]
    %v187 = vld [vmem:[#allocation4 + $0x48] sm:$0xff]
    %v188 = vld [vmem:[#allocation4 + $0x50] sm:$0xff]
    %v189 = vld [vmem:[#allocation4 + $0x58] sm:$0xff]
    %v190 = vld [vmem:[#allocation4 + $0x60] sm:$0xff]
    %v191 = vld [vmem:[#allocation4 + $0x68] sm:$0xff]
    %v192 = vld [vmem:[#allocation4 + $0x70] sm:$0xff]
    %v193 = vld [vmem:[#allocation4 + $0x78] sm:$0xff]
    %194 = vmatprep.subr.mxu0 0.0
    %195 = vmatpush1.msra.mxu0 %v193
    %196 = vmatprep.subr.mxu0 0.0
    %197 = vmatpush1.msra.mxu0 %v192
    %198 = vmatprep.subr.mxu0 0.0
    %199 = vmatpush1.msra.mxu0 %v191
    %200 = vmatprep.subr.mxu0 0.0
    %201 = vmatpush1.msra.mxu0 %v190
    %202 = vmatprep.subr.mxu0 0.0
    %203 = vmatpush1.msra.mxu0 %v189
    %204 = vmatprep.subr.mxu0 0.0
    %205 = vmatpush1.msra.mxu0 %v188
    %206 = vmatprep.subr.mxu0 0.0
    %207 = vmatpush1.msra.mxu0 %v187
    %208 = vmatprep.subr.mxu0 0.0
    %209 = vmatpush1.msra.mxu0 %v186
    %210 = vmatprep.subr.mxu0 0.0
    %211 = vmatpush1.msra.mxu0 %v185
    %212 = vmatprep.subr.mxu0 0.0
    %213 = vmatpush1.msra.mxu0 %v184
    %214 = vmatprep.subr.mxu0 0.0
    %215 = vmatpush1.msra.mxu0 %v183
    %216 = vmatprep.subr.mxu0 0.0
    %217 = vmatpush1.msra.mxu0 %v182
    %218 = vmatprep.subr.mxu0 0.0
    %219 = vmatpush1.msra.mxu0 %v181
    %220 = vmatprep.subr.mxu0 0.0
    %221 = vmatpush1.msra.mxu0 %v180
    %222 = vmatprep.subr.mxu0 0.0
    %223 = vmatpush1.msra.mxu0 %v179
    %224 = vmatprep.subr.mxu0 0.0
    %225 = vmatpush1.msra.mxu0 %v178
    %226 = vmatprep.subr.mxu0 0.0
    %227 = vmatpush2.msra.mxu0 0.0
    %228 = vmatprep.subr.mxu0 0.0
    %229 = vmatpush2.msra.mxu0 0.0
    %230 = vmatprep.subr.mxu0 0.0
    %231 = vmatpush2.msra.mxu0 0.0
    %232 = vmatprep.subr.mxu0 0.0
    %233 = vmatpush2.msra.mxu0 0.0
    %234 = vmatprep.subr.mxu0 0.0
    %235 = vmatpush2.msra.mxu0 0.0
    %236 = vmatprep.subr.mxu0 0.0
    %237 = vmatpush2.msra.mxu0 0.0
    %238 = vmatprep.subr.mxu0 0.0
    %239 = vmatpush2.msra.mxu0 0.0
    %240 = vmatprep.subr.mxu0 0.0
    %241 = vmatpush2.msra.mxu0 0.0
    %242 = vmatprep.subr.mxu0 0.0
    %243 = vmatpush2.msra.mxu0 0.0
    %244 = vmatprep.subr.mxu0 0.0
    %245 = vmatpush2.msra.mxu0 0.0
    %246 = vmatprep.subr.mxu0 0.0
    %247 = vmatpush2.msra.mxu0 0.0
    %248 = vmatprep.subr.mxu0 0.0
    %249 = vmatpush2.msra.mxu0 0.0
    %250 = vmatprep.subr.mxu0 0.0
    %251 = vmatpush2.msra.mxu0 0.0
    %252 = vmatprep.subr.mxu0 0.0
    %253 = vmatpush2.msra.mxu0 0.0
    %254 = vmatprep.subr.mxu0 0.0
    %255 = vmatpush2.msra.mxu0 0.0
    %256 = vmatprep.subr.mxu0 0.0
    %257 = vmatpush2.msra.mxu0 0.0
    %258 = vmatprep.mubr.f32.mxu0 0.0
    %259 = vmatmul.mubr.f32.gmra.mxu0 %v162
    %v260 = vpop.f32.mrf.mxu0
    %v261 = vadd.f32 0.0, %v260
    %v262 = vpop.f32.mrf.mxu0
    %263 = vmatprep.mubr.f32.mxu0 0.0
    %264 = vmatmul.mubr.f32.gmra.mxu0 %v163
    %v265 = vpop.f32.mrf.mxu0
    %v266 = vadd.f32 0.0, %v265
    %v267 = vpop.f32.mrf.mxu0
    %268 = vmatprep.mubr.f32.mxu0 0.0
    %269 = vmatmul.mubr.f32.gmra.mxu0 %v164
    %v270 = vpop.f32.mrf.mxu0
    %v271 = vadd.f32 0.0, %v270
    %v272 = vpop.f32.mrf.mxu0
    %273 = vmatprep.mubr.f32.mxu0 0.0
    %274 = vmatmul.mubr.f32.gmra.mxu0 %v165
    %v275 = vpop.f32.mrf.mxu0
    %v276 = vadd.f32 0.0, %v275
    %v277 = vpop.f32.mrf.mxu0
    %278 = vmatprep.mubr.f32.mxu0 0.0
    %279 = vmatmul.mubr.f32.gmra.mxu0 %v166
    %v280 = vpop.f32.mrf.mxu0
    %v281 = vadd.f32 0.0, %v280
    %v282 = vpop.f32.mrf.mxu0
    %283 = vmatprep.mubr.f32.mxu0 0.0
    %284 = vmatmul.mubr.f32.gmra.mxu0 %v167
    %v285 = vpop.f32.mrf.mxu0
    %v286 = vadd.f32 0.0, %v285
    %v287 = vpop.f32.mrf.mxu0
    %288 = vmatprep.mubr.f32.mxu0 0.0
    %289 = vmatmul.mubr.f32.gmra.mxu0 %v168
    %v290 = vpop.f32.mrf.mxu0
    %v291 = vadd.f32 0.0, %v290
    %v292 = vpop.f32.mrf.mxu0
    %293 = vmatprep.mubr.f32.mxu0 0.0
    %294 = vmatmul.mubr.f32.gmra.mxu0 %v169
    %v295 = vpop.f32.mrf.mxu0
    %v296 = vadd.f32 0.0, %v295
    %v297 = vpop.f32.mrf.mxu0
    %298 = vmatprep.mubr.f32.mxu0 0.0
    %299 = vmatmul.mubr.f32.gmra.mxu0 %v170
    %v300 = vpop.f32.mrf.mxu0
    %v301 = vadd.f32 0.0, %v300
    %v302 = vpop.f32.mrf.mxu0
    %303 = vmatprep.mubr.f32.mxu0 0.0
    %304 = vmatmul.mubr.f32.gmra.mxu0 %v171
    %v305 = vpop.f32.mrf.mxu0
    %v306 = vadd.f32 0.0, %v305
    %v307 = vpop.f32.mrf.mxu0
    %308 = vmatprep.mubr.f32.mxu0 0.0
    %309 = vmatmul.mubr.f32.gmra.mxu0 %v172
    %v310 = vpop.f32.mrf.mxu0
    %v311 = vadd.f32 0.0, %v310
    %v312 = vpop.f32.mrf.mxu0
    %313 = vmatprep.mubr.f32.mxu0 0.0
    %314 = vmatmul.mubr.f32.gmra.mxu0 %v173
    %v315 = vpop.f32.mrf.mxu0
    %v316 = vadd.f32 0.0, %v315
    %v317 = vpop.f32.mrf.mxu0
    %318 = vmatprep.mubr.f32.mxu0 0.0
    %319 = vmatmul.mubr.f32.gmra.mxu0 %v174
    %v320 = vpop.f32.mrf.mxu0
    %v321 = vadd.f32 0.0, %v320
    %v322 = vpop.f32.mrf.mxu0
    %323 = vmatprep.mubr.f32.mxu0 0.0
    %324 = vmatmul.mubr.f32.gmra.mxu0 %v175
    %v325 = vpop.f32.mrf.mxu0
    %v326 = vadd.f32 0.0, %v325
    %v327 = vpop.f32.mrf.mxu0
    %328 = vmatprep.mubr.f32.mxu0 0.0
    %329 = vmatmul.mubr.f32.gmra.mxu0 %v176
    %v330 = vpop.f32.mrf.mxu0
    %v331 = vadd.f32 0.0, %v330
    %v332 = vpop.f32.mrf.mxu0
    %333 = vmatprep.mubr.f32.mxu0 0.0
    %334 = vmatmul.mubr.f32.gmra.mxu0 %v177
    %v335 = vpop.f32.mrf.mxu0
    %v336 = vadd.f32 0.0, %v335
    %v337 = vpop.f32.mrf.mxu0
    %338 = vdwg.mxu0
    %v339 = vadd.f32 %v146, %v261
    %v340 = vadd.f32 %v147, %v266
    %v341 = vadd.f32 %v148, %v271
    %v342 = vadd.f32 %v149, %v276
    %v343 = vadd.f32 %v150, %v281
    %v344 = vadd.f32 %v151, %v286
    %v345 = vadd.f32 %v152, %v291
    %v346 = vadd.f32 %v153, %v296
    %v347 = vadd.f32 %v154, %v301
    %v348 = vadd.f32 %v155, %v306
    %v349 = vadd.f32 %v156, %v311
    %v350 = vadd.f32 %v157, %v316
    %v351 = vadd.f32 %v158, %v321
    %v352 = vadd.f32 %v159, %v326
    %v353 = vadd.f32 %v160, %v331
    %v354 = vadd.f32 %v161, %v336
    %355 = vst [vmem:[#allocation2] sm:$0xff] %v339
    %356 = vst [vmem:[#allocation2 + $0x8] sm:$0xff] %v340
    %357 = vst [vmem:[#allocation2 + $0x10] sm:$0xff] %v341
    %358 = vst [vmem:[#allocation2 + $0x18] sm:$0xff] %v342
    %359 = vst [vmem:[#allocation2 + $0x20] sm:$0xff] %v343
    %360 = vst [vmem:[#allocation2 + $0x28] sm:$0xff] %v344
    %361 = vst [vmem:[#allocation2 + $0x30] sm:$0xff] %v345
    %362 = vst [vmem:[#allocation2 + $0x38] sm:$0xff] %v346
    %363 = vst [vmem:[#allocation2 + $0x40] sm:$0xff] %v347
    %364 = vst [vmem:[#allocation2 + $0x48] sm:$0xff] %v348
    %365 = vst [vmem:[#allocation2 + $0x50] sm:$0xff] %v349
    %366 = vst [vmem:[#allocation2 + $0x58] sm:$0xff] %v350
    %367 = vst [vmem:[#allocation2 + $0x60] sm:$0xff] %v351
    %368 = vst [vmem:[#allocation2 + $0x68] sm:$0xff] %v352
    %369 = vst [vmem:[#allocation2 + $0x70] sm:$0xff] %v353
    %370 = vst [vmem:[#allocation2 + $0x78] sm:$0xff] %v354
    %v371 = vld [vmem:[#allocation3] sm:$0xff]
    %v372 = vld [vmem:[#allocation3 + $0x8] sm:$0xff]
    %v373 = vld [vmem:[#allocation3 + $0x10] sm:$0xff]
    %v374 = vld [vmem:[#allocation3 + $0x18] sm:$0xff]
    %v375 = vld [vmem:[#allocation3 + $0x20] sm:$0xff]
    %v376 = vld [vmem:[#allocation3 + $0x28] sm:$0xff]
    %v377 = vld [vmem:[#allocation3 + $0x30] sm:$0xff]
    %v378 = vld [vmem:[#allocation3 + $0x38] sm:$0xff]
    %v379 = vld [vmem:[#allocation3 + $0x40] sm:$0xff]
    %v380 = vld [vmem:[#allocation3 + $0x48] sm:$0xff]
    %v381 = vld [vmem:[#allocation3 + $0x50] sm:$0xff]
    %v382 = vld [vmem:[#allocation3 + $0x58] sm:$0xff]
    %v383 = vld [vmem:[#allocation3 + $0x60] sm:$0xff]
    %v384 = vld [vmem:[#allocation3 + $0x68] sm:$0xff]
    %v385 = vld [vmem:[#allocation3 + $0x70] sm:$0xff]
    %v386 = vld [vmem:[#allocation3 + $0x78] sm:$0xff]
    %v387 = vld [vmem:[%s1] sm:$0xff]
    %v388 = vld [vmem:[%s1 + $0x8] sm:$0xff]
    %v389 = vld [vmem:[%s1 + $0x10] sm:$0xff]
    %v390 = vld [vmem:[%s1 + $0x18] sm:$0xff]
    %v391 = vld [vmem:[%s1 + $0x20] sm:$0xff]
    %v392 = vld [vmem:[%s1 + $0x28] sm:$0xff]
    %v393 = vld [vmem:[%s1 + $0x30] sm:$0xff]
    %v394 = vld [vmem:[%s1 + $0x38] sm:$0xff]
    %v395 = vld [vmem:[%s1 + $0x40] sm:$0xff]
    %v396 = vld [vmem:[%s1 + $0x48] sm:$0xff]
    %v397 = vld [vmem:[%s1 + $0x50] sm:$0xff]
    %v398 = vld [vmem:[%s1 + $0x58] sm:$0xff]
    %v399 = vld [vmem:[%s1 + $0x60] sm:$0xff]
    %v400 = vld [vmem:[%s1 + $0x68] sm:$0xff]
    %v401 = vld [vmem:[%s1 + $0x70] sm:$0xff]
    %v402 = vld [vmem:[%s1 + $0x78] sm:$0xff]
    %v403 = vld [vmem:[#allocation4] sm:$0xff]
    %v404 = vld [vmem:[#allocation4 + $0x8] sm:$0xff]
    %v405 = vld [vmem:[#allocation4 + $0x10] sm:$0xff]
    %v406 = vld [vmem:[#allocation4 + $0x18] sm:$0xff]
    %v407 = vld [vmem:[#allocation4 + $0x20] sm:$0xff]
    %v408 = vld [vmem:[#allocation4 + $0x28] sm:$0xff]
    %v409 = vld [vmem:[#allocation4 + $0x30] sm:$0xff]
    %v410 = vld [vmem:[#allocation4 + $0x38] sm:$0xff]
    %v411 = vld [vmem:[#allocation4 + $0x40] sm:$0xff]
    %v412 = vld [vmem:[#allocation4 + $0x48] sm:$0xff]
    %v413 = vld [vmem:[#allocation4 + $0x50] sm:$0xff]
    %v414 = vld [vmem:[#allocation4 + $0x58] sm:$0xff]
    %v415 = vld [vmem:[#allocation4 + $0x60] sm:$0xff]
    %v416 = vld [vmem:[#allocation4 + $0x68] sm:$0xff]
    %v417 = vld [vmem:[#allocation4 + $0x70] sm:$0xff]
    %v418 = vld [vmem:[#allocation4 + $0x78] sm:$0xff]
    %419 = vmatprep.subr.mxu0 0.0
    %420 = vmatpush1.msra.mxu0 %v418
    %421 = vmatprep.subr.mxu0 0.0
    %422 = vmatpush1.msra.mxu0 %v417
    %423 = vmatprep.subr.mxu0 0.0
    %424 = vmatpush1.msra.mxu0 %v416
    %425 = vmatprep.subr.mxu0 0.0
    %426 = vmatpush1.msra.mxu0 %v415
    %427 = vmatprep.subr.mxu0 0.0
    %428 = vmatpush1.msra.mxu0 %v414
    %429 = vmatprep.subr.mxu0 0.0
    %430 = vmatpush1.msra.mxu0 %v413
    %431 = vmatprep.subr.mxu0 0.0
    %432 = vmatpush1.msra.mxu0 %v412
    %433 = vmatprep.subr.mxu0 0.0
    %434 = vmatpush1.msra.mxu0 %v411
    %435 = vmatprep.subr.mxu0 0.0
    %436 = vmatpush1.msra.mxu0 %v410
    %437 = vmatprep.subr.mxu0 0.0
    %438 = vmatpush1.msra.mxu0 %v409
    %439 = vmatprep.subr.mxu0 0.0
    %440 = vmatpush1.msra.mxu0 %v408
    %441 = vmatprep.subr.mxu0 0.0
    %442 = vmatpush1.msra.mxu0 %v407
    %443 = vmatprep.subr.mxu0 0.0
    %444 = vmatpush1.msra.mxu0 %v406
    %445 = vmatprep.subr.mxu0 0.0
    %446 = vmatpush1.msra.mxu0 %v405
    %447 = vmatprep.subr.mxu0 0.0
    %448 = vmatpush1.msra.mxu0 %v404
    %449 = vmatprep.subr.mxu0 0.0
    %450 = vmatpush1.msra.mxu0 %v403
    %451 = vmatprep.subr.mxu0 0.0
    %452 = vmatpush2.msra.mxu0 0.0
    %453 = vmatprep.subr.mxu0 0.0
    %454 = vmatpush2.msra.mxu0 0.0
    %455 = vmatprep.subr.mxu0 0.0
    %456 = vmatpush2.msra.mxu0 0.0
    %457 = vmatprep.subr.mxu0 0.0
    %458 = vmatpush2.msra.mxu0 0.0
    %459 = vmatprep.subr.mxu0 0.0
    %460 = vmatpush2.msra.mxu0 0.0
    %461 = vmatprep.subr.mxu0 0.0
    %462 = vmatpush2.msra.mxu0 0.0
    %463 = vmatprep.subr.mxu0 0.0
    %464 = vmatpush2.msra.mxu0 0.0
    %465 = vmatprep.subr.mxu0 0.0
    %466 = vmatpush2.msra.mxu0 0.0
    %467 = vmatprep.subr.mxu0 0.0
    %468 = vmatpush2.msra.mxu0 0.0
    %469 = vmatprep.subr.mxu0 0.0
    %470 = vmatpush2.msra.mxu0 0.0
    %471 = vmatprep.subr.mxu0 0.0
    %472 = vmatpush2.msra.mxu0 0.0
    %473 = vmatprep.subr.mxu0 0.0
    %474 = vmatpush2.msra.mxu0 0.0
    %475 = vmatprep.subr.mxu0 0.0
    %476 = vmatpush2.msra.mxu0 0.0
    %477 = vmatprep.subr.mxu0 0.0
    %478 = vmatpush2.msra.mxu0 0.0
    %479 = vmatprep.subr.mxu0 0.0
    %480 = vmatpush2.msra.mxu0 0.0
    %481 = vmatprep.subr.mxu0 0.0
    %482 = vmatpush2.msra.mxu0 0.0
    %483 = vmatprep.mubr.f32.mxu0 0.0
    %484 = vmatmul.mubr.f32.gmra.mxu0 %v387
    %v485 = vpop.f32.mrf.mxu0
    %v486 = vadd.f32 0.0, %v485
    %v487 = vpop.f32.mrf.mxu0
    %488 = vmatprep.mubr.f32.mxu0 0.0
    %489 = vmatmul.mubr.f32.gmra.mxu0 %v388
    %v490 = vpop.f32.mrf.mxu0
    %v491 = vadd.f32 0.0, %v490
    %v492 = vpop.f32.mrf.mxu0
    %493 = vmatprep.mubr.f32.mxu0 0.0
    %494 = vmatmul.mubr.f32.gmra.mxu0 %v389
    %v495 = vpop.f32.mrf.mxu0
    %v496 = vadd.f32 0.0, %v495
    %v497 = vpop.f32.mrf.mxu0
    %498 = vmatprep.mubr.f32.mxu0 0.0
    %499 = vmatmul.mubr.f32.gmra.mxu0 %v390
    %v500 = vpop.f32.mrf.mxu0
    %v501 = vadd.f32 0.0, %v500
    %v502 = vpop.f32.mrf.mxu0
    %503 = vmatprep.mubr.f32.mxu0 0.0
    %504 = vmatmul.mubr.f32.gmra.mxu0 %v391
    %v505 = vpop.f32.mrf.mxu0
    %v506 = vadd.f32 0.0, %v505
    %v507 = vpop.f32.mrf.mxu0
    %508 = vmatprep.mubr.f32.mxu0 0.0
    %509 = vmatmul.mubr.f32.gmra.mxu0 %v392
    %v510 = vpop.f32.mrf.mxu0
    %v511 = vadd.f32 0.0, %v510
    %v512 = vpop.f32.mrf.mxu0
    %513 = vmatprep.mubr.f32.mxu0 0.0
    %514 = vmatmul.mubr.f32.gmra.mxu0 %v393
    %v515 = vpop.f32.mrf.mxu0
    %v516 = vadd.f32 0.0, %v515
    %v517 = vpop.f32.mrf.mxu0
    %518 = vmatprep.mubr.f32.mxu0 0.0
    %519 = vmatmul.mubr.f32.gmra.mxu0 %v394
    %v520 = vpop.f32.mrf.mxu0
    %v521 = vadd.f32 0.0, %v520
    %v522 = vpop.f32.mrf.mxu0
    %523 = vmatprep.mubr.f32.mxu0 0.0
    %524 = vmatmul.mubr.f32.gmra.mxu0 %v395
    %v525 = vpop.f32.mrf.mxu0
    %v526 = vadd.f32 0.0, %v525
    %v527 = vpop.f32.mrf.mxu0
    %528 = vmatprep.mubr.f32.mxu0 0.0
    %529 = vmatmul.mubr.f32.gmra.mxu0 %v396
    %v530 = vpop.f32.mrf.mxu0
    %v531 = vadd.f32 0.0, %v530
    %v532 = vpop.f32.mrf.mxu0
    %533 = vmatprep.mubr.f32.mxu0 0.0
    %534 = vmatmul.mubr.f32.gmra.mxu0 %v397
    %v535 = vpop.f32.mrf.mxu0
    %v536 = vadd.f32 0.0, %v535
    %v537 = vpop.f32.mrf.mxu0
    %538 = vmatprep.mubr.f32.mxu0 0.0
    %539 = vmatmul.mubr.f32.gmra.mxu0 %v398
    %v540 = vpop.f32.mrf.mxu0
    %v541 = vadd.f32 0.0, %v540
    %v542 = vpop.f32.mrf.mxu0
    %543 = vmatprep.mubr.f32.mxu0 0.0
    %544 = vmatmul.mubr.f32.gmra.mxu0 %v399
    %v545 = vpop.f32.mrf.mxu0
    %v546 = vadd.f32 0.0, %v545
    %v547 = vpop.f32.mrf.mxu0
    %548 = vmatprep.mubr.f32.mxu0 0.0
    %549 = vmatmul.mubr.f32.gmra.mxu0 %v400
    %v550 = vpop.f32.mrf.mxu0
    %v551 = vadd.f32 0.0, %v550
    %v552 = vpop.f32.mrf.mxu0
    %553 = vmatprep.mubr.f32.mxu0 0.0
    %554 = vmatmul.mubr.f32.gmra.mxu0 %v401
    %v555 = vpop.f32.mrf.mxu0
    %v556 = vadd.f32 0.0, %v555
    %v557 = vpop.f32.mrf.mxu0
    %558 = vmatprep.mubr.f32.mxu0 0.0
    %559 = vmatmul.mubr.f32.gmra.mxu0 %v402
    %v560 = vpop.f32.mrf.mxu0
    %v561 = vadd.f32 0.0, %v560
    %v562 = vpop.f32.mrf.mxu0
    %563 = vdwg.mxu0
    %v564 = vadd.f32 %v371, %v486
    %v565 = vadd.f32 %v372, %v491
    %v566 = vadd.f32 %v373, %v496
    %v567 = vadd.f32 %v374, %v501
    %v568 = vadd.f32 %v375, %v506
    %v569 = vadd.f32 %v376, %v511
    %v570 = vadd.f32 %v377, %v516
    %v571 = vadd.f32 %v378, %v521
    %v572 = vadd.f32 %v379, %v526
    %v573 = vadd.f32 %v380, %v531
    %v574 = vadd.f32 %v381, %v536
    %v575 = vadd.f32 %v382, %v541
    %v576 = vadd.f32 %v383, %v546
    %v577 = vadd.f32 %v384, %v551
    %v578 = vadd.f32 %v385, %v556
    %v579 = vadd.f32 %v386, %v561
    %580 = vst [vmem:[#allocation3] sm:$0xff] %v564
    %581 = vst [vmem:[#allocation3 + $0x8] sm:$0xff] %v565
    %582 = vst [vmem:[#allocation3 + $0x10] sm:$0xff] %v566
    %583 = vst [vmem:[#allocation3 + $0x18] sm:$0xff] %v567
    %584 = vst [vmem:[#allocation3 + $0x20] sm:$0xff] %v568
    %585 = vst [vmem:[#allocation3 + $0x28] sm:$0xff] %v569
    %586 = vst [vmem:[#allocation3 + $0x30] sm:$0xff] %v570
    %587 = vst [vmem:[#allocation3 + $0x38] sm:$0xff] %v571
    %588 = vst [vmem:[#allocation3 + $0x40] sm:$0xff] %v572
    %589 = vst [vmem:[#allocation3 + $0x48] sm:$0xff] %v573
    %590 = vst [vmem:[#allocation3 + $0x50] sm:$0xff] %v574
    %591 = vst [vmem:[#allocation3 + $0x58] sm:$0xff] %v575
    %592 = vst [vmem:[#allocation3 + $0x60] sm:$0xff] %v576
    %593 = vst [vmem:[#allocation3 + $0x68] sm:$0xff] %v577
    %594 = vst [vmem:[#allocation3 + $0x70] sm:$0xff] %v578
    %595 = vst [vmem:[#allocation3 + $0x78] sm:$0xff] %v579
    // Predicated region
    $region74: #{tpu_custom_call.1} parent=1 // pred_check
      %p596 = pneg %p110
    $region75: #{tpu_custom_call.1} parent=1 // pred_check_branch
      %598 = sbr.rel (%p596) target = $region77
    $region76: #{tpu_custom_call.1} parent=1 // pred_region
      %v599 = vld [vmem:[#allocation7] sm:$0xff]
      %v600 = vld [vmem:[#allocation7 + $0x8] sm:$0xff]
      %v601 = vld [vmem:[#allocation7 + $0x10] sm:$0xff]
      %v602 = vld [vmem:[#allocation7 + $0x18] sm:$0xff]
      %v603 = vld [vmem:[#allocation7 + $0x20] sm:$0xff]
      %v604 = vld [vmem:[#allocation7 + $0x28] sm:$0xff]
      %v605 = vld [vmem:[#allocation7 + $0x30] sm:$0xff]
      %v606 = vld [vmem:[#allocation7 + $0x38] sm:$0xff]
      %v607 = vld [vmem:[#allocation7 + $0x40] sm:$0xff]
      %v608 = vld [vmem:[#allocation7 + $0x48] sm:$0xff]
      %v609 = vld [vmem:[#allocation7 + $0x50] sm:$0xff]
      %v610 = vld [vmem:[#allocation7 + $0x58] sm:$0xff]
      %v611 = vld [vmem:[#allocation7 + $0x60] sm:$0xff]
      %v612 = vld [vmem:[#allocation7 + $0x68] sm:$0xff]
      %v613 = vld [vmem:[#allocation7 + $0x70] sm:$0xff]
      %v614 = vld [vmem:[#allocation7 + $0x78] sm:$0xff]
      %v615 = vld [vmem:[%s4] sm:$0xff]
      %v616 = vld [vmem:[%s4 + $0x8] sm:$0xff]
      %v617 = vld [vmem:[%s4 + $0x10] sm:$0xff]
      %v618 = vld [vmem:[%s4 + $0x18] sm:$0xff]
      %v619 = vld [vmem:[%s4 + $0x20] sm:$0xff]
      %v620 = vld [vmem:[%s4 + $0x28] sm:$0xff]
      %v621 = vld [vmem:[%s4 + $0x30] sm:$0xff]
      %v622 = vld [vmem:[%s4 + $0x38] sm:$0xff]
      %v623 = vld [vmem:[%s4 + $0x40] sm:$0xff]
      %v624 = vld [vmem:[%s4 + $0x48] sm:$0xff]
      %v625 = vld [vmem:[%s4 + $0x50] sm:$0xff]
      %v626 = vld [vmem:[%s4 + $0x58] sm:$0xff]
      %v627 = vld [vmem:[%s4 + $0x60] sm:$0xff]
      %v628 = vld [vmem:[%s4 + $0x68] sm:$0xff]
      %v629 = vld [vmem:[%s4 + $0x70] sm:$0xff]
      %v630 = vld [vmem:[%s4 + $0x78] sm:$0xff]
      %v631 = vld [vmem:[%s5] sm:$0xff]
      %v632 = vld [vmem:[%s5 + $0x8] sm:$0xff]
      %v633 = vld [vmem:[%s5 + $0x10] sm:$0xff]
      %v634 = vld [vmem:[%s5 + $0x18] sm:$0xff]
      %v635 = vld [vmem:[%s5 + $0x20] sm:$0xff]
      %v636 = vld [vmem:[%s5 + $0x28] sm:$0xff]
      %v637 = vld [vmem:[%s5 + $0x30] sm:$0xff]
      %v638 = vld [vmem:[%s5 + $0x38] sm:$0xff]
      %v639 = vld [vmem:[%s5 + $0x40] sm:$0xff]
      %v640 = vld [vmem:[%s5 + $0x48] sm:$0xff]
      %v641 = vld [vmem:[%s5 + $0x50] sm:$0xff]
      %v642 = vld [vmem:[%s5 + $0x58] sm:$0xff]
      %v643 = vld [vmem:[%s5 + $0x60] sm:$0xff]
      %v644 = vld [vmem:[%s5 + $0x68] sm:$0xff]
      %v645 = vld [vmem:[%s5 + $0x70] sm:$0xff]
      %v646 = vld [vmem:[%s5 + $0x78] sm:$0xff]
      %v647 = vld [vmem:[#allocation2] sm:$0xff]
      %v648 = vld [vmem:[#allocation2 + $0x8] sm:$0xff]
      %v649 = vld [vmem:[#allocation2 + $0x10] sm:$0xff]
      %v650 = vld [vmem:[#allocation2 + $0x18] sm:$0xff]
      %v651 = vld [vmem:[#allocation2 + $0x20] sm:$0xff]
      %v652 = vld [vmem:[#allocation2 + $0x28] sm:$0xff]
      %v653 = vld [vmem:[#allocation2 + $0x30] sm:$0xff]
      %v654 = vld [vmem:[#allocation2 + $0x38] sm:$0xff]
      %v655 = vld [vmem:[#allocation2 + $0x40] sm:$0xff]
      %v656 = vld [vmem:[#allocation2 + $0x48] sm:$0xff]
      %v657 = vld [vmem:[#allocation2 + $0x50] sm:$0xff]
      %v658 = vld [vmem:[#allocation2 + $0x58] sm:$0xff]
      %v659 = vld [vmem:[#allocation2 + $0x60] sm:$0xff]
      %v660 = vld [vmem:[#allocation2 + $0x68] sm:$0xff]
      %v661 = vld [vmem:[#allocation2 + $0x70] sm:$0xff]
      %v662 = vld [vmem:[#allocation2 + $0x78] sm:$0xff]
      %664 = vset.pattern.permute.xlu0 0
      %665 = vperm.xlu0 %664, %v615
      %v666 = vpop.permute.xlu0 %665
      %669 = vset.pattern.permute.xlu0 0
      %670 = vperm.xlu0 %669, %v616
      %v671 = vpop.permute.xlu0 %670
      %674 = vset.pattern.permute.xlu0 0
      %675 = vperm.xlu0 %674, %v617
      %v676 = vpop.permute.xlu0 %675
      %679 = vset.pattern.permute.xlu0 0
      %680 = vperm.xlu0 %679, %v618
      %v681 = vpop.permute.xlu0 %680
      %684 = vset.pattern.permute.xlu0 0
      %685 = vperm.xlu0 %684, %v619
      %v686 = vpop.permute.xlu0 %685
      %689 = vset.pattern.permute.xlu0 0
      %690 = vperm.xlu0 %689, %v620
      %v691 = vpop.permute.xlu0 %690
      %694 = vset.pattern.permute.xlu0 0
      %695 = vperm.xlu0 %694, %v621
      %v696 = vpop.permute.xlu0 %695
      %699 = vset.pattern.permute.xlu0 0
      %700 = vperm.xlu0 %699, %v622
      %v701 = vpop.permute.xlu0 %700
      %704 = vset.pattern.permute.xlu0 0
      %705 = vperm.xlu0 %704, %v623
      %v706 = vpop.permute.xlu0 %705
      %709 = vset.pattern.permute.xlu0 0
      %710 = vperm.xlu0 %709, %v624
      %v711 = vpop.permute.xlu0 %710
      %714 = vset.pattern.permute.xlu0 0
      %715 = vperm.xlu0 %714, %v625
      %v716 = vpop.permute.xlu0 %715
      %719 = vset.pattern.permute.xlu0 0
      %720 = vperm.xlu0 %719, %v626
      %v721 = vpop.permute.xlu0 %720
      %724 = vset.pattern.permute.xlu0 0
      %725 = vperm.xlu0 %724, %v627
      %v726 = vpop.permute.xlu0 %725
      %729 = vset.pattern.permute.xlu0 0
      %730 = vperm.xlu0 %729, %v628
      %v731 = vpop.permute.xlu0 %730
      %734 = vset.pattern.permute.xlu0 0
      %735 = vperm.xlu0 %734, %v629
      %v736 = vpop.permute.xlu0 %735
      %739 = vset.pattern.permute.xlu0 0
      %740 = vperm.xlu0 %739, %v630
      %v741 = vpop.permute.xlu0 %740
      %v743 = vmul.f32 %v666, %v599
      %v744 = vmul.f32 %v671, %v600
      %v745 = vmul.f32 %v676, %v601
      %v746 = vmul.f32 %v681, %v602
      %v747 = vmul.f32 %v686, %v603
      %v748 = vmul.f32 %v691, %v604
      %v749 = vmul.f32 %v696, %v605
      %v750 = vmul.f32 %v701, %v606
      %v751 = vmul.f32 %v706, %v607
      %v752 = vmul.f32 %v711, %v608
      %v753 = vmul.f32 %v716, %v609
      %v754 = vmul.f32 %v721, %v610
      %v755 = vmul.f32 %v726, %v611
      %v756 = vmul.f32 %v731, %v612
      %v757 = vmul.f32 %v736, %v613
      %v758 = vmul.f32 %v741, %v614
      %v759 = vsub.f32 %v647, %v743
      %v760 = vsub.f32 %v648, %v744
      %v761 = vsub.f32 %v649, %v745
      %v762 = vsub.f32 %v650, %v746
      %v763 = vsub.f32 %v651, %v747
      %v764 = vsub.f32 %v652, %v748
      %v765 = vsub.f32 %v653, %v749
      %v766 = vsub.f32 %v654, %v750
      %v767 = vsub.f32 %v655, %v751
      %v768 = vsub.f32 %v656, %v752
      %v769 = vsub.f32 %v657, %v753
      %v770 = vsub.f32 %v658, %v754
      %v771 = vsub.f32 %v659, %v755
      %v772 = vsub.f32 %v660, %v756
      %v773 = vsub.f32 %v661, %v757
      %v774 = vsub.f32 %v662, %v758
      %v775 = vld [vmem:[#allocation3] sm:$0xff]
      %v776 = vld [vmem:[#allocation3 + $0x8] sm:$0xff]
      %v777 = vld [vmem:[#allocation3 + $0x10] sm:$0xff]
      %v778 = vld [vmem:[#allocation3 + $0x18] sm:$0xff]
      %v779 = vld [vmem:[#allocation3 + $0x20] sm:$0xff]
      %v780 = vld [vmem:[#allocation3 + $0x28] sm:$0xff]
      %v781 = vld [vmem:[#allocation3 + $0x30] sm:$0xff]
      %v782 = vld [vmem:[#allocation3 + $0x38] sm:$0xff]
      %v783 = vld [vmem:[#allocation3 + $0x40] sm:$0xff]
      %v784 = vld [vmem:[#allocation3 + $0x48] sm:$0xff]
      %v785 = vld [vmem:[#allocation3 + $0x50] sm:$0xff]
      %v786 = vld [vmem:[#allocation3 + $0x58] sm:$0xff]
      %v787 = vld [vmem:[#allocation3 + $0x60] sm:$0xff]
      %v788 = vld [vmem:[#allocation3 + $0x68] sm:$0xff]
      %v789 = vld [vmem:[#allocation3 + $0x70] sm:$0xff]
      %v790 = vld [vmem:[#allocation3 + $0x78] sm:$0xff]
      %792 = vset.pattern.permute.xlu0 0
      %793 = vperm.xlu0 %792, %v631
      %v794 = vpop.permute.xlu0 %793
      %797 = vset.pattern.permute.xlu0 0
      %798 = vperm.xlu0 %797, %v632
      %v799 = vpop.permute.xlu0 %798
      %802 = vset.pattern.permute.xlu0 0
      %803 = vperm.xlu0 %802, %v633
      %v804 = vpop.permute.xlu0 %803
      %807 = vset.pattern.permute.xlu0 0
      %808 = vperm.xlu0 %807, %v634
      %v809 = vpop.permute.xlu0 %808
      %812 = vset.pattern.permute.xlu0 0
      %813 = vperm.xlu0 %812, %v635
      %v814 = vpop.permute.xlu0 %813
      %817 = vset.pattern.permute.xlu0 0
      %818 = vperm.xlu0 %817, %v636
      %v819 = vpop.permute.xlu0 %818
      %822 = vset.pattern.permute.xlu0 0
      %823 = vperm.xlu0 %822, %v637
      %v824 = vpop.permute.xlu0 %823
      %827 = vset.pattern.permute.xlu0 0
      %828 = vperm.xlu0 %827, %v638
      %v829 = vpop.permute.xlu0 %828
      %832 = vset.pattern.permute.xlu0 0
      %833 = vperm.xlu0 %832, %v639
      %v834 = vpop.permute.xlu0 %833
      %837 = vset.pattern.permute.xlu0 0
      %838 = vperm.xlu0 %837, %v640
      %v839 = vpop.permute.xlu0 %838
      %842 = vset.pattern.permute.xlu0 0
      %843 = vperm.xlu0 %842, %v641
      %v844 = vpop.permute.xlu0 %843
      %847 = vset.pattern.permute.xlu0 0
      %848 = vperm.xlu0 %847, %v642
      %v849 = vpop.permute.xlu0 %848
      %852 = vset.pattern.permute.xlu0 0
      %853 = vperm.xlu0 %852, %v643
      %v854 = vpop.permute.xlu0 %853
      %857 = vset.pattern.permute.xlu0 0
      %858 = vperm.xlu0 %857, %v644
      %v859 = vpop.permute.xlu0 %858
      %862 = vset.pattern.permute.xlu0 0
      %863 = vperm.xlu0 %862, %v645
      %v864 = vpop.permute.xlu0 %863
      %867 = vset.pattern.permute.xlu0 0
      %868 = vperm.xlu0 %867, %v646
      %v869 = vpop.permute.xlu0 %868
      %v871 = vmul.f32 %v794, %v599
      %v872 = vmul.f32 %v799, %v600
      %v873 = vmul.f32 %v804, %v601
      %v874 = vmul.f32 %v809, %v602
      %v875 = vmul.f32 %v814, %v603
      %v876 = vmul.f32 %v819, %v604
      %v877 = vmul.f32 %v824, %v605
      %v878 = vmul.f32 %v829, %v606
      %v879 = vmul.f32 %v834, %v607
      %v880 = vmul.f32 %v839, %v608
      %v881 = vmul.f32 %v844, %v609
      %v882 = vmul.f32 %v849, %v610
      %v883 = vmul.f32 %v854, %v611
      %v884 = vmul.f32 %v859, %v612
      %v885 = vmul.f32 %v864, %v613
      %v886 = vmul.f32 %v869, %v614
      %v887 = vsub.f32 %v775, %v871
      %v888 = vsub.f32 %v776, %v872
      %v889 = vsub.f32 %v777, %v873
      %v890 = vsub.f32 %v778, %v874
      %v891 = vsub.f32 %v779, %v875
      %v892 = vsub.f32 %v780, %v876
      %v893 = vsub.f32 %v781, %v877
      %v894 = vsub.f32 %v782, %v878
      %v895 = vsub.f32 %v783, %v879
      %v896 = vsub.f32 %v784, %v880
      %v897 = vsub.f32 %v785, %v881
      %v898 = vsub.f32 %v786, %v882
      %v899 = vsub.f32 %v787, %v883
      %v900 = vsub.f32 %v788, %v884
      %v901 = vsub.f32 %v789, %v885
      %v902 = vsub.f32 %v790, %v886
      %v903 = vld [vmem:[#allocation9] sm:$0xff]
      %v904 = vld [vmem:[#allocation9 + $0x18] sm:$0xff]
      %v905 = vld [vmem:[#allocation9 + $0x30] sm:$0xff]
      %v906 = vld [vmem:[#allocation9 + $0x48] sm:$0xff]
      %v907 = vld [vmem:[#allocation9 + $0x60] sm:$0xff]
      %v908 = vld [vmem:[#allocation9 + $0x78] sm:$0xff]
      %v909 = vld [vmem:[#allocation9 + $0x90] sm:$0xff]
      %v910 = vld [vmem:[#allocation9 + $0xa8] sm:$0xff]
      %v911 = vld [vmem:[#allocation9 + $0xc0] sm:$0xff]
      %v912 = vld [vmem:[#allocation9 + $0xd8] sm:$0xff]
      %v913 = vld [vmem:[#allocation9 + $0xf0] sm:$0xff]
      %v914 = vld [vmem:[#allocation9 + $0x108] sm:$0xff]
      %v915 = vld [vmem:[#allocation9 + $0x120] sm:$0xff]
      %v916 = vld [vmem:[#allocation9 + $0x138] sm:$0xff]
      %v917 = vld [vmem:[#allocation9 + $0x150] sm:$0xff]
      %v918 = vld [vmem:[#allocation9 + $0x168] sm:$0xff]
      %v919 = vld [vmem:[%s9] sm:$0x1]
      %v921 = vlaneseq
      %v922 = vshrl.u32 %v921, 7
      %v923 = vsub.s32 0, %v922
      %v924 = vrot.slane %v919, %v923
      %926 = vmatprep.subr.mxu0 0.0
      %927 = vmatpush1.msra.mxu0 %v918
      %928 = vmatprep.subr.mxu0 0.0
      %929 = vmatpush1.msra.mxu0 %v917
      %930 = vmatprep.subr.mxu0 0.0
      %931 = vmatpush1.msra.mxu0 %v916
      %932 = vmatprep.subr.mxu0 0.0
      %933 = vmatpush1.msra.mxu0 %v915
      %934 = vmatprep.subr.mxu0 0.0
      %935 = vmatpush1.msra.mxu0 %v914
      %936 = vmatprep.subr.mxu0 0.0
      %937 = vmatpush1.msra.mxu0 %v913
      %938 = vmatprep.subr.mxu0 0.0
      %939 = vmatpush1.msra.mxu0 %v912
      %940 = vmatprep.subr.mxu0 0.0
      %941 = vmatpush1.msra.mxu0 %v911
      %942 = vmatprep.subr.mxu0 0.0
      %943 = vmatpush1.msra.mxu0 %v910
      %944 = vmatprep.subr.mxu0 0.0
      %945 = vmatpush1.msra.mxu0 %v909
      %946 = vmatprep.subr.mxu0 0.0
      %947 = vmatpush1.msra.mxu0 %v908
      %948 = vmatprep.subr.mxu0 0.0
      %949 = vmatpush1.msra.mxu0 %v907
      %950 = vmatprep.subr.mxu0 0.0
      %951 = vmatpush1.msra.mxu0 %v906
      %952 = vmatprep.subr.mxu0 0.0
      %953 = vmatpush1.msra.mxu0 %v905
      %954 = vmatprep.subr.mxu0 0.0
      %955 = vmatpush1.msra.mxu0 %v904
      %956 = vmatprep.subr.mxu0 0.0
      %957 = vmatpush1.msra.mxu0 %v903
      %958 = vmatprep.subr.mxu0 0.0
      %959 = vmatpush2.msra.mxu0 0.0
      %960 = vmatprep.subr.mxu0 0.0
      %961 = vmatpush2.msra.mxu0 0.0
      %962 = vmatprep.subr.mxu0 0.0
      %963 = vmatpush2.msra.mxu0 0.0
      %964 = vmatprep.subr.mxu0 0.0
      %965 = vmatpush2.msra.mxu0 0.0
      %966 = vmatprep.subr.mxu0 0.0
      %967 = vmatpush2.msra.mxu0 0.0
      %968 = vmatprep.subr.mxu0 0.0
      %969 = vmatpush2.msra.mxu0 0.0
      %970 = vmatprep.subr.mxu0 0.0
      %971 = vmatpush2.msra.mxu0 0.0
      %972 = vmatprep.subr.mxu0 0.0
      %973 = vmatpush2.msra.mxu0 0.0
      %974 = vmatprep.subr.mxu0 0.0
      %975 = vmatpush2.msra.mxu0 0.0
      %976 = vmatprep.subr.mxu0 0.0
      %977 = vmatpush2.msra.mxu0 0.0
      %978 = vmatprep.subr.mxu0 0.0
      %979 = vmatpush2.msra.mxu0 0.0
      %980 = vmatprep.subr.mxu0 0.0
      %981 = vmatpush2.msra.mxu0 0.0
      %982 = vmatprep.subr.mxu0 0.0
      %983 = vmatpush2.msra.mxu0 0.0
      %984 = vmatprep.subr.mxu0 0.0
      %985 = vmatpush2.msra.mxu0 0.0
      %986 = vmatprep.subr.mxu0 0.0
      %987 = vmatpush2.msra.mxu0 0.0
      %988 = vmatprep.subr.mxu0 0.0
      %989 = vmatpush2.msra.mxu0 0.0
      %990 = vmatprep.mubr.f32.mxu0 0.0
      %991 = vmatmul.mubr.f32.gmra.mxu0 %v759
      %v992 = vpop.f32.mrf.mxu0
      %v993 = vadd.f32 %v924, %v992
      %v994 = vpop.f32.mrf.mxu0
      %995 = vmatprep.mubr.f32.mxu0 0.0
      %996 = vmatmul.mubr.f32.gmra.mxu0 %v760
      %v997 = vpop.f32.mrf.mxu0
      %v998 = vadd.f32 %v924, %v997
      %v999 = vpop.f32.mrf.mxu0
      %1000 = vmatprep.mubr.f32.mxu0 0.0
      %1001 = vmatmul.mubr.f32.gmra.mxu0 %v761
      %v1002 = vpop.f32.mrf.mxu0
      %v1003 = vadd.f32 %v924, %v1002
      %v1004 = vpop.f32.mrf.mxu0
      %1005 = vmatprep.mubr.f32.mxu0 0.0
      %1006 = vmatmul.mubr.f32.gmra.mxu0 %v762
      %v1007 = vpop.f32.mrf.mxu0
      %v1008 = vadd.f32 %v924, %v1007
      %v1009 = vpop.f32.mrf.mxu0
      %1010 = vmatprep.mubr.f32.mxu0 0.0
      %1011 = vmatmul.mubr.f32.gmra.mxu0 %v763
      %v1012 = vpop.f32.mrf.mxu0
      %v1013 = vadd.f32 %v924, %v1012
      %v1014 = vpop.f32.mrf.mxu0
      %1015 = vmatprep.mubr.f32.mxu0 0.0
      %1016 = vmatmul.mubr.f32.gmra.mxu0 %v764
      %v1017 = vpop.f32.mrf.mxu0
      %v1018 = vadd.f32 %v924, %v1017
      %v1019 = vpop.f32.mrf.mxu0
      %1020 = vmatprep.mubr.f32.mxu0 0.0
      %1021 = vmatmul.mubr.f32.gmra.mxu0 %v765
      %v1022 = vpop.f32.mrf.mxu0
      %v1023 = vadd.f32 %v924, %v1022
      %v1024 = vpop.f32.mrf.mxu0
      %1025 = vmatprep.mubr.f32.mxu0 0.0
      %1026 = vmatmul.mubr.f32.gmra.mxu0 %v766
      %v1027 = vpop.f32.mrf.mxu0
      %v1028 = vadd.f32 %v924, %v1027
      %v1029 = vpop.f32.mrf.mxu0
      %1030 = vmatprep.mubr.f32.mxu0 0.0
      %1031 = vmatmul.mubr.f32.gmra.mxu0 %v767
      %v1032 = vpop.f32.mrf.mxu0
      %v1033 = vadd.f32 %v924, %v1032
      %v1034 = vpop.f32.mrf.mxu0
      %1035 = vmatprep.mubr.f32.mxu0 0.0
      %1036 = vmatmul.mubr.f32.gmra.mxu0 %v768
      %v1037 = vpop.f32.mrf.mxu0
      %v1038 = vadd.f32 %v924, %v1037
      %v1039 = vpop.f32.mrf.mxu0
      %1040 = vmatprep.mubr.f32.mxu0 0.0
      %1041 = vmatmul.mubr.f32.gmra.mxu0 %v769
      %v1042 = vpop.f32.mrf.mxu0
      %v1043 = vadd.f32 %v924, %v1042
      %v1044 = vpop.f32.mrf.mxu0
      %1045 = vmatprep.mubr.f32.mxu0 0.0
      %1046 = vmatmul.mubr.f32.gmra.mxu0 %v770
      %v1047 = vpop.f32.mrf.mxu0
      %v1048 = vadd.f32 %v924, %v1047
      %v1049 = vpop.f32.mrf.mxu0
      %1050 = vmatprep.mubr.f32.mxu0 0.0
      %1051 = vmatmul.mubr.f32.gmra.mxu0 %v771
      %v1052 = vpop.f32.mrf.mxu0
      %v1053 = vadd.f32 %v924, %v1052
      %v1054 = vpop.f32.mrf.mxu0
      %1055 = vmatprep.mubr.f32.mxu0 0.0
      %1056 = vmatmul.mubr.f32.gmra.mxu0 %v772
      %v1057 = vpop.f32.mrf.mxu0
      %v1058 = vadd.f32 %v924, %v1057
      %v1059 = vpop.f32.mrf.mxu0
      %1060 = vmatprep.mubr.f32.mxu0 0.0
      %1061 = vmatmul.mubr.f32.gmra.mxu0 %v773
      %v1062 = vpop.f32.mrf.mxu0
      %v1063 = vadd.f32 %v924, %v1062
      %v1064 = vpop.f32.mrf.mxu0
      %1065 = vmatprep.mubr.f32.mxu0 0.0
      %1066 = vmatmul.mubr.f32.gmra.mxu0 %v774
      %v1067 = vpop.f32.mrf.mxu0
      %v1068 = vadd.f32 %v924, %v1067
      %v1069 = vpop.f32.mrf.mxu0
      %1070 = vdwg.mxu0
      %v1071 = vld [vmem:[#allocation12] sm:$0xff]
      %v1072 = vld [vmem:[#allocation12 + $0x30] sm:$0xff]
      %v1073 = vld [vmem:[#allocation12 + $0x60] sm:$0xff]
      %v1074 = vld [vmem:[#allocation12 + $0x90] sm:$0xff]
      %v1075 = vld [vmem:[#allocation12 + $0xc0] sm:$0xff]
      %v1076 = vld [vmem:[#allocation12 + $0xf0] sm:$0xff]
      %v1077 = vld [vmem:[#allocation12 + $0x120] sm:$0xff]
      %v1078 = vld [vmem:[#allocation12 + $0x150] sm:$0xff]
      %v1079 = vld [vmem:[#allocation12 + $0x180] sm:$0xff]
      %v1080 = vld [vmem:[#allocation12 + $0x1b0] sm:$0xff]
      %v1081 = vld [vmem:[#allocation12 + $0x1e0] sm:$0xff]
      %v1082 = vld [vmem:[#allocation12 + $0x210] sm:$0xff]
      %v1083 = vld [vmem:[#allocation12 + $0x240] sm:$0xff]
      %v1084 = vld [vmem:[#allocation12 + $0x270] sm:$0xff]
      %v1085 = vld [vmem:[#allocation12 + $0x2a0] sm:$0xff]
      %v1086 = vld [vmem:[#allocation12 + $0x2d0] sm:$0xff]
      %v1087 = vld [vmem:[%s11] sm:$0x1]
      %v1089 = vlaneseq
      %v1090 = vshrl.u32 %v1089, 7
      %v1091 = vsub.s32 0, %v1090
      %v1092 = vrot.slane %v1087, %v1091
      %1094 = vmatprep.subr.mxu0 0.0
      %1095 = vmatpush1.msra.mxu0 %v1086
      %1096 = vmatprep.subr.mxu0 0.0
      %1097 = vmatpush1.msra.mxu0 %v1085
      %1098 = vmatprep.subr.mxu0 0.0
      %1099 = vmatpush1.msra.mxu0 %v1084
      %1100 = vmatprep.subr.mxu0 0.0
      %1101 = vmatpush1.msra.mxu0 %v1083
      %1102 = vmatprep.subr.mxu0 0.0
      %1103 = vmatpush1.msra.mxu0 %v1082
      %1104 = vmatprep.subr.mxu0 0.0
      %1105 = vmatpush1.msra.mxu0 %v1081
      %1106 = vmatprep.subr.mxu0 0.0
      %1107 = vmatpush1.msra.mxu0 %v1080
      %1108 = vmatprep.subr.mxu0 0.0
      %1109 = vmatpush1.msra.mxu0 %v1079
      %1110 = vmatprep.subr.mxu0 0.0
      %1111 = vmatpush1.msra.mxu0 %v1078
      %1112 = vmatprep.subr.mxu0 0.0
      %1113 = vmatpush1.msra.mxu0 %v1077
      %1114 = vmatprep.subr.mxu0 0.0
      %1115 = vmatpush1.msra.mxu0 %v1076
      %1116 = vmatprep.subr.mxu0 0.0
      %1117 = vmatpush1.msra.mxu0 %v1075
      %1118 = vmatprep.subr.mxu0 0.0
      %1119 = vmatpush1.msra.mxu0 %v1074
      %1120 = vmatprep.subr.mxu0 0.0
      %1121 = vmatpush1.msra.mxu0 %v1073
      %1122 = vmatprep.subr.mxu0 0.0
      %1123 = vmatpush1.msra.mxu0 %v1072
      %1124 = vmatprep.subr.mxu0 0.0
      %1125 = vmatpush1.msra.mxu0 %v1071
      %1126 = vmatprep.subr.mxu0 0.0
      %1127 = vmatpush2.msra.mxu0 0.0
      %1128 = vmatprep.subr.mxu0 0.0
      %1129 = vmatpush2.msra.mxu0 0.0
      %1130 = vmatprep.subr.mxu0 0.0
      %1131 = vmatpush2.msra.mxu0 0.0
      %1132 = vmatprep.subr.mxu0 0.0
      %1133 = vmatpush2.msra.mxu0 0.0
      %1134 = vmatprep.subr.mxu0 0.0
      %1135 = vmatpush2.msra.mxu0 0.0
      %1136 = vmatprep.subr.mxu0 0.0
      %1137 = vmatpush2.msra.mxu0 0.0
      %1138 = vmatprep.subr.mxu0 0.0
      %1139 = vmatpush2.msra.mxu0 0.0
      %1140 = vmatprep.subr.mxu0 0.0
      %1141 = vmatpush2.msra.mxu0 0.0
      %1142 = vmatprep.subr.mxu0 0.0
      %1143 = vmatpush2.msra.mxu0 0.0
      %1144 = vmatprep.subr.mxu0 0.0
      %1145 = vmatpush2.msra.mxu0 0.0
      %1146 = vmatprep.subr.mxu0 0.0
      %1147 = vmatpush2.msra.mxu0 0.0
      %1148 = vmatprep.subr.mxu0 0.0
      %1149 = vmatpush2.msra.mxu0 0.0
      %1150 = vmatprep.subr.mxu0 0.0
      %1151 = vmatpush2.msra.mxu0 0.0
      %1152 = vmatprep.subr.mxu0 0.0
      %1153 = vmatpush2.msra.mxu0 0.0
      %1154 = vmatprep.subr.mxu0 0.0
      %1155 = vmatpush2.msra.mxu0 0.0
      %1156 = vmatprep.subr.mxu0 0.0
      %1157 = vmatpush2.msra.mxu0 0.0
      %1158 = vmatprep.mubr.f32.mxu0 0.0
      %1159 = vmatmul.mubr.f32.gmra.mxu0 %v599
      %v1160 = vpop.f32.mrf.mxu0
      %v1161 = vadd.f32 %v1092, %v1160
      %v1162 = vpop.f32.mrf.mxu0
      %1163 = vmatprep.mubr.f32.mxu0 0.0
      %1164 = vmatmul.mubr.f32.gmra.mxu0 %v600
      %v1165 = vpop.f32.mrf.mxu0
      %v1166 = vadd.f32 %v1092, %v1165
      %v1167 = vpop.f32.mrf.mxu0
      %1168 = vmatprep.mubr.f32.mxu0 0.0
      %1169 = vmatmul.mubr.f32.gmra.mxu0 %v601
      %v1170 = vpop.f32.mrf.mxu0
      %v1171 = vadd.f32 %v1092, %v1170
      %v1172 = vpop.f32.mrf.mxu0
      %1173 = vmatprep.mubr.f32.mxu0 0.0
      %1174 = vmatmul.mubr.f32.gmra.mxu0 %v602
      %v1175 = vpop.f32.mrf.mxu0
      %v1176 = vadd.f32 %v1092, %v1175
      %v1177 = vpop.f32.mrf.mxu0
      %1178 = vmatprep.mubr.f32.mxu0 0.0
      %1179 = vmatmul.mubr.f32.gmra.mxu0 %v603
      %v1180 = vpop.f32.mrf.mxu0
      %v1181 = vadd.f32 %v1092, %v1180
      %v1182 = vpop.f32.mrf.mxu0
      %1183 = vmatprep.mubr.f32.mxu0 0.0
      %1184 = vmatmul.mubr.f32.gmra.mxu0 %v604
      %v1185 = vpop.f32.mrf.mxu0
      %v1186 = vadd.f32 %v1092, %v1185
      %v1187 = vpop.f32.mrf.mxu0
      %1188 = vmatprep.mubr.f32.mxu0 0.0
      %1189 = vmatmul.mubr.f32.gmra.mxu0 %v605
      %v1190 = vpop.f32.mrf.mxu0
      %v1191 = vadd.f32 %v1092, %v1190
      %v1192 = vpop.f32.mrf.mxu0
      %1193 = vmatprep.mubr.f32.mxu0 0.0
      %1194 = vmatmul.mubr.f32.gmra.mxu0 %v606
      %v1195 = vpop.f32.mrf.mxu0
      %v1196 = vadd.f32 %v1092, %v1195
      %v1197 = vpop.f32.mrf.mxu0
      %1198 = vmatprep.mubr.f32.mxu0 0.0
      %1199 = vmatmul.mubr.f32.gmra.mxu0 %v607
      %v1200 = vpop.f32.mrf.mxu0
      %v1201 = vadd.f32 %v1092, %v1200
      %v1202 = vpop.f32.mrf.mxu0
      %1203 = vmatprep.mubr.f32.mxu0 0.0
      %1204 = vmatmul.mubr.f32.gmra.mxu0 %v608
      %v1205 = vpop.f32.mrf.mxu0
      %v1206 = vadd.f32 %v1092, %v1205
      %v1207 = vpop.f32.mrf.mxu0
      %1208 = vmatprep.mubr.f32.mxu0 0.0
      %1209 = vmatmul.mubr.f32.gmra.mxu0 %v609
      %v1210 = vpop.f32.mrf.mxu0
      %v1211 = vadd.f32 %v1092, %v1210
      %v1212 = vpop.f32.mrf.mxu0
      %1213 = vmatprep.mubr.f32.mxu0 0.0
      %1214 = vmatmul.mubr.f32.gmra.mxu0 %v610
      %v1215 = vpop.f32.mrf.mxu0
      %v1216 = vadd.f32 %v1092, %v1215
      %v1217 = vpop.f32.mrf.mxu0
      %1218 = vmatprep.mubr.f32.mxu0 0.0
      %1219 = vmatmul.mubr.f32.gmra.mxu0 %v611
      %v1220 = vpop.f32.mrf.mxu0
      %v1221 = vadd.f32 %v1092, %v1220
      %v1222 = vpop.f32.mrf.mxu0
      %1223 = vmatprep.mubr.f32.mxu0 0.0
      %1224 = vmatmul.mubr.f32.gmra.mxu0 %v612
      %v1225 = vpop.f32.mrf.mxu0
      %v1226 = vadd.f32 %v1092, %v1225
      %v1227 = vpop.f32.mrf.mxu0
      %1228 = vmatprep.mubr.f32.mxu0 0.0
      %1229 = vmatmul.mubr.f32.gmra.mxu0 %v613
      %v1230 = vpop.f32.mrf.mxu0
      %v1231 = vadd.f32 %v1092, %v1230
      %v1232 = vpop.f32.mrf.mxu0
      %1233 = vmatprep.mubr.f32.mxu0 0.0
      %1234 = vmatmul.mubr.f32.gmra.mxu0 %v614
      %v1235 = vpop.f32.mrf.mxu0
      %v1236 = vadd.f32 %v1092, %v1235
      %v1237 = vpop.f32.mrf.mxu0
      %1238 = vdwg.mxu0
      %v1239 = vadd.f32 %v993, %v1161
      %v1240 = vadd.f32 %v998, %v1166
      %v1241 = vadd.f32 %v1003, %v1171
      %v1242 = vadd.f32 %v1008, %v1176
      %v1243 = vadd.f32 %v1013, %v1181
      %v1244 = vadd.f32 %v1018, %v1186
      %v1245 = vadd.f32 %v1023, %v1191
      %v1246 = vadd.f32 %v1028, %v1196
      %v1247 = vadd.f32 %v1033, %v1201
      %v1248 = vadd.f32 %v1038, %v1206
      %v1249 = vadd.f32 %v1043, %v1211
      %v1250 = vadd.f32 %v1048, %v1216
      %v1251 = vadd.f32 %v1053, %v1221
      %v1252 = vadd.f32 %v1058, %v1226
      %v1253 = vadd.f32 %v1063, %v1231
      %v1254 = vadd.f32 %v1068, %v1236
      %v1255 = vxor.u32 %v1239, 2147483648
      %v1256 = vxor.u32 %v1240, 2147483648
      %v1257 = vxor.u32 %v1241, 2147483648
      %v1258 = vxor.u32 %v1242, 2147483648
      %v1259 = vxor.u32 %v1243, 2147483648
      %v1260 = vxor.u32 %v1244, 2147483648
      %v1261 = vxor.u32 %v1245, 2147483648
      %v1262 = vxor.u32 %v1246, 2147483648
      %v1263 = vxor.u32 %v1247, 2147483648
      %v1264 = vxor.u32 %v1248, 2147483648
      %v1265 = vxor.u32 %v1249, 2147483648
      %v1266 = vxor.u32 %v1250, 2147483648
      %v1267 = vxor.u32 %v1251, 2147483648
      %v1268 = vxor.u32 %v1252, 2147483648
      %v1269 = vxor.u32 %v1253, 2147483648
      %v1270 = vxor.u32 %v1254, 2147483648
      %v1271 = vmul.f32 %v1255, 1.442695
      %v1272 = vpow.pop %v1271
      %v1273 = vmul.f32 %v1256, 1.442695
      %v1274 = vpow.pop %v1273
      %v1275 = vmul.f32 %v1257, 1.442695
      %v1276 = vpow.pop %v1275
      %v1277 = vmul.f32 %v1258, 1.442695
      %v1278 = vpow.pop %v1277
      %v1279 = vmul.f32 %v1259, 1.442695
      %v1280 = vpow.pop %v1279
      %v1281 = vmul.f32 %v1260, 1.442695
      %v1282 = vpow.pop %v1281
      %v1283 = vmul.f32 %v1261, 1.442695
      %v1284 = vpow.pop %v1283
      %v1285 = vmul.f32 %v1262, 1.442695
      %v1286 = vpow.pop %v1285
      %v1287 = vmul.f32 %v1263, 1.442695
      %v1288 = vpow.pop %v1287
      %v1289 = vmul.f32 %v1264, 1.442695
      %v1290 = vpow.pop %v1289
      %v1291 = vmul.f32 %v1265, 1.442695
      %v1292 = vpow.pop %v1291
      %v1293 = vmul.f32 %v1266, 1.442695
      %v1294 = vpow.pop %v1293
      %v1295 = vmul.f32 %v1267, 1.442695
      %v1296 = vpow.pop %v1295
      %v1297 = vmul.f32 %v1268, 1.442695
      %v1298 = vpow.pop %v1297
      %v1299 = vmul.f32 %v1269, 1.442695
      %v1300 = vpow.pop %v1299
      %v1301 = vmul.f32 %v1270, 1.442695
      %v1302 = vpow.pop %v1301
      %v1303 = vadd.f32 %v1272, 1.0
      %v1304 = vadd.f32 %v1274, 1.0
      %v1305 = vadd.f32 %v1276, 1.0
      %v1306 = vadd.f32 %v1278, 1.0
      %v1307 = vadd.f32 %v1280, 1.0
      %v1308 = vadd.f32 %v1282, 1.0
      %v1309 = vadd.f32 %v1284, 1.0
      %v1310 = vadd.f32 %v1286, 1.0
      %v1311 = vadd.f32 %v1288, 1.0
      %v1312 = vadd.f32 %v1290, 1.0
      %v1313 = vadd.f32 %v1292, 1.0
      %v1314 = vadd.f32 %v1294, 1.0
      %v1315 = vadd.f32 %v1296, 1.0
      %v1316 = vadd.f32 %v1298, 1.0
      %v1317 = vadd.f32 %v1300, 1.0
      %v1318 = vadd.f32 %v1302, 1.0
      %v1319 = vrcp.pop %v1303
      %v1320 = vmul.f32 1.0, %v1319
      %v1321 = vrcp.pop %v1304
      %v1322 = vmul.f32 1.0, %v1321
      %v1323 = vrcp.pop %v1305
      %v1324 = vmul.f32 1.0, %v1323
      %v1325 = vrcp.pop %v1306
      %v1326 = vmul.f32 1.0, %v1325
      %v1327 = vrcp.pop %v1307
      %v1328 = vmul.f32 1.0, %v1327
      %v1329 = vrcp.pop %v1308
      %v1330 = vmul.f32 1.0, %v1329
      %v1331 = vrcp.pop %v1309
      %v1332 = vmul.f32 1.0, %v1331
      %v1333 = vrcp.pop %v1310
      %v1334 = vmul.f32 1.0, %v1333
      %v1335 = vrcp.pop %v1311
      %v1336 = vmul.f32 1.0, %v1335
      %v1337 = vrcp.pop %v1312
      %v1338 = vmul.f32 1.0, %v1337
      %v1339 = vrcp.pop %v1313
      %v1340 = vmul.f32 1.0, %v1339
      %v1341 = vrcp.pop %v1314
      %v1342 = vmul.f32 1.0, %v1341
      %v1343 = vrcp.pop %v1315
      %v1344 = vmul.f32 1.0, %v1343
      %v1345 = vrcp.pop %v1316
      %v1346 = vmul.f32 1.0, %v1345
      %v1347 = vrcp.pop %v1317
      %v1348 = vmul.f32 1.0, %v1347
      %v1349 = vrcp.pop %v1318
      %v1350 = vmul.f32 1.0, %v1349
      %v1351 = vld [vmem:[#allocation9 + $0x8] sm:$0xff]
      %v1352 = vld [vmem:[#allocation9 + $0x20] sm:$0xff]
      %v1353 = vld [vmem:[#allocation9 + $0x38] sm:$0xff]
      %v1354 = vld [vmem:[#allocation9 + $0x50] sm:$0xff]
      %v1355 = vld [vmem:[#allocation9 + $0x68] sm:$0xff]
      %v1356 = vld [vmem:[#allocation9 + $0x80] sm:$0xff]
      %v1357 = vld [vmem:[#allocation9 + $0x98] sm:$0xff]
      %v1358 = vld [vmem:[#allocation9 + $0xb0] sm:$0xff]
      %v1359 = vld [vmem:[#allocation9 + $0xc8] sm:$0xff]
      %v1360 = vld [vmem:[#allocation9 + $0xe0] sm:$0xff]
      %v1361 = vld [vmem:[#allocation9 + $0xf8] sm:$0xff]
      %v1362 = vld [vmem:[#allocation9 + $0x110] sm:$0xff]
      %v1363 = vld [vmem:[#allocation9 + $0x128] sm:$0xff]
      %v1364 = vld [vmem:[#allocation9 + $0x140] sm:$0xff]
      %v1365 = vld [vmem:[#allocation9 + $0x158] sm:$0xff]
      %v1366 = vld [vmem:[#allocation9 + $0x170] sm:$0xff]
      %v1367 = vld [vmem:[%s9 + $0x1] sm:$0x1]
      %v1369 = vlaneseq
      %v1370 = vshrl.u32 %v1369, 7
      %v1371 = vsub.s32 0, %v1370
      %v1372 = vrot.slane %v1367, %v1371
      %1374 = vmatprep.subr.mxu0 0.0
      %1375 = vmatpush1.msra.mxu0 %v1366
      %1376 = vmatprep.subr.mxu0 0.0
      %1377 = vmatpush1.msra.mxu0 %v1365
      %1378 = vmatprep.subr.mxu0 0.0
      %1379 = vmatpush1.msra.mxu0 %v1364
      %1380 = vmatprep.subr.mxu0 0.0
      %1381 = vmatpush1.msra.mxu0 %v1363
      %1382 = vmatprep.subr.mxu0 0.0
      %1383 = vmatpush1.msra.mxu0 %v1362
      %1384 = vmatprep.subr.mxu0 0.0
      %1385 = vmatpush1.msra.mxu0 %v1361
      %1386 = vmatprep.subr.mxu0 0.0
      %1387 = vmatpush1.msra.mxu0 %v1360
      %1388 = vmatprep.subr.mxu0 0.0
      %1389 = vmatpush1.msra.mxu0 %v1359
      %1390 = vmatprep.subr.mxu0 0.0
      %1391 = vmatpush1.msra.mxu0 %v1358
      %1392 = vmatprep.subr.mxu0 0.0
      %1393 = vmatpush1.msra.mxu0 %v1357
      %1394 = vmatprep.subr.mxu0 0.0
      %1395 = vmatpush1.msra.mxu0 %v1356
      %1396 = vmatprep.subr.mxu0 0.0
      %1397 = vmatpush1.msra.mxu0 %v1355
      %1398 = vmatprep.subr.mxu0 0.0
      %1399 = vmatpush1.msra.mxu0 %v1354
      %1400 = vmatprep.subr.mxu0 0.0
      %1401 = vmatpush1.msra.mxu0 %v1353
      %1402 = vmatprep.subr.mxu0 0.0
      %1403 = vmatpush1.msra.mxu0 %v1352
      %1404 = vmatprep.subr.mxu0 0.0
      %1405 = vmatpush1.msra.mxu0 %v1351
      %1406 = vmatprep.subr.mxu0 0.0
      %1407 = vmatpush2.msra.mxu0 0.0
      %1408 = vmatprep.subr.mxu0 0.0
      %1409 = vmatpush2.msra.mxu0 0.0
      %1410 = vmatprep.subr.mxu0 0.0
      %1411 = vmatpush2.msra.mxu0 0.0
      %1412 = vmatprep.subr.mxu0 0.0
      %1413 = vmatpush2.msra.mxu0 0.0
      %1414 = vmatprep.subr.mxu0 0.0
      %1415 = vmatpush2.msra.mxu0 0.0
      %1416 = vmatprep.subr.mxu0 0.0
      %1417 = vmatpush2.msra.mxu0 0.0
      %1418 = vmatprep.subr.mxu0 0.0
      %1419 = vmatpush2.msra.mxu0 0.0
      %1420 = vmatprep.subr.mxu0 0.0
      %1421 = vmatpush2.msra.mxu0 0.0
      %1422 = vmatprep.subr.mxu0 0.0
      %1423 = vmatpush2.msra.mxu0 0.0
      %1424 = vmatprep.subr.mxu0 0.0
      %1425 = vmatpush2.msra.mxu0 0.0
      %1426 = vmatprep.subr.mxu0 0.0
      %1427 = vmatpush2.msra.mxu0 0.0
      %1428 = vmatprep.subr.mxu0 0.0
      %1429 = vmatpush2.msra.mxu0 0.0
      %1430 = vmatprep.subr.mxu0 0.0
      %1431 = vmatpush2.msra.mxu0 0.0
      %1432 = vmatprep.subr.mxu0 0.0
      %1433 = vmatpush2.msra.mxu0 0.0
      %1434 = vmatprep.subr.mxu0 0.0
      %1435 = vmatpush2.msra.mxu0 0.0
      %1436 = vmatprep.subr.mxu0 0.0
      %1437 = vmatpush2.msra.mxu0 0.0
      %1438 = vmatprep.mubr.f32.mxu0 0.0
      %1439 = vmatmul.mubr.f32.gmra.mxu0 %v759
      %v1440 = vpop.f32.mrf.mxu0
      %v1441 = vadd.f32 %v1372, %v1440
      %v1442 = vpop.f32.mrf.mxu0
      %1443 = vmatprep.mubr.f32.mxu0 0.0
      %1444 = vmatmul.mubr.f32.gmra.mxu0 %v760
      %v1445 = vpop.f32.mrf.mxu0
      %v1446 = vadd.f32 %v1372, %v1445
      %v1447 = vpop.f32.mrf.mxu0
      %1448 = vmatprep.mubr.f32.mxu0 0.0
      %1449 = vmatmul.mubr.f32.gmra.mxu0 %v761
      %v1450 = vpop.f32.mrf.mxu0
      %v1451 = vadd.f32 %v1372, %v1450
      %v1452 = vpop.f32.mrf.mxu0
      %1453 = vmatprep.mubr.f32.mxu0 0.0
      %1454 = vmatmul.mubr.f32.gmra.mxu0 %v762
      %v1455 = vpop.f32.mrf.mxu0
      %v1456 = vadd.f32 %v1372, %v1455
      %v1457 = vpop.f32.mrf.mxu0
      %1458 = vmatprep.mubr.f32.mxu0 0.0
      %1459 = vmatmul.mubr.f32.gmra.mxu0 %v763
      %v1460 = vpop.f32.mrf.mxu0
      %v1461 = vadd.f32 %v1372, %v1460
      %v1462 = vpop.f32.mrf.mxu0
      %1463 = vmatprep.mubr.f32.mxu0 0.0
      %1464 = vmatmul.mubr.f32.gmra.mxu0 %v764
      %v1465 = vpop.f32.mrf.mxu0
      %v1466 = vadd.f32 %v1372, %v1465
      %v1467 = vpop.f32.mrf.mxu0
      %1468 = vmatprep.mubr.f32.mxu0 0.0
      %1469 = vmatmul.mubr.f32.gmra.mxu0 %v765
      %v1470 = vpop.f32.mrf.mxu0
      %v1471 = vadd.f32 %v1372, %v1470
      %v1472 = vpop.f32.mrf.mxu0
      %1473 = vmatprep.mubr.f32.mxu0 0.0
      %1474 = vmatmul.mubr.f32.gmra.mxu0 %v766
      %v1475 = vpop.f32.mrf.mxu0
      %v1476 = vadd.f32 %v1372, %v1475
      %v1477 = vpop.f32.mrf.mxu0
      %1478 = vmatprep.mubr.f32.mxu0 0.0
      %1479 = vmatmul.mubr.f32.gmra.mxu0 %v767
      %v1480 = vpop.f32.mrf.mxu0
      %v1481 = vadd.f32 %v1372, %v1480
      %v1482 = vpop.f32.mrf.mxu0
      %1483 = vmatprep.mubr.f32.mxu0 0.0
      %1484 = vmatmul.mubr.f32.gmra.mxu0 %v768
      %v1485 = vpop.f32.mrf.mxu0
      %v1486 = vadd.f32 %v1372, %v1485
      %v1487 = vpop.f32.mrf.mxu0
      %1488 = vmatprep.mubr.f32.mxu0 0.0
      %1489 = vmatmul.mubr.f32.gmra.mxu0 %v769
      %v1490 = vpop.f32.mrf.mxu0
      %v1491 = vadd.f32 %v1372, %v1490
      %v1492 = vpop.f32.mrf.mxu0
      %1493 = vmatprep.mubr.f32.mxu0 0.0
      %1494 = vmatmul.mubr.f32.gmra.mxu0 %v770
      %v1495 = vpop.f32.mrf.mxu0
      %v1496 = vadd.f32 %v1372, %v1495
      %v1497 = vpop.f32.mrf.mxu0
      %1498 = vmatprep.mubr.f32.mxu0 0.0
      %1499 = vmatmul.mubr.f32.gmra.mxu0 %v771
      %v1500 = vpop.f32.mrf.mxu0
      %v1501 = vadd.f32 %v1372, %v1500
      %v1502 = vpop.f32.mrf.mxu0
      %1503 = vmatprep.mubr.f32.mxu0 0.0
      %1504 = vmatmul.mubr.f32.gmra.mxu0 %v772
      %v1505 = vpop.f32.mrf.mxu0
      %v1506 = vadd.f32 %v1372, %v1505
      %v1507 = vpop.f32.mrf.mxu0
      %1508 = vmatprep.mubr.f32.mxu0 0.0
      %1509 = vmatmul.mubr.f32.gmra.mxu0 %v773
      %v1510 = vpop.f32.mrf.mxu0
      %v1511 = vadd.f32 %v1372, %v1510
      %v1512 = vpop.f32.mrf.mxu0
      %1513 = vmatprep.mubr.f32.mxu0 0.0
      %1514 = vmatmul.mubr.f32.gmra.mxu0 %v774
      %v1515 = vpop.f32.mrf.mxu0
      %v1516 = vadd.f32 %v1372, %v1515
      %v1517 = vpop.f32.mrf.mxu0
      %1518 = vdwg.mxu0
      %v1519 = vld [vmem:[#allocation12 + $0x8] sm:$0xff]
      %v1520 = vld [vmem:[#allocation12 + $0x38] sm:$0xff]
      %v1521 = vld [vmem:[#allocation12 + $0x68] sm:$0xff]
      %v1522 = vld [vmem:[#allocation12 + $0x98] sm:$0xff]
      %v1523 = vld [vmem:[#allocation12 + $0xc8] sm:$0xff]
      %v1524 = vld [vmem:[#allocation12 + $0xf8] sm:$0xff]
      %v1525 = vld [vmem:[#allocation12 + $0x128] sm:$0xff]
      %v1526 = vld [vmem:[#allocation12 + $0x158] sm:$0xff]
      %v1527 = vld [vmem:[#allocation12 + $0x188] sm:$0xff]
      %v1528 = vld [vmem:[#allocation12 + $0x1b8] sm:$0xff]
      %v1529 = vld [vmem:[#allocation12 + $0x1e8] sm:$0xff]
      %v1530 = vld [vmem:[#allocation12 + $0x218] sm:$0xff]
      %v1531 = vld [vmem:[#allocation12 + $0x248] sm:$0xff]
      %v1532 = vld [vmem:[#allocation12 + $0x278] sm:$0xff]
      %v1533 = vld [vmem:[#allocation12 + $0x2a8] sm:$0xff]
      %v1534 = vld [vmem:[#allocation12 + $0x2d8] sm:$0xff]
      %v1535 = vld [vmem:[%s11 + $0x1] sm:$0x1]
      %v1537 = vlaneseq
      %v1538 = vshrl.u32 %v1537, 7
      %v1539 = vsub.s32 0, %v1538
      %v1540 = vrot.slane %v1535, %v1539
      %1542 = vmatprep.subr.mxu0 0.0
      %1543 = vmatpush1.msra.mxu0 %v1534
      %1544 = vmatprep.subr.mxu0 0.0
      %1545 = vmatpush1.msra.mxu0 %v1533
      %1546 = vmatprep.subr.mxu0 0.0
      %1547 = vmatpush1.msra.mxu0 %v1532
      %1548 = vmatprep.subr.mxu0 0.0
      %1549 = vmatpush1.msra.mxu0 %v1531
      %1550 = vmatprep.subr.mxu0 0.0
      %1551 = vmatpush1.msra.mxu0 %v1530
      %1552 = vmatprep.subr.mxu0 0.0
      %1553 = vmatpush1.msra.mxu0 %v1529
      %1554 = vmatprep.subr.mxu0 0.0
      %1555 = vmatpush1.msra.mxu0 %v1528
      %1556 = vmatprep.subr.mxu0 0.0
      %1557 = vmatpush1.msra.mxu0 %v1527
      %1558 = vmatprep.subr.mxu0 0.0
      %1559 = vmatpush1.msra.mxu0 %v1526
      %1560 = vmatprep.subr.mxu0 0.0
      %1561 = vmatpush1.msra.mxu0 %v1525
      %1562 = vmatprep.subr.mxu0 0.0
      %1563 = vmatpush1.msra.mxu0 %v1524
      %1564 = vmatprep.subr.mxu0 0.0
      %1565 = vmatpush1.msra.mxu0 %v1523
      %1566 = vmatprep.subr.mxu0 0.0
      %1567 = vmatpush1.msra.mxu0 %v1522
      %1568 = vmatprep.subr.mxu0 0.0
      %1569 = vmatpush1.msra.mxu0 %v1521
      %1570 = vmatprep.subr.mxu0 0.0
      %1571 = vmatpush1.msra.mxu0 %v1520
      %1572 = vmatprep.subr.mxu0 0.0
      %1573 = vmatpush1.msra.mxu0 %v1519
      %1574 = vmatprep.subr.mxu0 0.0
      %1575 = vmatpush2.msra.mxu0 0.0
      %1576 = vmatprep.subr.mxu0 0.0
      %1577 = vmatpush2.msra.mxu0 0.0
      %1578 = vmatprep.subr.mxu0 0.0
      %1579 = vmatpush2.msra.mxu0 0.0
      %1580 = vmatprep.subr.mxu0 0.0
      %1581 = vmatpush2.msra.mxu0 0.0
      %1582 = vmatprep.subr.mxu0 0.0
      %1583 = vmatpush2.msra.mxu0 0.0
      %1584 = vmatprep.subr.mxu0 0.0
      %1585 = vmatpush2.msra.mxu0 0.0
      %1586 = vmatprep.subr.mxu0 0.0
      %1587 = vmatpush2.msra.mxu0 0.0
      %1588 = vmatprep.subr.mxu0 0.0
      %1589 = vmatpush2.msra.mxu0 0.0
      %1590 = vmatprep.subr.mxu0 0.0
      %1591 = vmatpush2.msra.mxu0 0.0
      %1592 = vmatprep.subr.mxu0 0.0
      %1593 = vmatpush2.msra.mxu0 0.0
      %1594 = vmatprep.subr.mxu0 0.0
      %1595 = vmatpush2.msra.mxu0 0.0
      %1596 = vmatprep.subr.mxu0 0.0
      %1597 = vmatpush2.msra.mxu0 0.0
      %1598 = vmatprep.subr.mxu0 0.0
      %1599 = vmatpush2.msra.mxu0 0.0
      %1600 = vmatprep.subr.mxu0 0.0
      %1601 = vmatpush2.msra.mxu0 0.0
      %1602 = vmatprep.subr.mxu0 0.0
      %1603 = vmatpush2.msra.mxu0 0.0
      %1604 = vmatprep.subr.mxu0 0.0
      %1605 = vmatpush2.msra.mxu0 0.0
      %1606 = vmatprep.mubr.f32.mxu0 0.0
      %1607 = vmatmul.mubr.f32.gmra.mxu0 %v599
      %v1608 = vpop.f32.mrf.mxu0
      %v1609 = vadd.f32 %v1540, %v1608
      %v1610 = vpop.f32.mrf.mxu0
      %1611 = vmatprep.mubr.f32.mxu0 0.0
      %1612 = vmatmul.mubr.f32.gmra.mxu0 %v600
      %v1613 = vpop.f32.mrf.mxu0
      %v1614 = vadd.f32 %v1540, %v1613
      %v1615 = vpop.f32.mrf.mxu0
      %1616 = vmatprep.mubr.f32.mxu0 0.0
      %1617 = vmatmul.mubr.f32.gmra.mxu0 %v601
      %v1618 = vpop.f32.mrf.mxu0
      %v1619 = vadd.f32 %v1540, %v1618
      %v1620 = vpop.f32.mrf.mxu0
      %1621 = vmatprep.mubr.f32.mxu0 0.0
      %1622 = vmatmul.mubr.f32.gmra.mxu0 %v602
      %v1623 = vpop.f32.mrf.mxu0
      %v1624 = vadd.f32 %v1540, %v1623
      %v1625 = vpop.f32.mrf.mxu0
      %1626 = vmatprep.mubr.f32.mxu0 0.0
      %1627 = vmatmul.mubr.f32.gmra.mxu0 %v603
      %v1628 = vpop.f32.mrf.mxu0
      %v1629 = vadd.f32 %v1540, %v1628
      %v1630 = vpop.f32.mrf.mxu0
      %1631 = vmatprep.mubr.f32.mxu0 0.0
      %1632 = vmatmul.mubr.f32.gmra.mxu0 %v604
      %v1633 = vpop.f32.mrf.mxu0
      %v1634 = vadd.f32 %v1540, %v1633
      %v1635 = vpop.f32.mrf.mxu0
      %1636 = vmatprep.mubr.f32.mxu0 0.0
      %1637 = vmatmul.mubr.f32.gmra.mxu0 %v605
      %v1638 = vpop.f32.mrf.mxu0
      %v1639 = vadd.f32 %v1540, %v1638
      %v1640 = vpop.f32.mrf.mxu0
      %1641 = vmatprep.mubr.f32.mxu0 0.0
      %1642 = vmatmul.mubr.f32.gmra.mxu0 %v606
      %v1643 = vpop.f32.mrf.mxu0
      %v1644 = vadd.f32 %v1540, %v1643
      %v1645 = vpop.f32.mrf.mxu0
      %1646 = vmatprep.mubr.f32.mxu0 0.0
      %1647 = vmatmul.mubr.f32.gmra.mxu0 %v607
      %v1648 = vpop.f32.mrf.mxu0
      %v1649 = vadd.f32 %v1540, %v1648
      %v1650 = vpop.f32.mrf.mxu0
      %1651 = vmatprep.mubr.f32.mxu0 0.0
      %1652 = vmatmul.mubr.f32.gmra.mxu0 %v608
      %v1653 = vpop.f32.mrf.mxu0
      %v1654 = vadd.f32 %v1540, %v1653
      %v1655 = vpop.f32.mrf.mxu0
      %1656 = vmatprep.mubr.f32.mxu0 0.0
      %1657 = vmatmul.mubr.f32.gmra.mxu0 %v609
      %v1658 = vpop.f32.mrf.mxu0
      %v1659 = vadd.f32 %v1540, %v1658
      %v1660 = vpop.f32.mrf.mxu0
      %1661 = vmatprep.mubr.f32.mxu0 0.0
      %1662 = vmatmul.mubr.f32.gmra.mxu0 %v610
      %v1663 = vpop.f32.mrf.mxu0
      %v1664 = vadd.f32 %v1540, %v1663
      %v1665 = vpop.f32.mrf.mxu0
      %1666 = vmatprep.mubr.f32.mxu0 0.0
      %1667 = vmatmul.mubr.f32.gmra.mxu0 %v611
      %v1668 = vpop.f32.mrf.mxu0
      %v1669 = vadd.f32 %v1540, %v1668
      %v1670 = vpop.f32.mrf.mxu0
      %1671 = vmatprep.mubr.f32.mxu0 0.0
      %1672 = vmatmul.mubr.f32.gmra.mxu0 %v612
      %v1673 = vpop.f32.mrf.mxu0
      %v1674 = vadd.f32 %v1540, %v1673
      %v1675 = vpop.f32.mrf.mxu0
      %1676 = vmatprep.mubr.f32.mxu0 0.0
      %1677 = vmatmul.mubr.f32.gmra.mxu0 %v613
      %v1678 = vpop.f32.mrf.mxu0
      %v1679 = vadd.f32 %v1540, %v1678
      %v1680 = vpop.f32.mrf.mxu0
      %1681 = vmatprep.mubr.f32.mxu0 0.0
      %1682 = vmatmul.mubr.f32.gmra.mxu0 %v614
      %v1683 = vpop.f32.mrf.mxu0
      %v1684 = vadd.f32 %v1540, %v1683
      %v1685 = vpop.f32.mrf.mxu0
      %1686 = vdwg.mxu0
      %v1687 = vadd.f32 %v1441, %v1609
      %v1688 = vadd.f32 %v1446, %v1614
      %v1689 = vadd.f32 %v1451, %v1619
      %v1690 = vadd.f32 %v1456, %v1624
      %v1691 = vadd.f32 %v1461, %v1629
      %v1692 = vadd.f32 %v1466, %v1634
      %v1693 = vadd.f32 %v1471, %v1639
      %v1694 = vadd.f32 %v1476, %v1644
      %v1695 = vadd.f32 %v1481, %v1649
      %v1696 = vadd.f32 %v1486, %v1654
      %v1697 = vadd.f32 %v1491, %v1659
      %v1698 = vadd.f32 %v1496, %v1664
      %v1699 = vadd.f32 %v1501, %v1669
      %v1700 = vadd.f32 %v1506, %v1674
      %v1701 = vadd.f32 %v1511, %v1679
      %v1702 = vadd.f32 %v1516, %v1684
      %v1703 = vxor.u32 %v1687, 2147483648
      %v1704 = vxor.u32 %v1688, 2147483648
      %v1705 = vxor.u32 %v1689, 2147483648
      %v1706 = vxor.u32 %v1690, 2147483648
      %v1707 = vxor.u32 %v1691, 2147483648
      %v1708 = vxor.u32 %v1692, 2147483648
      %v1709 = vxor.u32 %v1693, 2147483648
      %v1710 = vxor.u32 %v1694, 2147483648
      %v1711 = vxor.u32 %v1695, 2147483648
      %v1712 = vxor.u32 %v1696, 2147483648
      %v1713 = vxor.u32 %v1697, 2147483648
      %v1714 = vxor.u32 %v1698, 2147483648
      %v1715 = vxor.u32 %v1699, 2147483648
      %v1716 = vxor.u32 %v1700, 2147483648
      %v1717 = vxor.u32 %v1701, 2147483648
      %v1718 = vxor.u32 %v1702, 2147483648
      %v1719 = vmul.f32 %v1703, 1.442695
      %v1720 = vpow.pop %v1719
      %v1721 = vmul.f32 %v1704, 1.442695
      %v1722 = vpow.pop %v1721
      %v1723 = vmul.f32 %v1705, 1.442695
      %v1724 = vpow.pop %v1723
      %v1725 = vmul.f32 %v1706, 1.442695
      %v1726 = vpow.pop %v1725
      %v1727 = vmul.f32 %v1707, 1.442695
      %v1728 = vpow.pop %v1727
      %v1729 = vmul.f32 %v1708, 1.442695
      %v1730 = vpow.pop %v1729
      %v1731 = vmul.f32 %v1709, 1.442695
      %v1732 = vpow.pop %v1731
      %v1733 = vmul.f32 %v1710, 1.442695
      %v1734 = vpow.pop %v1733
      %v1735 = vmul.f32 %v1711, 1.442695
      %v1736 = vpow.pop %v1735
      %v1737 = vmul.f32 %v1712, 1.442695
      %v1738 = vpow.pop %v1737
      %v1739 = vmul.f32 %v1713, 1.442695
      %v1740 = vpow.pop %v1739
      %v1741 = vmul.f32 %v1714, 1.442695
      %v1742 = vpow.pop %v1741
      %v1743 = vmul.f32 %v1715, 1.442695
      %v1744 = vpow.pop %v1743
      %v1745 = vmul.f32 %v1716, 1.442695
      %v1746 = vpow.pop %v1745
      %v1747 = vmul.f32 %v1717, 1.442695
      %v1748 = vpow.pop %v1747
      %v1749 = vmul.f32 %v1718, 1.442695
      %v1750 = vpow.pop %v1749
      %v1751 = vadd.f32 %v1720, 1.0
      %v1752 = vadd.f32 %v1722, 1.0
      %v1753 = vadd.f32 %v1724, 1.0
      %v1754 = vadd.f32 %v1726, 1.0
      %v1755 = vadd.f32 %v1728, 1.0
      %v1756 = vadd.f32 %v1730, 1.0
      %v1757 = vadd.f32 %v1732, 1.0
      %v1758 = vadd.f32 %v1734, 1.0
      %v1759 = vadd.f32 %v1736, 1.0
      %v1760 = vadd.f32 %v1738, 1.0
      %v1761 = vadd.f32 %v1740, 1.0
      %v1762 = vadd.f32 %v1742, 1.0
      %v1763 = vadd.f32 %v1744, 1.0
      %v1764 = vadd.f32 %v1746, 1.0
      %v1765 = vadd.f32 %v1748, 1.0
      %v1766 = vadd.f32 %v1750, 1.0
      %v1767 = vrcp.pop %v1751
      %v1768 = vmul.f32 1.0, %v1767
      %v1769 = vrcp.pop %v1752
      %v1770 = vmul.f32 1.0, %v1769
      %v1771 = vrcp.pop %v1753
      %v1772 = vmul.f32 1.0, %v1771
      %v1773 = vrcp.pop %v1754
      %v1774 = vmul.f32 1.0, %v1773
      %v1775 = vrcp.pop %v1755
      %v1776 = vmul.f32 1.0, %v1775
      %v1777 = vrcp.pop %v1756
      %v1778 = vmul.f32 1.0, %v1777
      %v1779 = vrcp.pop %v1757
      %v1780 = vmul.f32 1.0, %v1779
      %v1781 = vrcp.pop %v1758
      %v1782 = vmul.f32 1.0, %v1781
      %v1783 = vrcp.pop %v1759
      %v1784 = vmul.f32 1.0, %v1783
      %v1785 = vrcp.pop %v1760
      %v1786 = vmul.f32 1.0, %v1785
      %v1787 = vrcp.pop %v1761
      %v1788 = vmul.f32 1.0, %v1787
      %v1789 = vrcp.pop %v1762
      %v1790 = vmul.f32 1.0, %v1789
      %v1791 = vrcp.pop %v1763
      %v1792 = vmul.f32 1.0, %v1791
      %v1793 = vrcp.pop %v1764
      %v1794 = vmul.f32 1.0, %v1793
      %v1795 = vrcp.pop %v1765
      %v1796 = vmul.f32 1.0, %v1795
      %v1797 = vrcp.pop %v1766
      %v1798 = vmul.f32 1.0, %v1797
      %v1799 = vld [vmem:[#allocation9 + $0x10] sm:$0xff]
      %v1800 = vld [vmem:[#allocation9 + $0x28] sm:$0xff]
      %v1801 = vld [vmem:[#allocation9 + $0x40] sm:$0xff]
      %v1802 = vld [vmem:[#allocation9 + $0x58] sm:$0xff]
      %v1803 = vld [vmem:[#allocation9 + $0x70] sm:$0xff]
      %v1804 = vld [vmem:[#allocation9 + $0x88] sm:$0xff]
      %v1805 = vld [vmem:[#allocation9 + $0xa0] sm:$0xff]
      %v1806 = vld [vmem:[#allocation9 + $0xb8] sm:$0xff]
      %v1807 = vld [vmem:[#allocation9 + $0xd0] sm:$0xff]
      %v1808 = vld [vmem:[#allocation9 + $0xe8] sm:$0xff]
      %v1809 = vld [vmem:[#allocation9 + $0x100] sm:$0xff]
      %v1810 = vld [vmem:[#allocation9 + $0x118] sm:$0xff]
      %v1811 = vld [vmem:[#allocation9 + $0x130] sm:$0xff]
      %v1812 = vld [vmem:[#allocation9 + $0x148] sm:$0xff]
      %v1813 = vld [vmem:[#allocation9 + $0x160] sm:$0xff]
      %v1814 = vld [vmem:[#allocation9 + $0x178] sm:$0xff]
      %v1815 = vld [vmem:[%s9 + $0x2] sm:$0x1]
      %v1817 = vlaneseq
      %v1818 = vshrl.u32 %v1817, 7
      %v1819 = vsub.s32 0, %v1818
      %v1820 = vrot.slane %v1815, %v1819
      %1822 = vmatprep.subr.mxu0 0.0
      %1823 = vmatpush1.msra.mxu0 %v1814
      %1824 = vmatprep.subr.mxu0 0.0
      %1825 = vmatpush1.msra.mxu0 %v1813
      %1826 = vmatprep.subr.mxu0 0.0
      %1827 = vmatpush1.msra.mxu0 %v1812
      %1828 = vmatprep.subr.mxu0 0.0
      %1829 = vmatpush1.msra.mxu0 %v1811
      %1830 = vmatprep.subr.mxu0 0.0
      %1831 = vmatpush1.msra.mxu0 %v1810
      %1832 = vmatprep.subr.mxu0 0.0
      %1833 = vmatpush1.msra.mxu0 %v1809
      %1834 = vmatprep.subr.mxu0 0.0
      %1835 = vmatpush1.msra.mxu0 %v1808
      %1836 = vmatprep.subr.mxu0 0.0
      %1837 = vmatpush1.msra.mxu0 %v1807
      %1838 = vmatprep.subr.mxu0 0.0
      %1839 = vmatpush1.msra.mxu0 %v1806
      %1840 = vmatprep.subr.mxu0 0.0
      %1841 = vmatpush1.msra.mxu0 %v1805
      %1842 = vmatprep.subr.mxu0 0.0
      %1843 = vmatpush1.msra.mxu0 %v1804
      %1844 = vmatprep.subr.mxu0 0.0
      %1845 = vmatpush1.msra.mxu0 %v1803
      %1846 = vmatprep.subr.mxu0 0.0
      %1847 = vmatpush1.msra.mxu0 %v1802
      %1848 = vmatprep.subr.mxu0 0.0
      %1849 = vmatpush1.msra.mxu0 %v1801
      %1850 = vmatprep.subr.mxu0 0.0
      %1851 = vmatpush1.msra.mxu0 %v1800
      %1852 = vmatprep.subr.mxu0 0.0
      %1853 = vmatpush1.msra.mxu0 %v1799
      %1854 = vmatprep.subr.mxu0 0.0
      %1855 = vmatpush2.msra.mxu0 0.0
      %1856 = vmatprep.subr.mxu0 0.0
      %1857 = vmatpush2.msra.mxu0 0.0
      %1858 = vmatprep.subr.mxu0 0.0
      %1859 = vmatpush2.msra.mxu0 0.0
      %1860 = vmatprep.subr.mxu0 0.0
      %1861 = vmatpush2.msra.mxu0 0.0
      %1862 = vmatprep.subr.mxu0 0.0
      %1863 = vmatpush2.msra.mxu0 0.0
      %1864 = vmatprep.subr.mxu0 0.0
      %1865 = vmatpush2.msra.mxu0 0.0
      %1866 = vmatprep.subr.mxu0 0.0
      %1867 = vmatpush2.msra.mxu0 0.0
      %1868 = vmatprep.subr.mxu0 0.0
      %1869 = vmatpush2.msra.mxu0 0.0
      %1870 = vmatprep.subr.mxu0 0.0
      %1871 = vmatpush2.msra.mxu0 0.0
      %1872 = vmatprep.subr.mxu0 0.0
      %1873 = vmatpush2.msra.mxu0 0.0
      %1874 = vmatprep.subr.mxu0 0.0
      %1875 = vmatpush2.msra.mxu0 0.0
      %1876 = vmatprep.subr.mxu0 0.0
      %1877 = vmatpush2.msra.mxu0 0.0
      %1878 = vmatprep.subr.mxu0 0.0
      %1879 = vmatpush2.msra.mxu0 0.0
      %1880 = vmatprep.subr.mxu0 0.0
      %1881 = vmatpush2.msra.mxu0 0.0
      %1882 = vmatprep.subr.mxu0 0.0
      %1883 = vmatpush2.msra.mxu0 0.0
      %1884 = vmatprep.subr.mxu0 0.0
      %1885 = vmatpush2.msra.mxu0 0.0
      %1886 = vmatprep.mubr.f32.mxu0 0.0
      %1887 = vmatmul.mubr.f32.gmra.mxu0 %v759
      %v1888 = vpop.f32.mrf.mxu0
      %v1889 = vadd.f32 %v1820, %v1888
      %v1890 = vpop.f32.mrf.mxu0
      %1891 = vmatprep.mubr.f32.mxu0 0.0
      %1892 = vmatmul.mubr.f32.gmra.mxu0 %v760
      %v1893 = vpop.f32.mrf.mxu0
      %v1894 = vadd.f32 %v1820, %v1893
      %v1895 = vpop.f32.mrf.mxu0
      %1896 = vmatprep.mubr.f32.mxu0 0.0
      %1897 = vmatmul.mubr.f32.gmra.mxu0 %v761
      %v1898 = vpop.f32.mrf.mxu0
      %v1899 = vadd.f32 %v1820, %v1898
      %v1900 = vpop.f32.mrf.mxu0
      %1901 = vmatprep.mubr.f32.mxu0 0.0
      %1902 = vmatmul.mubr.f32.gmra.mxu0 %v762
      %v1903 = vpop.f32.mrf.mxu0
      %v1904 = vadd.f32 %v1820, %v1903
      %v1905 = vpop.f32.mrf.mxu0
      %1906 = vmatprep.mubr.f32.mxu0 0.0
      %1907 = vmatmul.mubr.f32.gmra.mxu0 %v763
      %v1908 = vpop.f32.mrf.mxu0
      %v1909 = vadd.f32 %v1820, %v1908
      %v1910 = vpop.f32.mrf.mxu0
      %1911 = vmatprep.mubr.f32.mxu0 0.0
      %1912 = vmatmul.mubr.f32.gmra.mxu0 %v764
      %v1913 = vpop.f32.mrf.mxu0
      %v1914 = vadd.f32 %v1820, %v1913
      %v1915 = vpop.f32.mrf.mxu0
      %1916 = vmatprep.mubr.f32.mxu0 0.0
      %1917 = vmatmul.mubr.f32.gmra.mxu0 %v765
      %v1918 = vpop.f32.mrf.mxu0
      %v1919 = vadd.f32 %v1820, %v1918
      %v1920 = vpop.f32.mrf.mxu0
      %1921 = vmatprep.mubr.f32.mxu0 0.0
      %1922 = vmatmul.mubr.f32.gmra.mxu0 %v766
      %v1923 = vpop.f32.mrf.mxu0
      %v1924 = vadd.f32 %v1820, %v1923
      %v1925 = vpop.f32.mrf.mxu0
      %1926 = vmatprep.mubr.f32.mxu0 0.0
      %1927 = vmatmul.mubr.f32.gmra.mxu0 %v767
      %v1928 = vpop.f32.mrf.mxu0
      %v1929 = vadd.f32 %v1820, %v1928
      %v1930 = vpop.f32.mrf.mxu0
      %1931 = vmatprep.mubr.f32.mxu0 0.0
      %1932 = vmatmul.mubr.f32.gmra.mxu0 %v768
      %v1933 = vpop.f32.mrf.mxu0
      %v1934 = vadd.f32 %v1820, %v1933
      %v1935 = vpop.f32.mrf.mxu0
      %1936 = vmatprep.mubr.f32.mxu0 0.0
      %1937 = vmatmul.mubr.f32.gmra.mxu0 %v769
      %v1938 = vpop.f32.mrf.mxu0
      %v1939 = vadd.f32 %v1820, %v1938
      %v1940 = vpop.f32.mrf.mxu0
      %1941 = vmatprep.mubr.f32.mxu0 0.0
      %1942 = vmatmul.mubr.f32.gmra.mxu0 %v770
      %v1943 = vpop.f32.mrf.mxu0
      %v1944 = vadd.f32 %v1820, %v1943
      %v1945 = vpop.f32.mrf.mxu0
      %1946 = vmatprep.mubr.f32.mxu0 0.0
      %1947 = vmatmul.mubr.f32.gmra.mxu0 %v771
      %v1948 = vpop.f32.mrf.mxu0
      %v1949 = vadd.f32 %v1820, %v1948
      %v1950 = vpop.f32.mrf.mxu0
      %1951 = vmatprep.mubr.f32.mxu0 0.0
      %1952 = vmatmul.mubr.f32.gmra.mxu0 %v772
      %v1953 = vpop.f32.mrf.mxu0
      %v1954 = vadd.f32 %v1820, %v1953
      %v1955 = vpop.f32.mrf.mxu0
      %1956 = vmatprep.mubr.f32.mxu0 0.0
      %1957 = vmatmul.mubr.f32.gmra.mxu0 %v773
      %v1958 = vpop.f32.mrf.mxu0
      %v1959 = vadd.f32 %v1820, %v1958
      %v1960 = vpop.f32.mrf.mxu0
      %1961 = vmatprep.mubr.f32.mxu0 0.0
      %1962 = vmatmul.mubr.f32.gmra.mxu0 %v774
      %v1963 = vpop.f32.mrf.mxu0
      %v1964 = vadd.f32 %v1820, %v1963
      %v1965 = vpop.f32.mrf.mxu0
      %1966 = vdwg.mxu0
      %v1967 = vld [vmem:[#allocation12 + $0x10] sm:$0xff]
      %v1968 = vld [vmem:[#allocation12 + $0x40] sm:$0xff]
      %v1969 = vld [vmem:[#allocation12 + $0x70] sm:$0xff]
      %v1970 = vld [vmem:[#allocation12 + $0xa0] sm:$0xff]
      %v1971 = vld [vmem:[#allocation12 + $0xd0] sm:$0xff]
      %v1972 = vld [vmem:[#allocation12 + $0x100] sm:$0xff]
      %v1973 = vld [vmem:[#allocation12 + $0x130] sm:$0xff]
      %v1974 = vld [vmem:[#allocation12 + $0x160] sm:$0xff]
      %v1975 = vld [vmem:[#allocation12 + $0x190] sm:$0xff]
      %v1976 = vld [vmem:[#allocation12 + $0x1c0] sm:$0xff]
      %v1977 = vld [vmem:[#allocation12 + $0x1f0] sm:$0xff]
      %v1978 = vld [vmem:[#allocation12 + $0x220] sm:$0xff]
      %v1979 = vld [vmem:[#allocation12 + $0x250] sm:$0xff]
      %v1980 = vld [vmem:[#allocation12 + $0x280] sm:$0xff]
      %v1981 = vld [vmem:[#allocation12 + $0x2b0] sm:$0xff]
      %v1982 = vld [vmem:[#allocation12 + $0x2e0] sm:$0xff]
      %v1983 = vld [vmem:[%s11 + $0x2] sm:$0x1]
      %v1985 = vlaneseq
      %v1986 = vshrl.u32 %v1985, 7
      %v1987 = vsub.s32 0, %v1986
      %v1988 = vrot.slane %v1983, %v1987
      %1990 = vmatprep.subr.mxu0 0.0
      %1991 = vmatpush1.msra.mxu0 %v1982
      %1992 = vmatprep.subr.mxu0 0.0
      %1993 = vmatpush1.msra.mxu0 %v1981
      %1994 = vmatprep.subr.mxu0 0.0
      %1995 = vmatpush1.msra.mxu0 %v1980
      %1996 = vmatprep.subr.mxu0 0.0
      %1997 = vmatpush1.msra.mxu0 %v1979
      %1998 = vmatprep.subr.mxu0 0.0
      %1999 = vmatpush1.msra.mxu0 %v1978
      %2000 = vmatprep.subr.mxu0 0.0
      %2001 = vmatpush1.msra.mxu0 %v1977
      %2002 = vmatprep.subr.mxu0 0.0
      %2003 = vmatpush1.msra.mxu0 %v1976
      %2004 = vmatprep.subr.mxu0 0.0
      %2005 = vmatpush1.msra.mxu0 %v1975
      %2006 = vmatprep.subr.mxu0 0.0
      %2007 = vmatpush1.msra.mxu0 %v1974
      %2008 = vmatprep.subr.mxu0 0.0
      %2009 = vmatpush1.msra.mxu0 %v1973
      %2010 = vmatprep.subr.mxu0 0.0
      %2011 = vmatpush1.msra.mxu0 %v1972
      %2012 = vmatprep.subr.mxu0 0.0
      %2013 = vmatpush1.msra.mxu0 %v1971
      %2014 = vmatprep.subr.mxu0 0.0
      %2015 = vmatpush1.msra.mxu0 %v1970
      %2016 = vmatprep.subr.mxu0 0.0
      %2017 = vmatpush1.msra.mxu0 %v1969
      %2018 = vmatprep.subr.mxu0 0.0
      %2019 = vmatpush1.msra.mxu0 %v1968
      %2020 = vmatprep.subr.mxu0 0.0
      %2021 = vmatpush1.msra.mxu0 %v1967
      %2022 = vmatprep.subr.mxu0 0.0
      %2023 = vmatpush2.msra.mxu0 0.0
      %2024 = vmatprep.subr.mxu0 0.0
      %2025 = vmatpush2.msra.mxu0 0.0
      %2026 = vmatprep.subr.mxu0 0.0
      %2027 = vmatpush2.msra.mxu0 0.0
      %2028 = vmatprep.subr.mxu0 0.0
      %2029 = vmatpush2.msra.mxu0 0.0
      %2030 = vmatprep.subr.mxu0 0.0
      %2031 = vmatpush2.msra.mxu0 0.0
      %2032 = vmatprep.subr.mxu0 0.0
      %2033 = vmatpush2.msra.mxu0 0.0
      %2034 = vmatprep.subr.mxu0 0.0
      %2035 = vmatpush2.msra.mxu0 0.0
      %2036 = vmatprep.subr.mxu0 0.0
      %2037 = vmatpush2.msra.mxu0 0.0
      %2038 = vmatprep.subr.mxu0 0.0
      %2039 = vmatpush2.msra.mxu0 0.0
      %2040 = vmatprep.subr.mxu0 0.0
      %2041 = vmatpush2.msra.mxu0 0.0
      %2042 = vmatprep.subr.mxu0 0.0
      %2043 = vmatpush2.msra.mxu0 0.0
      %2044 = vmatprep.subr.mxu0 0.0
      %2045 = vmatpush2.msra.mxu0 0.0
      %2046 = vmatprep.subr.mxu0 0.0
      %2047 = vmatpush2.msra.mxu0 0.0
      %2048 = vmatprep.subr.mxu0 0.0
      %2049 = vmatpush2.msra.mxu0 0.0
      %2050 = vmatprep.subr.mxu0 0.0
      %2051 = vmatpush2.msra.mxu0 0.0
      %2052 = vmatprep.subr.mxu0 0.0
      %2053 = vmatpush2.msra.mxu0 0.0
      %2054 = vmatprep.mubr.f32.mxu0 0.0
      %2055 = vmatmul.mubr.f32.gmra.mxu0 %v599
      %v2056 = vpop.f32.mrf.mxu0
      %v2057 = vadd.f32 %v1988, %v2056
      %v2058 = vpop.f32.mrf.mxu0
      %2059 = vmatprep.mubr.f32.mxu0 0.0
      %2060 = vmatmul.mubr.f32.gmra.mxu0 %v600
      %v2061 = vpop.f32.mrf.mxu0
      %v2062 = vadd.f32 %v1988, %v2061
      %v2063 = vpop.f32.mrf.mxu0
      %2064 = vmatprep.mubr.f32.mxu0 0.0
      %2065 = vmatmul.mubr.f32.gmra.mxu0 %v601
      %v2066 = vpop.f32.mrf.mxu0
      %v2067 = vadd.f32 %v1988, %v2066
      %v2068 = vpop.f32.mrf.mxu0
      %2069 = vmatprep.mubr.f32.mxu0 0.0
      %2070 = vmatmul.mubr.f32.gmra.mxu0 %v602
      %v2071 = vpop.f32.mrf.mxu0
      %v2072 = vadd.f32 %v1988, %v2071
      %v2073 = vpop.f32.mrf.mxu0
      %2074 = vmatprep.mubr.f32.mxu0 0.0
      %2075 = vmatmul.mubr.f32.gmra.mxu0 %v603
      %v2076 = vpop.f32.mrf.mxu0
      %v2077 = vadd.f32 %v1988, %v2076
      %v2078 = vpop.f32.mrf.mxu0
      %2079 = vmatprep.mubr.f32.mxu0 0.0
      %2080 = vmatmul.mubr.f32.gmra.mxu0 %v604
      %v2081 = vpop.f32.mrf.mxu0
      %v2082 = vadd.f32 %v1988, %v2081
      %v2083 = vpop.f32.mrf.mxu0
      %2084 = vmatprep.mubr.f32.mxu0 0.0
      %2085 = vmatmul.mubr.f32.gmra.mxu0 %v605
      %v2086 = vpop.f32.mrf.mxu0
      %v2087 = vadd.f32 %v1988, %v2086
      %v2088 = vpop.f32.mrf.mxu0
      %2089 = vmatprep.mubr.f32.mxu0 0.0
      %2090 = vmatmul.mubr.f32.gmra.mxu0 %v606
      %v2091 = vpop.f32.mrf.mxu0
      %v2092 = vadd.f32 %v1988, %v2091
      %v2093 = vpop.f32.mrf.mxu0
      %2094 = vmatprep.mubr.f32.mxu0 0.0
      %2095 = vmatmul.mubr.f32.gmra.mxu0 %v607
      %v2096 = vpop.f32.mrf.mxu0
      %v2097 = vadd.f32 %v1988, %v2096
      %v2098 = vpop.f32.mrf.mxu0
      %2099 = vmatprep.mubr.f32.mxu0 0.0
      %2100 = vmatmul.mubr.f32.gmra.mxu0 %v608
      %v2101 = vpop.f32.mrf.mxu0
      %v2102 = vadd.f32 %v1988, %v2101
      %v2103 = vpop.f32.mrf.mxu0
      %2104 = vmatprep.mubr.f32.mxu0 0.0
      %2105 = vmatmul.mubr.f32.gmra.mxu0 %v609
      %v2106 = vpop.f32.mrf.mxu0
      %v2107 = vadd.f32 %v1988, %v2106
      %v2108 = vpop.f32.mrf.mxu0
      %2109 = vmatprep.mubr.f32.mxu0 0.0
      %2110 = vmatmul.mubr.f32.gmra.mxu0 %v610
      %v2111 = vpop.f32.mrf.mxu0
      %v2112 = vadd.f32 %v1988, %v2111
      %v2113 = vpop.f32.mrf.mxu0
      %2114 = vmatprep.mubr.f32.mxu0 0.0
      %2115 = vmatmul.mubr.f32.gmra.mxu0 %v611
      %v2116 = vpop.f32.mrf.mxu0
      %v2117 = vadd.f32 %v1988, %v2116
      %v2118 = vpop.f32.mrf.mxu0
      %2119 = vmatprep.mubr.f32.mxu0 0.0
      %2120 = vmatmul.mubr.f32.gmra.mxu0 %v612
      %v2121 = vpop.f32.mrf.mxu0
      %v2122 = vadd.f32 %v1988, %v2121
      %v2123 = vpop.f32.mrf.mxu0
      %2124 = vmatprep.mubr.f32.mxu0 0.0
      %2125 = vmatmul.mubr.f32.gmra.mxu0 %v613
      %v2126 = vpop.f32.mrf.mxu0
      %v2127 = vadd.f32 %v1988, %v2126
      %v2128 = vpop.f32.mrf.mxu0
      %2129 = vmatprep.mubr.f32.mxu0 0.0
      %2130 = vmatmul.mubr.f32.gmra.mxu0 %v614
      %v2131 = vpop.f32.mrf.mxu0
      %v2132 = vadd.f32 %v1988, %v2131
      %v2133 = vpop.f32.mrf.mxu0
      %2134 = vdwg.mxu0
      %v2135 = vmul.f32 %v1320, %v2057
      %v2136 = vmul.f32 %v1322, %v2062
      %v2137 = vmul.f32 %v1324, %v2067
      %v2138 = vmul.f32 %v1326, %v2072
      %v2139 = vmul.f32 %v1328, %v2077
      %v2140 = vmul.f32 %v1330, %v2082
      %v2141 = vmul.f32 %v1332, %v2087
      %v2142 = vmul.f32 %v1334, %v2092
      %v2143 = vmul.f32 %v1336, %v2097
      %v2144 = vmul.f32 %v1338, %v2102
      %v2145 = vmul.f32 %v1340, %v2107
      %v2146 = vmul.f32 %v1342, %v2112
      %v2147 = vmul.f32 %v1344, %v2117
      %v2148 = vmul.f32 %v1346, %v2122
      %v2149 = vmul.f32 %v1348, %v2127
      %v2150 = vmul.f32 %v1350, %v2132
      %v2151 = vadd.f32 %v1889, %v2135
      %v2152 = vadd.f32 %v1894, %v2136
      %v2153 = vadd.f32 %v1899, %v2137
      %v2154 = vadd.f32 %v1904, %v2138
      %v2155 = vadd.f32 %v1909, %v2139
      %v2156 = vadd.f32 %v1914, %v2140
      %v2157 = vadd.f32 %v1919, %v2141
      %v2158 = vadd.f32 %v1924, %v2142
      %v2159 = vadd.f32 %v1929, %v2143
      %v2160 = vadd.f32 %v1934, %v2144
      %v2161 = vadd.f32 %v1939, %v2145
      %v2162 = vadd.f32 %v1944, %v2146
      %v2163 = vadd.f32 %v1949, %v2147
      %v2164 = vadd.f32 %v1954, %v2148
      %v2165 = vadd.f32 %v1959, %v2149
      %v2166 = vadd.f32 %v1964, %v2150
      %v2167 = vtanh.pop %v2151
      %v2168 = vtanh.pop %v2152
      %v2169 = vtanh.pop %v2153
      %v2170 = vtanh.pop %v2154
      %v2171 = vtanh.pop %v2155
      %v2172 = vtanh.pop %v2156
      %v2173 = vtanh.pop %v2157
      %v2174 = vtanh.pop %v2158
      %v2175 = vtanh.pop %v2159
      %v2176 = vtanh.pop %v2160
      %v2177 = vtanh.pop %v2161
      %v2178 = vtanh.pop %v2162
      %v2179 = vtanh.pop %v2163
      %v2180 = vtanh.pop %v2164
      %v2181 = vtanh.pop %v2165
      %v2182 = vtanh.pop %v2166
      %v2183 = vsub.f32 1.0, %v1768
      %v2184 = vsub.f32 1.0, %v1770
      %v2185 = vsub.f32 1.0, %v1772
      %v2186 = vsub.f32 1.0, %v1774
      %v2187 = vsub.f32 1.0, %v1776
      %v2188 = vsub.f32 1.0, %v1778
      %v2189 = vsub.f32 1.0, %v1780
      %v2190 = vsub.f32 1.0, %v1782
      %v2191 = vsub.f32 1.0, %v1784
      %v2192 = vsub.f32 1.0, %v1786
      %v2193 = vsub.f32 1.0, %v1788
      %v2194 = vsub.f32 1.0, %v1790
      %v2195 = vsub.f32 1.0, %v1792
      %v2196 = vsub.f32 1.0, %v1794
      %v2197 = vsub.f32 1.0, %v1796
      %v2198 = vsub.f32 1.0, %v1798
      %v2199 = vmul.f32 %v2183, %v2167
      %v2200 = vmul.f32 %v2184, %v2168
      %v2201 = vmul.f32 %v2185, %v2169
      %v2202 = vmul.f32 %v2186, %v2170
      %v2203 = vmul.f32 %v2187, %v2171
      %v2204 = vmul.f32 %v2188, %v2172
      %v2205 = vmul.f32 %v2189, %v2173
      %v2206 = vmul.f32 %v2190, %v2174
      %v2207 = vmul.f32 %v2191, %v2175
      %v2208 = vmul.f32 %v2192, %v2176
      %v2209 = vmul.f32 %v2193, %v2177
      %v2210 = vmul.f32 %v2194, %v2178
      %v2211 = vmul.f32 %v2195, %v2179
      %v2212 = vmul.f32 %v2196, %v2180
      %v2213 = vmul.f32 %v2197, %v2181
      %v2214 = vmul.f32 %v2198, %v2182
      %v2215 = vmul.f32 %v1768, %v599
      %v2216 = vmul.f32 %v1770, %v600
      %v2217 = vmul.f32 %v1772, %v601
      %v2218 = vmul.f32 %v1774, %v602
      %v2219 = vmul.f32 %v1776, %v603
      %v2220 = vmul.f32 %v1778, %v604
      %v2221 = vmul.f32 %v1780, %v605
      %v2222 = vmul.f32 %v1782, %v606
      %v2223 = vmul.f32 %v1784, %v607
      %v2224 = vmul.f32 %v1786, %v608
      %v2225 = vmul.f32 %v1788, %v609
      %v2226 = vmul.f32 %v1790, %v610
      %v2227 = vmul.f32 %v1792, %v611
      %v2228 = vmul.f32 %v1794, %v612
      %v2229 = vmul.f32 %v1796, %v613
      %v2230 = vmul.f32 %v1798, %v614
      %v2231 = vadd.f32 %v2199, %v2215
      %v2232 = vadd.f32 %v2200, %v2216
      %v2233 = vadd.f32 %v2201, %v2217
      %v2234 = vadd.f32 %v2202, %v2218
      %v2235 = vadd.f32 %v2203, %v2219
      %v2236 = vadd.f32 %v2204, %v2220
      %v2237 = vadd.f32 %v2205, %v2221
      %v2238 = vadd.f32 %v2206, %v2222
      %v2239 = vadd.f32 %v2207, %v2223
      %v2240 = vadd.f32 %v2208, %v2224
      %v2241 = vadd.f32 %v2209, %v2225
      %v2242 = vadd.f32 %v2210, %v2226
      %v2243 = vadd.f32 %v2211, %v2227
      %v2244 = vadd.f32 %v2212, %v2228
      %v2245 = vadd.f32 %v2213, %v2229
      %v2246 = vadd.f32 %v2214, %v2230
      %v2247 = vmul.f32 %v794, %v2231
      %v2248 = vmul.f32 %v799, %v2232
      %v2249 = vmul.f32 %v804, %v2233
      %v2250 = vmul.f32 %v809, %v2234
      %v2251 = vmul.f32 %v814, %v2235
      %v2252 = vmul.f32 %v819, %v2236
      %v2253 = vmul.f32 %v824, %v2237
      %v2254 = vmul.f32 %v829, %v2238
      %v2255 = vmul.f32 %v834, %v2239
      %v2256 = vmul.f32 %v839, %v2240
      %v2257 = vmul.f32 %v844, %v2241
      %v2258 = vmul.f32 %v849, %v2242
      %v2259 = vmul.f32 %v854, %v2243
      %v2260 = vmul.f32 %v859, %v2244
      %v2261 = vmul.f32 %v864, %v2245
      %v2262 = vmul.f32 %v869, %v2246
      %v2263 = vld [vmem:[#allocation10] sm:$0xff]
      %v2264 = vld [vmem:[#allocation10 + $0x18] sm:$0xff]
      %v2265 = vld [vmem:[#allocation10 + $0x30] sm:$0xff]
      %v2266 = vld [vmem:[#allocation10 + $0x48] sm:$0xff]
      %v2267 = vld [vmem:[#allocation10 + $0x60] sm:$0xff]
      %v2268 = vld [vmem:[#allocation10 + $0x78] sm:$0xff]
      %v2269 = vld [vmem:[#allocation10 + $0x90] sm:$0xff]
      %v2270 = vld [vmem:[#allocation10 + $0xa8] sm:$0xff]
      %v2271 = vld [vmem:[#allocation10 + $0xc0] sm:$0xff]
      %v2272 = vld [vmem:[#allocation10 + $0xd8] sm:$0xff]
      %v2273 = vld [vmem:[#allocation10 + $0xf0] sm:$0xff]
      %v2274 = vld [vmem:[#allocation10 + $0x108] sm:$0xff]
      %v2275 = vld [vmem:[#allocation10 + $0x120] sm:$0xff]
      %v2276 = vld [vmem:[#allocation10 + $0x138] sm:$0xff]
      %v2277 = vld [vmem:[#allocation10 + $0x150] sm:$0xff]
      %v2278 = vld [vmem:[#allocation10 + $0x168] sm:$0xff]
      %v2279 = vld [vmem:[%s10] sm:$0x1]
      %v2281 = vlaneseq
      %v2282 = vshrl.u32 %v2281, 7
      %v2283 = vsub.s32 0, %v2282
      %v2284 = vrot.slane %v2279, %v2283
      %2286 = vmatprep.subr.mxu0 0.0
      %2287 = vmatpush1.msra.mxu0 %v2278
      %2288 = vmatprep.subr.mxu0 0.0
      %2289 = vmatpush1.msra.mxu0 %v2277
      %2290 = vmatprep.subr.mxu0 0.0
      %2291 = vmatpush1.msra.mxu0 %v2276
      %2292 = vmatprep.subr.mxu0 0.0
      %2293 = vmatpush1.msra.mxu0 %v2275
      %2294 = vmatprep.subr.mxu0 0.0
      %2295 = vmatpush1.msra.mxu0 %v2274
      %2296 = vmatprep.subr.mxu0 0.0
      %2297 = vmatpush1.msra.mxu0 %v2273
      %2298 = vmatprep.subr.mxu0 0.0
      %2299 = vmatpush1.msra.mxu0 %v2272
      %2300 = vmatprep.subr.mxu0 0.0
      %2301 = vmatpush1.msra.mxu0 %v2271
      %2302 = vmatprep.subr.mxu0 0.0
      %2303 = vmatpush1.msra.mxu0 %v2270
      %2304 = vmatprep.subr.mxu0 0.0
      %2305 = vmatpush1.msra.mxu0 %v2269
      %2306 = vmatprep.subr.mxu0 0.0
      %2307 = vmatpush1.msra.mxu0 %v2268
      %2308 = vmatprep.subr.mxu0 0.0
      %2309 = vmatpush1.msra.mxu0 %v2267
      %2310 = vmatprep.subr.mxu0 0.0
      %2311 = vmatpush1.msra.mxu0 %v2266
      %2312 = vmatprep.subr.mxu0 0.0
      %2313 = vmatpush1.msra.mxu0 %v2265
      %2314 = vmatprep.subr.mxu0 0.0
      %2315 = vmatpush1.msra.mxu0 %v2264
      %2316 = vmatprep.subr.mxu0 0.0
      %2317 = vmatpush1.msra.mxu0 %v2263
      %2318 = vmatprep.subr.mxu0 0.0
      %2319 = vmatpush2.msra.mxu0 0.0
      %2320 = vmatprep.subr.mxu0 0.0
      %2321 = vmatpush2.msra.mxu0 0.0
      %2322 = vmatprep.subr.mxu0 0.0
      %2323 = vmatpush2.msra.mxu0 0.0
      %2324 = vmatprep.subr.mxu0 0.0
      %2325 = vmatpush2.msra.mxu0 0.0
      %2326 = vmatprep.subr.mxu0 0.0
      %2327 = vmatpush2.msra.mxu0 0.0
      %2328 = vmatprep.subr.mxu0 0.0
      %2329 = vmatpush2.msra.mxu0 0.0
      %2330 = vmatprep.subr.mxu0 0.0
      %2331 = vmatpush2.msra.mxu0 0.0
      %2332 = vmatprep.subr.mxu0 0.0
      %2333 = vmatpush2.msra.mxu0 0.0
      %2334 = vmatprep.subr.mxu0 0.0
      %2335 = vmatpush2.msra.mxu0 0.0
      %2336 = vmatprep.subr.mxu0 0.0
      %2337 = vmatpush2.msra.mxu0 0.0
      %2338 = vmatprep.subr.mxu0 0.0
      %2339 = vmatpush2.msra.mxu0 0.0
      %2340 = vmatprep.subr.mxu0 0.0
      %2341 = vmatpush2.msra.mxu0 0.0
      %2342 = vmatprep.subr.mxu0 0.0
      %2343 = vmatpush2.msra.mxu0 0.0
      %2344 = vmatprep.subr.mxu0 0.0
      %2345 = vmatpush2.msra.mxu0 0.0
      %2346 = vmatprep.subr.mxu0 0.0
      %2347 = vmatpush2.msra.mxu0 0.0
      %2348 = vmatprep.subr.mxu0 0.0
      %2349 = vmatpush2.msra.mxu0 0.0
      %2350 = vmatprep.mubr.f32.mxu0 0.0
      %2351 = vmatmul.mubr.f32.gmra.mxu0 %v887
      %v2352 = vpop.f32.mrf.mxu0
      %v2353 = vadd.f32 %v2284, %v2352
      %v2354 = vpop.f32.mrf.mxu0
      %2355 = vmatprep.mubr.f32.mxu0 0.0
      %2356 = vmatmul.mubr.f32.gmra.mxu0 %v888
      %v2357 = vpop.f32.mrf.mxu0
      %v2358 = vadd.f32 %v2284, %v2357
      %v2359 = vpop.f32.mrf.mxu0
      %2360 = vmatprep.mubr.f32.mxu0 0.0
      %2361 = vmatmul.mubr.f32.gmra.mxu0 %v889
      %v2362 = vpop.f32.mrf.mxu0
      %v2363 = vadd.f32 %v2284, %v2362
      %v2364 = vpop.f32.mrf.mxu0
      %2365 = vmatprep.mubr.f32.mxu0 0.0
      %2366 = vmatmul.mubr.f32.gmra.mxu0 %v890
      %v2367 = vpop.f32.mrf.mxu0
      %v2368 = vadd.f32 %v2284, %v2367
      %v2369 = vpop.f32.mrf.mxu0
      %2370 = vmatprep.mubr.f32.mxu0 0.0
      %2371 = vmatmul.mubr.f32.gmra.mxu0 %v891
      %v2372 = vpop.f32.mrf.mxu0
      %v2373 = vadd.f32 %v2284, %v2372
      %v2374 = vpop.f32.mrf.mxu0
      %2375 = vmatprep.mubr.f32.mxu0 0.0
      %2376 = vmatmul.mubr.f32.gmra.mxu0 %v892
      %v2377 = vpop.f32.mrf.mxu0
      %v2378 = vadd.f32 %v2284, %v2377
      %v2379 = vpop.f32.mrf.mxu0
      %2380 = vmatprep.mubr.f32.mxu0 0.0
      %2381 = vmatmul.mubr.f32.gmra.mxu0 %v893
      %v2382 = vpop.f32.mrf.mxu0
      %v2383 = vadd.f32 %v2284, %v2382
      %v2384 = vpop.f32.mrf.mxu0
      %2385 = vmatprep.mubr.f32.mxu0 0.0
      %2386 = vmatmul.mubr.f32.gmra.mxu0 %v894
      %v2387 = vpop.f32.mrf.mxu0
      %v2388 = vadd.f32 %v2284, %v2387
      %v2389 = vpop.f32.mrf.mxu0
      %2390 = vmatprep.mubr.f32.mxu0 0.0
      %2391 = vmatmul.mubr.f32.gmra.mxu0 %v895
      %v2392 = vpop.f32.mrf.mxu0
      %v2393 = vadd.f32 %v2284, %v2392
      %v2394 = vpop.f32.mrf.mxu0
      %2395 = vmatprep.mubr.f32.mxu0 0.0
      %2396 = vmatmul.mubr.f32.gmra.mxu0 %v896
      %v2397 = vpop.f32.mrf.mxu0
      %v2398 = vadd.f32 %v2284, %v2397
      %v2399 = vpop.f32.mrf.mxu0
      %2400 = vmatprep.mubr.f32.mxu0 0.0
      %2401 = vmatmul.mubr.f32.gmra.mxu0 %v897
      %v2402 = vpop.f32.mrf.mxu0
      %v2403 = vadd.f32 %v2284, %v2402
      %v2404 = vpop.f32.mrf.mxu0
      %2405 = vmatprep.mubr.f32.mxu0 0.0
      %2406 = vmatmul.mubr.f32.gmra.mxu0 %v898
      %v2407 = vpop.f32.mrf.mxu0
      %v2408 = vadd.f32 %v2284, %v2407
      %v2409 = vpop.f32.mrf.mxu0
      %2410 = vmatprep.mubr.f32.mxu0 0.0
      %2411 = vmatmul.mubr.f32.gmra.mxu0 %v899
      %v2412 = vpop.f32.mrf.mxu0
      %v2413 = vadd.f32 %v2284, %v2412
      %v2414 = vpop.f32.mrf.mxu0
      %2415 = vmatprep.mubr.f32.mxu0 0.0
      %2416 = vmatmul.mubr.f32.gmra.mxu0 %v900
      %v2417 = vpop.f32.mrf.mxu0
      %v2418 = vadd.f32 %v2284, %v2417
      %v2419 = vpop.f32.mrf.mxu0
      %2420 = vmatprep.mubr.f32.mxu0 0.0
      %2421 = vmatmul.mubr.f32.gmra.mxu0 %v901
      %v2422 = vpop.f32.mrf.mxu0
      %v2423 = vadd.f32 %v2284, %v2422
      %v2424 = vpop.f32.mrf.mxu0
      %2425 = vmatprep.mubr.f32.mxu0 0.0
      %2426 = vmatmul.mubr.f32.gmra.mxu0 %v902
      %v2427 = vpop.f32.mrf.mxu0
      %v2428 = vadd.f32 %v2284, %v2427
      %v2429 = vpop.f32.mrf.mxu0
      %2430 = vdwg.mxu0
      %v2431 = vld [vmem:[#allocation12 + $0x18] sm:$0xff]
      %v2432 = vld [vmem:[#allocation12 + $0x48] sm:$0xff]
      %v2433 = vld [vmem:[#allocation12 + $0x78] sm:$0xff]
      %v2434 = vld [vmem:[#allocation12 + $0xa8] sm:$0xff]
      %v2435 = vld [vmem:[#allocation12 + $0xd8] sm:$0xff]
      %v2436 = vld [vmem:[#allocation12 + $0x108] sm:$0xff]
      %v2437 = vld [vmem:[#allocation12 + $0x138] sm:$0xff]
      %v2438 = vld [vmem:[#allocation12 + $0x168] sm:$0xff]
      %v2439 = vld [vmem:[#allocation12 + $0x198] sm:$0xff]
      %v2440 = vld [vmem:[#allocation12 + $0x1c8] sm:$0xff]
      %v2441 = vld [vmem:[#allocation12 + $0x1f8] sm:$0xff]
      %v2442 = vld [vmem:[#allocation12 + $0x228] sm:$0xff]
      %v2443 = vld [vmem:[#allocation12 + $0x258] sm:$0xff]
      %v2444 = vld [vmem:[#allocation12 + $0x288] sm:$0xff]
      %v2445 = vld [vmem:[#allocation12 + $0x2b8] sm:$0xff]
      %v2446 = vld [vmem:[#allocation12 + $0x2e8] sm:$0xff]
      %v2447 = vld [vmem:[%s11 + $0x3] sm:$0x1]
      %v2449 = vlaneseq
      %v2450 = vshrl.u32 %v2449, 7
      %v2451 = vsub.s32 0, %v2450
      %v2452 = vrot.slane %v2447, %v2451
      %2454 = vmatprep.subr.mxu0 0.0
      %2455 = vmatpush1.msra.mxu0 %v2446
      %2456 = vmatprep.subr.mxu0 0.0
      %2457 = vmatpush1.msra.mxu0 %v2445
      %2458 = vmatprep.subr.mxu0 0.0
      %2459 = vmatpush1.msra.mxu0 %v2444
      %2460 = vmatprep.subr.mxu0 0.0
      %2461 = vmatpush1.msra.mxu0 %v2443
      %2462 = vmatprep.subr.mxu0 0.0
      %2463 = vmatpush1.msra.mxu0 %v2442
      %2464 = vmatprep.subr.mxu0 0.0
      %2465 = vmatpush1.msra.mxu0 %v2441
      %2466 = vmatprep.subr.mxu0 0.0
      %2467 = vmatpush1.msra.mxu0 %v2440
      %2468 = vmatprep.subr.mxu0 0.0
      %2469 = vmatpush1.msra.mxu0 %v2439
      %2470 = vmatprep.subr.mxu0 0.0
      %2471 = vmatpush1.msra.mxu0 %v2438
      %2472 = vmatprep.subr.mxu0 0.0
      %2473 = vmatpush1.msra.mxu0 %v2437
      %2474 = vmatprep.subr.mxu0 0.0
      %2475 = vmatpush1.msra.mxu0 %v2436
      %2476 = vmatprep.subr.mxu0 0.0
      %2477 = vmatpush1.msra.mxu0 %v2435
      %2478 = vmatprep.subr.mxu0 0.0
      %2479 = vmatpush1.msra.mxu0 %v2434
      %2480 = vmatprep.subr.mxu0 0.0
      %2481 = vmatpush1.msra.mxu0 %v2433
      %2482 = vmatprep.subr.mxu0 0.0
      %2483 = vmatpush1.msra.mxu0 %v2432
      %2484 = vmatprep.subr.mxu0 0.0
      %2485 = vmatpush1.msra.mxu0 %v2431
      %2486 = vmatprep.subr.mxu0 0.0
      %2487 = vmatpush2.msra.mxu0 0.0
      %2488 = vmatprep.subr.mxu0 0.0
      %2489 = vmatpush2.msra.mxu0 0.0
      %2490 = vmatprep.subr.mxu0 0.0
      %2491 = vmatpush2.msra.mxu0 0.0
      %2492 = vmatprep.subr.mxu0 0.0
      %2493 = vmatpush2.msra.mxu0 0.0
      %2494 = vmatprep.subr.mxu0 0.0
      %2495 = vmatpush2.msra.mxu0 0.0
      %2496 = vmatprep.subr.mxu0 0.0
      %2497 = vmatpush2.msra.mxu0 0.0
      %2498 = vmatprep.subr.mxu0 0.0
      %2499 = vmatpush2.msra.mxu0 0.0
      %2500 = vmatprep.subr.mxu0 0.0
      %2501 = vmatpush2.msra.mxu0 0.0
      %2502 = vmatprep.subr.mxu0 0.0
      %2503 = vmatpush2.msra.mxu0 0.0
      %2504 = vmatprep.subr.mxu0 0.0
      %2505 = vmatpush2.msra.mxu0 0.0
      %2506 = vmatprep.subr.mxu0 0.0
      %2507 = vmatpush2.msra.mxu0 0.0
      %2508 = vmatprep.subr.mxu0 0.0
      %2509 = vmatpush2.msra.mxu0 0.0
      %2510 = vmatprep.subr.mxu0 0.0
      %2511 = vmatpush2.msra.mxu0 0.0
      %2512 = vmatprep.subr.mxu0 0.0
      %2513 = vmatpush2.msra.mxu0 0.0
      %2514 = vmatprep.subr.mxu0 0.0
      %2515 = vmatpush2.msra.mxu0 0.0
      %2516 = vmatprep.subr.mxu0 0.0
      %2517 = vmatpush2.msra.mxu0 0.0
      %2518 = vmatprep.mubr.f32.mxu0 0.0
      %2519 = vmatmul.mubr.f32.gmra.mxu0 %v599
      %v2520 = vpop.f32.mrf.mxu0
      %v2521 = vadd.f32 %v2452, %v2520
      %v2522 = vpop.f32.mrf.mxu0
      %2523 = vmatprep.mubr.f32.mxu0 0.0
      %2524 = vmatmul.mubr.f32.gmra.mxu0 %v600
      %v2525 = vpop.f32.mrf.mxu0
      %v2526 = vadd.f32 %v2452, %v2525
      %v2527 = vpop.f32.mrf.mxu0
      %2528 = vmatprep.mubr.f32.mxu0 0.0
      %2529 = vmatmul.mubr.f32.gmra.mxu0 %v601
      %v2530 = vpop.f32.mrf.mxu0
      %v2531 = vadd.f32 %v2452, %v2530
      %v2532 = vpop.f32.mrf.mxu0
      %2533 = vmatprep.mubr.f32.mxu0 0.0
      %2534 = vmatmul.mubr.f32.gmra.mxu0 %v602
      %v2535 = vpop.f32.mrf.mxu0
      %v2536 = vadd.f32 %v2452, %v2535
      %v2537 = vpop.f32.mrf.mxu0
      %2538 = vmatprep.mubr.f32.mxu0 0.0
      %2539 = vmatmul.mubr.f32.gmra.mxu0 %v603
      %v2540 = vpop.f32.mrf.mxu0
      %v2541 = vadd.f32 %v2452, %v2540
      %v2542 = vpop.f32.mrf.mxu0
      %2543 = vmatprep.mubr.f32.mxu0 0.0
      %2544 = vmatmul.mubr.f32.gmra.mxu0 %v604
      %v2545 = vpop.f32.mrf.mxu0
      %v2546 = vadd.f32 %v2452, %v2545
      %v2547 = vpop.f32.mrf.mxu0
      %2548 = vmatprep.mubr.f32.mxu0 0.0
      %2549 = vmatmul.mubr.f32.gmra.mxu0 %v605
      %v2550 = vpop.f32.mrf.mxu0
      %v2551 = vadd.f32 %v2452, %v2550
      %v2552 = vpop.f32.mrf.mxu0
      %2553 = vmatprep.mubr.f32.mxu0 0.0
      %2554 = vmatmul.mubr.f32.gmra.mxu0 %v606
      %v2555 = vpop.f32.mrf.mxu0
      %v2556 = vadd.f32 %v2452, %v2555
      %v2557 = vpop.f32.mrf.mxu0
      %2558 = vmatprep.mubr.f32.mxu0 0.0
      %2559 = vmatmul.mubr.f32.gmra.mxu0 %v607
      %v2560 = vpop.f32.mrf.mxu0
      %v2561 = vadd.f32 %v2452, %v2560
      %v2562 = vpop.f32.mrf.mxu0
      %2563 = vmatprep.mubr.f32.mxu0 0.0
      %2564 = vmatmul.mubr.f32.gmra.mxu0 %v608
      %v2565 = vpop.f32.mrf.mxu0
      %v2566 = vadd.f32 %v2452, %v2565
      %v2567 = vpop.f32.mrf.mxu0
      %2568 = vmatprep.mubr.f32.mxu0 0.0
      %2569 = vmatmul.mubr.f32.gmra.mxu0 %v609
      %v2570 = vpop.f32.mrf.mxu0
      %v2571 = vadd.f32 %v2452, %v2570
      %v2572 = vpop.f32.mrf.mxu0
      %2573 = vmatprep.mubr.f32.mxu0 0.0
      %2574 = vmatmul.mubr.f32.gmra.mxu0 %v610
      %v2575 = vpop.f32.mrf.mxu0
      %v2576 = vadd.f32 %v2452, %v2575
      %v2577 = vpop.f32.mrf.mxu0
      %2578 = vmatprep.mubr.f32.mxu0 0.0
      %2579 = vmatmul.mubr.f32.gmra.mxu0 %v611
      %v2580 = vpop.f32.mrf.mxu0
      %v2581 = vadd.f32 %v2452, %v2580
      %v2582 = vpop.f32.mrf.mxu0
      %2583 = vmatprep.mubr.f32.mxu0 0.0
      %2584 = vmatmul.mubr.f32.gmra.mxu0 %v612
      %v2585 = vpop.f32.mrf.mxu0
      %v2586 = vadd.f32 %v2452, %v2585
      %v2587 = vpop.f32.mrf.mxu0
      %2588 = vmatprep.mubr.f32.mxu0 0.0
      %2589 = vmatmul.mubr.f32.gmra.mxu0 %v613
      %v2590 = vpop.f32.mrf.mxu0
      %v2591 = vadd.f32 %v2452, %v2590
      %v2592 = vpop.f32.mrf.mxu0
      %2593 = vmatprep.mubr.f32.mxu0 0.0
      %2594 = vmatmul.mubr.f32.gmra.mxu0 %v614
      %v2595 = vpop.f32.mrf.mxu0
      %v2596 = vadd.f32 %v2452, %v2595
      %v2597 = vpop.f32.mrf.mxu0
      %2598 = vdwg.mxu0
      %v2599 = vadd.f32 %v2353, %v2521
      %v2600 = vadd.f32 %v2358, %v2526
      %v2601 = vadd.f32 %v2363, %v2531
      %v2602 = vadd.f32 %v2368, %v2536
      %v2603 = vadd.f32 %v2373, %v2541
      %v2604 = vadd.f32 %v2378, %v2546
      %v2605 = vadd.f32 %v2383, %v2551
      %v2606 = vadd.f32 %v2388, %v2556
      %v2607 = vadd.f32 %v2393, %v2561
      %v2608 = vadd.f32 %v2398, %v2566
      %v2609 = vadd.f32 %v2403, %v2571
      %v2610 = vadd.f32 %v2408, %v2576
      %v2611 = vadd.f32 %v2413, %v2581
      %v2612 = vadd.f32 %v2418, %v2586
      %v2613 = vadd.f32 %v2423, %v2591
      %v2614 = vadd.f32 %v2428, %v2596
      %v2615 = vxor.u32 %v2599, 2147483648
      %v2616 = vxor.u32 %v2600, 2147483648
      %v2617 = vxor.u32 %v2601, 2147483648
      %v2618 = vxor.u32 %v2602, 2147483648
      %v2619 = vxor.u32 %v2603, 2147483648
      %v2620 = vxor.u32 %v2604, 2147483648
      %v2621 = vxor.u32 %v2605, 2147483648
      %v2622 = vxor.u32 %v2606, 2147483648
      %v2623 = vxor.u32 %v2607, 2147483648
      %v2624 = vxor.u32 %v2608, 2147483648
      %v2625 = vxor.u32 %v2609, 2147483648
      %v2626 = vxor.u32 %v2610, 2147483648
      %v2627 = vxor.u32 %v2611, 2147483648
      %v2628 = vxor.u32 %v2612, 2147483648
      %v2629 = vxor.u32 %v2613, 2147483648
      %v2630 = vxor.u32 %v2614, 2147483648
      %v2631 = vmul.f32 %v2615, 1.442695
      %v2632 = vpow.pop %v2631
      %v2633 = vmul.f32 %v2616, 1.442695
      %v2634 = vpow.pop %v2633
      %v2635 = vmul.f32 %v2617, 1.442695
      %v2636 = vpow.pop %v2635
      %v2637 = vmul.f32 %v2618, 1.442695
      %v2638 = vpow.pop %v2637
      %v2639 = vmul.f32 %v2619, 1.442695
      %v2640 = vpow.pop %v2639
      %v2641 = vmul.f32 %v2620, 1.442695
      %v2642 = vpow.pop %v2641
      %v2643 = vmul.f32 %v2621, 1.442695
      %v2644 = vpow.pop %v2643
      %v2645 = vmul.f32 %v2622, 1.442695
      %v2646 = vpow.pop %v2645
      %v2647 = vmul.f32 %v2623, 1.442695
      %v2648 = vpow.pop %v2647
      %v2649 = vmul.f32 %v2624, 1.442695
      %v2650 = vpow.pop %v2649
      %v2651 = vmul.f32 %v2625, 1.442695
      %v2652 = vpow.pop %v2651
      %v2653 = vmul.f32 %v2626, 1.442695
      %v2654 = vpow.pop %v2653
      %v2655 = vmul.f32 %v2627, 1.442695
      %v2656 = vpow.pop %v2655
      %v2657 = vmul.f32 %v2628, 1.442695
      %v2658 = vpow.pop %v2657
      %v2659 = vmul.f32 %v2629, 1.442695
      %v2660 = vpow.pop %v2659
      %v2661 = vmul.f32 %v2630, 1.442695
      %v2662 = vpow.pop %v2661
      %v2663 = vadd.f32 %v2632, 1.0
      %v2664 = vadd.f32 %v2634, 1.0
      %v2665 = vadd.f32 %v2636, 1.0
      %v2666 = vadd.f32 %v2638, 1.0
      %v2667 = vadd.f32 %v2640, 1.0
      %v2668 = vadd.f32 %v2642, 1.0
      %v2669 = vadd.f32 %v2644, 1.0
      %v2670 = vadd.f32 %v2646, 1.0
      %v2671 = vadd.f32 %v2648, 1.0
      %v2672 = vadd.f32 %v2650, 1.0
      %v2673 = vadd.f32 %v2652, 1.0
      %v2674 = vadd.f32 %v2654, 1.0
      %v2675 = vadd.f32 %v2656, 1.0
      %v2676 = vadd.f32 %v2658, 1.0
      %v2677 = vadd.f32 %v2660, 1.0
      %v2678 = vadd.f32 %v2662, 1.0
      %v2679 = vrcp.pop %v2663
      %v2680 = vmul.f32 1.0, %v2679
      %v2681 = vrcp.pop %v2664
      %v2682 = vmul.f32 1.0, %v2681
      %v2683 = vrcp.pop %v2665
      %v2684 = vmul.f32 1.0, %v2683
      %v2685 = vrcp.pop %v2666
      %v2686 = vmul.f32 1.0, %v2685
      %v2687 = vrcp.pop %v2667
      %v2688 = vmul.f32 1.0, %v2687
      %v2689 = vrcp.pop %v2668
      %v2690 = vmul.f32 1.0, %v2689
      %v2691 = vrcp.pop %v2669
      %v2692 = vmul.f32 1.0, %v2691
      %v2693 = vrcp.pop %v2670
      %v2694 = vmul.f32 1.0, %v2693
      %v2695 = vrcp.pop %v2671
      %v2696 = vmul.f32 1.0, %v2695
      %v2697 = vrcp.pop %v2672
      %v2698 = vmul.f32 1.0, %v2697
      %v2699 = vrcp.pop %v2673
      %v2700 = vmul.f32 1.0, %v2699
      %v2701 = vrcp.pop %v2674
      %v2702 = vmul.f32 1.0, %v2701
      %v2703 = vrcp.pop %v2675
      %v2704 = vmul.f32 1.0, %v2703
      %v2705 = vrcp.pop %v2676
      %v2706 = vmul.f32 1.0, %v2705
      %v2707 = vrcp.pop %v2677
      %v2708 = vmul.f32 1.0, %v2707
      %v2709 = vrcp.pop %v2678
      %v2710 = vmul.f32 1.0, %v2709
      %v2711 = vld [vmem:[#allocation10 + $0x8] sm:$0xff]
      %v2712 = vld [vmem:[#allocation10 + $0x20] sm:$0xff]
      %v2713 = vld [vmem:[#allocation10 + $0x38] sm:$0xff]
      %v2714 = vld [vmem:[#allocation10 + $0x50] sm:$0xff]
      %v2715 = vld [vmem:[#allocation10 + $0x68] sm:$0xff]
      %v2716 = vld [vmem:[#allocation10 + $0x80] sm:$0xff]
      %v2717 = vld [vmem:[#allocation10 + $0x98] sm:$0xff]
      %v2718 = vld [vmem:[#allocation10 + $0xb0] sm:$0xff]
      %v2719 = vld [vmem:[#allocation10 + $0xc8] sm:$0xff]
      %v2720 = vld [vmem:[#allocation10 + $0xe0] sm:$0xff]
      %v2721 = vld [vmem:[#allocation10 + $0xf8] sm:$0xff]
      %v2722 = vld [vmem:[#allocation10 + $0x110] sm:$0xff]
      %v2723 = vld [vmem:[#allocation10 + $0x128] sm:$0xff]
      %v2724 = vld [vmem:[#allocation10 + $0x140] sm:$0xff]
      %v2725 = vld [vmem:[#allocation10 + $0x158] sm:$0xff]
      %v2726 = vld [vmem:[#allocation10 + $0x170] sm:$0xff]
      %v2727 = vld [vmem:[%s10 + $0x1] sm:$0x1]
      %v2729 = vlaneseq
      %v2730 = vshrl.u32 %v2729, 7
      %v2731 = vsub.s32 0, %v2730
      %v2732 = vrot.slane %v2727, %v2731
      %2734 = vmatprep.subr.mxu0 0.0
      %2735 = vmatpush1.msra.mxu0 %v2726
      %2736 = vmatprep.subr.mxu0 0.0
      %2737 = vmatpush1.msra.mxu0 %v2725
      %2738 = vmatprep.subr.mxu0 0.0
      %2739 = vmatpush1.msra.mxu0 %v2724
      %2740 = vmatprep.subr.mxu0 0.0
      %2741 = vmatpush1.msra.mxu0 %v2723
      %2742 = vmatprep.subr.mxu0 0.0
      %2743 = vmatpush1.msra.mxu0 %v2722
      %2744 = vmatprep.subr.mxu0 0.0
      %2745 = vmatpush1.msra.mxu0 %v2721
      %2746 = vmatprep.subr.mxu0 0.0
      %2747 = vmatpush1.msra.mxu0 %v2720
      %2748 = vmatprep.subr.mxu0 0.0
      %2749 = vmatpush1.msra.mxu0 %v2719
      %2750 = vmatprep.subr.mxu0 0.0
      %2751 = vmatpush1.msra.mxu0 %v2718
      %2752 = vmatprep.subr.mxu0 0.0
      %2753 = vmatpush1.msra.mxu0 %v2717
      %2754 = vmatprep.subr.mxu0 0.0
      %2755 = vmatpush1.msra.mxu0 %v2716
      %2756 = vmatprep.subr.mxu0 0.0
      %2757 = vmatpush1.msra.mxu0 %v2715
      %2758 = vmatprep.subr.mxu0 0.0
      %2759 = vmatpush1.msra.mxu0 %v2714
      %2760 = vmatprep.subr.mxu0 0.0
      %2761 = vmatpush1.msra.mxu0 %v2713
      %2762 = vmatprep.subr.mxu0 0.0
      %2763 = vmatpush1.msra.mxu0 %v2712
      %2764 = vmatprep.subr.mxu0 0.0
      %2765 = vmatpush1.msra.mxu0 %v2711
      %2766 = vmatprep.subr.mxu0 0.0
      %2767 = vmatpush2.msra.mxu0 0.0
      %2768 = vmatprep.subr.mxu0 0.0
      %2769 = vmatpush2.msra.mxu0 0.0
      %2770 = vmatprep.subr.mxu0 0.0
      %2771 = vmatpush2.msra.mxu0 0.0
      %2772 = vmatprep.subr.mxu0 0.0
      %2773 = vmatpush2.msra.mxu0 0.0
      %2774 = vmatprep.subr.mxu0 0.0
      %2775 = vmatpush2.msra.mxu0 0.0
      %2776 = vmatprep.subr.mxu0 0.0
      %2777 = vmatpush2.msra.mxu0 0.0
      %2778 = vmatprep.subr.mxu0 0.0
      %2779 = vmatpush2.msra.mxu0 0.0
      %2780 = vmatprep.subr.mxu0 0.0
      %2781 = vmatpush2.msra.mxu0 0.0
      %2782 = vmatprep.subr.mxu0 0.0
      %2783 = vmatpush2.msra.mxu0 0.0
      %2784 = vmatprep.subr.mxu0 0.0
      %2785 = vmatpush2.msra.mxu0 0.0
      %2786 = vmatprep.subr.mxu0 0.0
      %2787 = vmatpush2.msra.mxu0 0.0
      %2788 = vmatprep.subr.mxu0 0.0
      %2789 = vmatpush2.msra.mxu0 0.0
      %2790 = vmatprep.subr.mxu0 0.0
      %2791 = vmatpush2.msra.mxu0 0.0
      %2792 = vmatprep.subr.mxu0 0.0
      %2793 = vmatpush2.msra.mxu0 0.0
      %2794 = vmatprep.subr.mxu0 0.0
      %2795 = vmatpush2.msra.mxu0 0.0
      %2796 = vmatprep.subr.mxu0 0.0
      %2797 = vmatpush2.msra.mxu0 0.0
      %2798 = vmatprep.mubr.f32.mxu0 0.0
      %2799 = vmatmul.mubr.f32.gmra.mxu0 %v887
      %v2800 = vpop.f32.mrf.mxu0
      %v2801 = vadd.f32 %v2732, %v2800
      %v2802 = vpop.f32.mrf.mxu0
      %2803 = vmatprep.mubr.f32.mxu0 0.0
      %2804 = vmatmul.mubr.f32.gmra.mxu0 %v888
      %v2805 = vpop.f32.mrf.mxu0
      %v2806 = vadd.f32 %v2732, %v2805
      %v2807 = vpop.f32.mrf.mxu0
      %2808 = vmatprep.mubr.f32.mxu0 0.0
      %2809 = vmatmul.mubr.f32.gmra.mxu0 %v889
      %v2810 = vpop.f32.mrf.mxu0
      %v2811 = vadd.f32 %v2732, %v2810
      %v2812 = vpop.f32.mrf.mxu0
      %2813 = vmatprep.mubr.f32.mxu0 0.0
      %2814 = vmatmul.mubr.f32.gmra.mxu0 %v890
      %v2815 = vpop.f32.mrf.mxu0
      %v2816 = vadd.f32 %v2732, %v2815
      %v2817 = vpop.f32.mrf.mxu0
      %2818 = vmatprep.mubr.f32.mxu0 0.0
      %2819 = vmatmul.mubr.f32.gmra.mxu0 %v891
      %v2820 = vpop.f32.mrf.mxu0
      %v2821 = vadd.f32 %v2732, %v2820
      %v2822 = vpop.f32.mrf.mxu0
      %2823 = vmatprep.mubr.f32.mxu0 0.0
      %2824 = vmatmul.mubr.f32.gmra.mxu0 %v892
      %v2825 = vpop.f32.mrf.mxu0
      %v2826 = vadd.f32 %v2732, %v2825
      %v2827 = vpop.f32.mrf.mxu0
      %2828 = vmatprep.mubr.f32.mxu0 0.0
      %2829 = vmatmul.mubr.f32.gmra.mxu0 %v893
      %v2830 = vpop.f32.mrf.mxu0
      %v2831 = vadd.f32 %v2732, %v2830
      %v2832 = vpop.f32.mrf.mxu0
      %2833 = vmatprep.mubr.f32.mxu0 0.0
      %2834 = vmatmul.mubr.f32.gmra.mxu0 %v894
      %v2835 = vpop.f32.mrf.mxu0
      %v2836 = vadd.f32 %v2732, %v2835
      %v2837 = vpop.f32.mrf.mxu0
      %2838 = vmatprep.mubr.f32.mxu0 0.0
      %2839 = vmatmul.mubr.f32.gmra.mxu0 %v895
      %v2840 = vpop.f32.mrf.mxu0
      %v2841 = vadd.f32 %v2732, %v2840
      %v2842 = vpop.f32.mrf.mxu0
      %2843 = vmatprep.mubr.f32.mxu0 0.0
      %2844 = vmatmul.mubr.f32.gmra.mxu0 %v896
      %v2845 = vpop.f32.mrf.mxu0
      %v2846 = vadd.f32 %v2732, %v2845
      %v2847 = vpop.f32.mrf.mxu0
      %2848 = vmatprep.mubr.f32.mxu0 0.0
      %2849 = vmatmul.mubr.f32.gmra.mxu0 %v897
      %v2850 = vpop.f32.mrf.mxu0
      %v2851 = vadd.f32 %v2732, %v2850
      %v2852 = vpop.f32.mrf.mxu0
      %2853 = vmatprep.mubr.f32.mxu0 0.0
      %2854 = vmatmul.mubr.f32.gmra.mxu0 %v898
      %v2855 = vpop.f32.mrf.mxu0
      %v2856 = vadd.f32 %v2732, %v2855
      %v2857 = vpop.f32.mrf.mxu0
      %2858 = vmatprep.mubr.f32.mxu0 0.0
      %2859 = vmatmul.mubr.f32.gmra.mxu0 %v899
      %v2860 = vpop.f32.mrf.mxu0
      %v2861 = vadd.f32 %v2732, %v2860
      %v2862 = vpop.f32.mrf.mxu0
      %2863 = vmatprep.mubr.f32.mxu0 0.0
      %2864 = vmatmul.mubr.f32.gmra.mxu0 %v900
      %v2865 = vpop.f32.mrf.mxu0
      %v2866 = vadd.f32 %v2732, %v2865
      %v2867 = vpop.f32.mrf.mxu0
      %2868 = vmatprep.mubr.f32.mxu0 0.0
      %2869 = vmatmul.mubr.f32.gmra.mxu0 %v901
      %v2870 = vpop.f32.mrf.mxu0
      %v2871 = vadd.f32 %v2732, %v2870
      %v2872 = vpop.f32.mrf.mxu0
      %2873 = vmatprep.mubr.f32.mxu0 0.0
      %2874 = vmatmul.mubr.f32.gmra.mxu0 %v902
      %v2875 = vpop.f32.mrf.mxu0
      %v2876 = vadd.f32 %v2732, %v2875
      %v2877 = vpop.f32.mrf.mxu0
      %2878 = vdwg.mxu0
      %v2879 = vld [vmem:[#allocation12 + $0x20] sm:$0xff]
      %v2880 = vld [vmem:[#allocation12 + $0x50] sm:$0xff]
      %v2881 = vld [vmem:[#allocation12 + $0x80] sm:$0xff]
      %v2882 = vld [vmem:[#allocation12 + $0xb0] sm:$0xff]
      %v2883 = vld [vmem:[#allocation12 + $0xe0] sm:$0xff]
      %v2884 = vld [vmem:[#allocation12 + $0x110] sm:$0xff]
      %v2885 = vld [vmem:[#allocation12 + $0x140] sm:$0xff]
      %v2886 = vld [vmem:[#allocation12 + $0x170] sm:$0xff]
      %v2887 = vld [vmem:[#allocation12 + $0x1a0] sm:$0xff]
      %v2888 = vld [vmem:[#allocation12 + $0x1d0] sm:$0xff]
      %v2889 = vld [vmem:[#allocation12 + $0x200] sm:$0xff]
      %v2890 = vld [vmem:[#allocation12 + $0x230] sm:$0xff]
      %v2891 = vld [vmem:[#allocation12 + $0x260] sm:$0xff]
      %v2892 = vld [vmem:[#allocation12 + $0x290] sm:$0xff]
      %v2893 = vld [vmem:[#allocation12 + $0x2c0] sm:$0xff]
      %v2894 = vld [vmem:[#allocation12 + $0x2f0] sm:$0xff]
      %v2895 = vld [vmem:[%s11 + $0x4] sm:$0x1]
      %v2897 = vlaneseq
      %v2898 = vshrl.u32 %v2897, 7
      %v2899 = vsub.s32 0, %v2898
      %v2900 = vrot.slane %v2895, %v2899
      %2902 = vmatprep.subr.mxu0 0.0
      %2903 = vmatpush1.msra.mxu0 %v2894
      %2904 = vmatprep.subr.mxu0 0.0
      %2905 = vmatpush1.msra.mxu0 %v2893
      %2906 = vmatprep.subr.mxu0 0.0
      %2907 = vmatpush1.msra.mxu0 %v2892
      %2908 = vmatprep.subr.mxu0 0.0
      %2909 = vmatpush1.msra.mxu0 %v2891
      %2910 = vmatprep.subr.mxu0 0.0
      %2911 = vmatpush1.msra.mxu0 %v2890
      %2912 = vmatprep.subr.mxu0 0.0
      %2913 = vmatpush1.msra.mxu0 %v2889
      %2914 = vmatprep.subr.mxu0 0.0
      %2915 = vmatpush1.msra.mxu0 %v2888
      %2916 = vmatprep.subr.mxu0 0.0
      %2917 = vmatpush1.msra.mxu0 %v2887
      %2918 = vmatprep.subr.mxu0 0.0
      %2919 = vmatpush1.msra.mxu0 %v2886
      %2920 = vmatprep.subr.mxu0 0.0
      %2921 = vmatpush1.msra.mxu0 %v2885
      %2922 = vmatprep.subr.mxu0 0.0
      %2923 = vmatpush1.msra.mxu0 %v2884
      %2924 = vmatprep.subr.mxu0 0.0
      %2925 = vmatpush1.msra.mxu0 %v2883
      %2926 = vmatprep.subr.mxu0 0.0
      %2927 = vmatpush1.msra.mxu0 %v2882
      %2928 = vmatprep.subr.mxu0 0.0
      %2929 = vmatpush1.msra.mxu0 %v2881
      %2930 = vmatprep.subr.mxu0 0.0
      %2931 = vmatpush1.msra.mxu0 %v2880
      %2932 = vmatprep.subr.mxu0 0.0
      %2933 = vmatpush1.msra.mxu0 %v2879
      %2934 = vmatprep.subr.mxu0 0.0
      %2935 = vmatpush2.msra.mxu0 0.0
      %2936 = vmatprep.subr.mxu0 0.0
      %2937 = vmatpush2.msra.mxu0 0.0
      %2938 = vmatprep.subr.mxu0 0.0
      %2939 = vmatpush2.msra.mxu0 0.0
      %2940 = vmatprep.subr.mxu0 0.0
      %2941 = vmatpush2.msra.mxu0 0.0
      %2942 = vmatprep.subr.mxu0 0.0
      %2943 = vmatpush2.msra.mxu0 0.0
      %2944 = vmatprep.subr.mxu0 0.0
      %2945 = vmatpush2.msra.mxu0 0.0
      %2946 = vmatprep.subr.mxu0 0.0
      %2947 = vmatpush2.msra.mxu0 0.0
      %2948 = vmatprep.subr.mxu0 0.0
      %2949 = vmatpush2.msra.mxu0 0.0
      %2950 = vmatprep.subr.mxu0 0.0
      %2951 = vmatpush2.msra.mxu0 0.0
      %2952 = vmatprep.subr.mxu0 0.0
      %2953 = vmatpush2.msra.mxu0 0.0
      %2954 = vmatprep.subr.mxu0 0.0
      %2955 = vmatpush2.msra.mxu0 0.0
      %2956 = vmatprep.subr.mxu0 0.0
      %2957 = vmatpush2.msra.mxu0 0.0
      %2958 = vmatprep.subr.mxu0 0.0
      %2959 = vmatpush2.msra.mxu0 0.0
      %2960 = vmatprep.subr.mxu0 0.0
      %2961 = vmatpush2.msra.mxu0 0.0
      %2962 = vmatprep.subr.mxu0 0.0
      %2963 = vmatpush2.msra.mxu0 0.0
      %2964 = vmatprep.subr.mxu0 0.0
      %2965 = vmatpush2.msra.mxu0 0.0
      %2966 = vmatprep.mubr.f32.mxu0 0.0
      %2967 = vmatmul.mubr.f32.gmra.mxu0 %v599
      %v2968 = vpop.f32.mrf.mxu0
      %v2969 = vadd.f32 %v2900, %v2968
      %v2970 = vpop.f32.mrf.mxu0
      %2971 = vmatprep.mubr.f32.mxu0 0.0
      %2972 = vmatmul.mubr.f32.gmra.mxu0 %v600
      %v2973 = vpop.f32.mrf.mxu0
      %v2974 = vadd.f32 %v2900, %v2973
      %v2975 = vpop.f32.mrf.mxu0
      %2976 = vmatprep.mubr.f32.mxu0 0.0
      %2977 = vmatmul.mubr.f32.gmra.mxu0 %v601
      %v2978 = vpop.f32.mrf.mxu0
      %v2979 = vadd.f32 %v2900, %v2978
      %v2980 = vpop.f32.mrf.mxu0
      %2981 = vmatprep.mubr.f32.mxu0 0.0
      %2982 = vmatmul.mubr.f32.gmra.mxu0 %v602
      %v2983 = vpop.f32.mrf.mxu0
      %v2984 = vadd.f32 %v2900, %v2983
      %v2985 = vpop.f32.mrf.mxu0
      %2986 = vmatprep.mubr.f32.mxu0 0.0
      %2987 = vmatmul.mubr.f32.gmra.mxu0 %v603
      %v2988 = vpop.f32.mrf.mxu0
      %v2989 = vadd.f32 %v2900, %v2988
      %v2990 = vpop.f32.mrf.mxu0
      %2991 = vmatprep.mubr.f32.mxu0 0.0
      %2992 = vmatmul.mubr.f32.gmra.mxu0 %v604
      %v2993 = vpop.f32.mrf.mxu0
      %v2994 = vadd.f32 %v2900, %v2993
      %v2995 = vpop.f32.mrf.mxu0
      %2996 = vmatprep.mubr.f32.mxu0 0.0
      %2997 = vmatmul.mubr.f32.gmra.mxu0 %v605
      %v2998 = vpop.f32.mrf.mxu0
      %v2999 = vadd.f32 %v2900, %v2998
      %v3000 = vpop.f32.mrf.mxu0
      %3001 = vmatprep.mubr.f32.mxu0 0.0
      %3002 = vmatmul.mubr.f32.gmra.mxu0 %v606
      %v3003 = vpop.f32.mrf.mxu0
      %v3004 = vadd.f32 %v2900, %v3003
      %v3005 = vpop.f32.mrf.mxu0
      %3006 = vmatprep.mubr.f32.mxu0 0.0
      %3007 = vmatmul.mubr.f32.gmra.mxu0 %v607
      %v3008 = vpop.f32.mrf.mxu0
      %v3009 = vadd.f32 %v2900, %v3008
      %v3010 = vpop.f32.mrf.mxu0
      %3011 = vmatprep.mubr.f32.mxu0 0.0
      %3012 = vmatmul.mubr.f32.gmra.mxu0 %v608
      %v3013 = vpop.f32.mrf.mxu0
      %v3014 = vadd.f32 %v2900, %v3013
      %v3015 = vpop.f32.mrf.mxu0
      %3016 = vmatprep.mubr.f32.mxu0 0.0
      %3017 = vmatmul.mubr.f32.gmra.mxu0 %v609
      %v3018 = vpop.f32.mrf.mxu0
      %v3019 = vadd.f32 %v2900, %v3018
      %v3020 = vpop.f32.mrf.mxu0
      %3021 = vmatprep.mubr.f32.mxu0 0.0
      %3022 = vmatmul.mubr.f32.gmra.mxu0 %v610
      %v3023 = vpop.f32.mrf.mxu0
      %v3024 = vadd.f32 %v2900, %v3023
      %v3025 = vpop.f32.mrf.mxu0
      %3026 = vmatprep.mubr.f32.mxu0 0.0
      %3027 = vmatmul.mubr.f32.gmra.mxu0 %v611
      %v3028 = vpop.f32.mrf.mxu0
      %v3029 = vadd.f32 %v2900, %v3028
      %v3030 = vpop.f32.mrf.mxu0
      %3031 = vmatprep.mubr.f32.mxu0 0.0
      %3032 = vmatmul.mubr.f32.gmra.mxu0 %v612
      %v3033 = vpop.f32.mrf.mxu0
      %v3034 = vadd.f32 %v2900, %v3033
      %v3035 = vpop.f32.mrf.mxu0
      %3036 = vmatprep.mubr.f32.mxu0 0.0
      %3037 = vmatmul.mubr.f32.gmra.mxu0 %v613
      %v3038 = vpop.f32.mrf.mxu0
      %v3039 = vadd.f32 %v2900, %v3038
      %v3040 = vpop.f32.mrf.mxu0
      %3041 = vmatprep.mubr.f32.mxu0 0.0
      %3042 = vmatmul.mubr.f32.gmra.mxu0 %v614
      %v3043 = vpop.f32.mrf.mxu0
      %v3044 = vadd.f32 %v2900, %v3043
      %v3045 = vpop.f32.mrf.mxu0
      %3046 = vdwg.mxu0
      %v3047 = vadd.f32 %v2801, %v2969
      %v3048 = vadd.f32 %v2806, %v2974
      %v3049 = vadd.f32 %v2811, %v2979
      %v3050 = vadd.f32 %v2816, %v2984
      %v3051 = vadd.f32 %v2821, %v2989
      %v3052 = vadd.f32 %v2826, %v2994
      %v3053 = vadd.f32 %v2831, %v2999
      %v3054 = vadd.f32 %v2836, %v3004
      %v3055 = vadd.f32 %v2841, %v3009
      %v3056 = vadd.f32 %v2846, %v3014
      %v3057 = vadd.f32 %v2851, %v3019
      %v3058 = vadd.f32 %v2856, %v3024
      %v3059 = vadd.f32 %v2861, %v3029
      %v3060 = vadd.f32 %v2866, %v3034
      %v3061 = vadd.f32 %v2871, %v3039
      %v3062 = vadd.f32 %v2876, %v3044
      %v3063 = vxor.u32 %v3047, 2147483648
      %v3064 = vxor.u32 %v3048, 2147483648
      %v3065 = vxor.u32 %v3049, 2147483648
      %v3066 = vxor.u32 %v3050, 2147483648
      %v3067 = vxor.u32 %v3051, 2147483648
      %v3068 = vxor.u32 %v3052, 2147483648
      %v3069 = vxor.u32 %v3053, 2147483648
      %v3070 = vxor.u32 %v3054, 2147483648
      %v3071 = vxor.u32 %v3055, 2147483648
      %v3072 = vxor.u32 %v3056, 2147483648
      %v3073 = vxor.u32 %v3057, 2147483648
      %v3074 = vxor.u32 %v3058, 2147483648
      %v3075 = vxor.u32 %v3059, 2147483648
      %v3076 = vxor.u32 %v3060, 2147483648
      %v3077 = vxor.u32 %v3061, 2147483648
      %v3078 = vxor.u32 %v3062, 2147483648
      %v3079 = vmul.f32 %v3063, 1.442695
      %v3080 = vpow.pop %v3079
      %v3081 = vmul.f32 %v3064, 1.442695
      %v3082 = vpow.pop %v3081
      %v3083 = vmul.f32 %v3065, 1.442695
      %v3084 = vpow.pop %v3083
      %v3085 = vmul.f32 %v3066, 1.442695
      %v3086 = vpow.pop %v3085
      %v3087 = vmul.f32 %v3067, 1.442695
      %v3088 = vpow.pop %v3087
      %v3089 = vmul.f32 %v3068, 1.442695
      %v3090 = vpow.pop %v3089
      %v3091 = vmul.f32 %v3069, 1.442695
      %v3092 = vpow.pop %v3091
      %v3093 = vmul.f32 %v3070, 1.442695
      %v3094 = vpow.pop %v3093
      %v3095 = vmul.f32 %v3071, 1.442695
      %v3096 = vpow.pop %v3095
      %v3097 = vmul.f32 %v3072, 1.442695
      %v3098 = vpow.pop %v3097
      %v3099 = vmul.f32 %v3073, 1.442695
      %v3100 = vpow.pop %v3099
      %v3101 = vmul.f32 %v3074, 1.442695
      %v3102 = vpow.pop %v3101
      %v3103 = vmul.f32 %v3075, 1.442695
      %v3104 = vpow.pop %v3103
      %v3105 = vmul.f32 %v3076, 1.442695
      %v3106 = vpow.pop %v3105
      %v3107 = vmul.f32 %v3077, 1.442695
      %v3108 = vpow.pop %v3107
      %v3109 = vmul.f32 %v3078, 1.442695
      %v3110 = vpow.pop %v3109
      %v3111 = vadd.f32 %v3080, 1.0
      %v3112 = vadd.f32 %v3082, 1.0
      %v3113 = vadd.f32 %v3084, 1.0
      %v3114 = vadd.f32 %v3086, 1.0
      %v3115 = vadd.f32 %v3088, 1.0
      %v3116 = vadd.f32 %v3090, 1.0
      %v3117 = vadd.f32 %v3092, 1.0
      %v3118 = vadd.f32 %v3094, 1.0
      %v3119 = vadd.f32 %v3096, 1.0
      %v3120 = vadd.f32 %v3098, 1.0
      %v3121 = vadd.f32 %v3100, 1.0
      %v3122 = vadd.f32 %v3102, 1.0
      %v3123 = vadd.f32 %v3104, 1.0
      %v3124 = vadd.f32 %v3106, 1.0
      %v3125 = vadd.f32 %v3108, 1.0
      %v3126 = vadd.f32 %v3110, 1.0
      %v3127 = vrcp.pop %v3111
      %v3128 = vmul.f32 1.0, %v3127
      %v3129 = vrcp.pop %v3112
      %v3130 = vmul.f32 1.0, %v3129
      %v3131 = vrcp.pop %v3113
      %v3132 = vmul.f32 1.0, %v3131
      %v3133 = vrcp.pop %v3114
      %v3134 = vmul.f32 1.0, %v3133
      %v3135 = vrcp.pop %v3115
      %v3136 = vmul.f32 1.0, %v3135
      %v3137 = vrcp.pop %v3116
      %v3138 = vmul.f32 1.0, %v3137
      %v3139 = vrcp.pop %v3117
      %v3140 = vmul.f32 1.0, %v3139
      %v3141 = vrcp.pop %v3118
      %v3142 = vmul.f32 1.0, %v3141
      %v3143 = vrcp.pop %v3119
      %v3144 = vmul.f32 1.0, %v3143
      %v3145 = vrcp.pop %v3120
      %v3146 = vmul.f32 1.0, %v3145
      %v3147 = vrcp.pop %v3121
      %v3148 = vmul.f32 1.0, %v3147
      %v3149 = vrcp.pop %v3122
      %v3150 = vmul.f32 1.0, %v3149
      %v3151 = vrcp.pop %v3123
      %v3152 = vmul.f32 1.0, %v3151
      %v3153 = vrcp.pop %v3124
      %v3154 = vmul.f32 1.0, %v3153
      %v3155 = vrcp.pop %v3125
      %v3156 = vmul.f32 1.0, %v3155
      %v3157 = vrcp.pop %v3126
      %v3158 = vmul.f32 1.0, %v3157
      %v3159 = vld [vmem:[#allocation10 + $0x10] sm:$0xff]
      %v3160 = vld [vmem:[#allocation10 + $0x28] sm:$0xff]
      %v3161 = vld [vmem:[#allocation10 + $0x40] sm:$0xff]
      %v3162 = vld [vmem:[#allocation10 + $0x58] sm:$0xff]
      %v3163 = vld [vmem:[#allocation10 + $0x70] sm:$0xff]
      %v3164 = vld [vmem:[#allocation10 + $0x88] sm:$0xff]
      %v3165 = vld [vmem:[#allocation10 + $0xa0] sm:$0xff]
      %v3166 = vld [vmem:[#allocation10 + $0xb8] sm:$0xff]
      %v3167 = vld [vmem:[#allocation10 + $0xd0] sm:$0xff]
      %v3168 = vld [vmem:[#allocation10 + $0xe8] sm:$0xff]
      %v3169 = vld [vmem:[#allocation10 + $0x100] sm:$0xff]
      %v3170 = vld [vmem:[#allocation10 + $0x118] sm:$0xff]
      %v3171 = vld [vmem:[#allocation10 + $0x130] sm:$0xff]
      %v3172 = vld [vmem:[#allocation10 + $0x148] sm:$0xff]
      %v3173 = vld [vmem:[#allocation10 + $0x160] sm:$0xff]
      %v3174 = vld [vmem:[#allocation10 + $0x178] sm:$0xff]
      %v3175 = vld [vmem:[%s10 + $0x2] sm:$0x1]
      %v3177 = vlaneseq
      %v3178 = vshrl.u32 %v3177, 7
      %v3179 = vsub.s32 0, %v3178
      %v3180 = vrot.slane %v3175, %v3179
      %3182 = vmatprep.subr.mxu0 0.0
      %3183 = vmatpush1.msra.mxu0 %v3174
      %3184 = vmatprep.subr.mxu0 0.0
      %3185 = vmatpush1.msra.mxu0 %v3173
      %3186 = vmatprep.subr.mxu0 0.0
      %3187 = vmatpush1.msra.mxu0 %v3172
      %3188 = vmatprep.subr.mxu0 0.0
      %3189 = vmatpush1.msra.mxu0 %v3171
      %3190 = vmatprep.subr.mxu0 0.0
      %3191 = vmatpush1.msra.mxu0 %v3170
      %3192 = vmatprep.subr.mxu0 0.0
      %3193 = vmatpush1.msra.mxu0 %v3169
      %3194 = vmatprep.subr.mxu0 0.0
      %3195 = vmatpush1.msra.mxu0 %v3168
      %3196 = vmatprep.subr.mxu0 0.0
      %3197 = vmatpush1.msra.mxu0 %v3167
      %3198 = vmatprep.subr.mxu0 0.0
      %3199 = vmatpush1.msra.mxu0 %v3166
      %3200 = vmatprep.subr.mxu0 0.0
      %3201 = vmatpush1.msra.mxu0 %v3165
      %3202 = vmatprep.subr.mxu0 0.0
      %3203 = vmatpush1.msra.mxu0 %v3164
      %3204 = vmatprep.subr.mxu0 0.0
      %3205 = vmatpush1.msra.mxu0 %v3163
      %3206 = vmatprep.subr.mxu0 0.0
      %3207 = vmatpush1.msra.mxu0 %v3162
      %3208 = vmatprep.subr.mxu0 0.0
      %3209 = vmatpush1.msra.mxu0 %v3161
      %3210 = vmatprep.subr.mxu0 0.0
      %3211 = vmatpush1.msra.mxu0 %v3160
      %3212 = vmatprep.subr.mxu0 0.0
      %3213 = vmatpush1.msra.mxu0 %v3159
      %3214 = vmatprep.subr.mxu0 0.0
      %3215 = vmatpush2.msra.mxu0 0.0
      %3216 = vmatprep.subr.mxu0 0.0
      %3217 = vmatpush2.msra.mxu0 0.0
      %3218 = vmatprep.subr.mxu0 0.0
      %3219 = vmatpush2.msra.mxu0 0.0
      %3220 = vmatprep.subr.mxu0 0.0
      %3221 = vmatpush2.msra.mxu0 0.0
      %3222 = vmatprep.subr.mxu0 0.0
      %3223 = vmatpush2.msra.mxu0 0.0
      %3224 = vmatprep.subr.mxu0 0.0
      %3225 = vmatpush2.msra.mxu0 0.0
      %3226 = vmatprep.subr.mxu0 0.0
      %3227 = vmatpush2.msra.mxu0 0.0
      %3228 = vmatprep.subr.mxu0 0.0
      %3229 = vmatpush2.msra.mxu0 0.0
      %3230 = vmatprep.subr.mxu0 0.0
      %3231 = vmatpush2.msra.mxu0 0.0
      %3232 = vmatprep.subr.mxu0 0.0
      %3233 = vmatpush2.msra.mxu0 0.0
      %3234 = vmatprep.subr.mxu0 0.0
      %3235 = vmatpush2.msra.mxu0 0.0
      %3236 = vmatprep.subr.mxu0 0.0
      %3237 = vmatpush2.msra.mxu0 0.0
      %3238 = vmatprep.subr.mxu0 0.0
      %3239 = vmatpush2.msra.mxu0 0.0
      %3240 = vmatprep.subr.mxu0 0.0
      %3241 = vmatpush2.msra.mxu0 0.0
      %3242 = vmatprep.subr.mxu0 0.0
      %3243 = vmatpush2.msra.mxu0 0.0
      %3244 = vmatprep.subr.mxu0 0.0
      %3245 = vmatpush2.msra.mxu0 0.0
      %3246 = vmatprep.mubr.f32.mxu0 0.0
      %3247 = vmatmul.mubr.f32.gmra.mxu0 %v887
      %v3248 = vpop.f32.mrf.mxu0
      %v3249 = vadd.f32 %v3180, %v3248
      %v3250 = vpop.f32.mrf.mxu0
      %3251 = vmatprep.mubr.f32.mxu0 0.0
      %3252 = vmatmul.mubr.f32.gmra.mxu0 %v888
      %v3253 = vpop.f32.mrf.mxu0
      %v3254 = vadd.f32 %v3180, %v3253
      %v3255 = vpop.f32.mrf.mxu0
      %3256 = vmatprep.mubr.f32.mxu0 0.0
      %3257 = vmatmul.mubr.f32.gmra.mxu0 %v889
      %v3258 = vpop.f32.mrf.mxu0
      %v3259 = vadd.f32 %v3180, %v3258
      %v3260 = vpop.f32.mrf.mxu0
      %3261 = vmatprep.mubr.f32.mxu0 0.0
      %3262 = vmatmul.mubr.f32.gmra.mxu0 %v890
      %v3263 = vpop.f32.mrf.mxu0
      %v3264 = vadd.f32 %v3180, %v3263
      %v3265 = vpop.f32.mrf.mxu0
      %3266 = vmatprep.mubr.f32.mxu0 0.0
      %3267 = vmatmul.mubr.f32.gmra.mxu0 %v891
      %v3268 = vpop.f32.mrf.mxu0
      %v3269 = vadd.f32 %v3180, %v3268
      %v3270 = vpop.f32.mrf.mxu0
      %3271 = vmatprep.mubr.f32.mxu0 0.0
      %3272 = vmatmul.mubr.f32.gmra.mxu0 %v892
      %v3273 = vpop.f32.mrf.mxu0
      %v3274 = vadd.f32 %v3180, %v3273
      %v3275 = vpop.f32.mrf.mxu0
      %3276 = vmatprep.mubr.f32.mxu0 0.0
      %3277 = vmatmul.mubr.f32.gmra.mxu0 %v893
      %v3278 = vpop.f32.mrf.mxu0
      %v3279 = vadd.f32 %v3180, %v3278
      %v3280 = vpop.f32.mrf.mxu0
      %3281 = vmatprep.mubr.f32.mxu0 0.0
      %3282 = vmatmul.mubr.f32.gmra.mxu0 %v894
      %v3283 = vpop.f32.mrf.mxu0
      %v3284 = vadd.f32 %v3180, %v3283
      %v3285 = vpop.f32.mrf.mxu0
      %3286 = vmatprep.mubr.f32.mxu0 0.0
      %3287 = vmatmul.mubr.f32.gmra.mxu0 %v895
      %v3288 = vpop.f32.mrf.mxu0
      %v3289 = vadd.f32 %v3180, %v3288
      %v3290 = vpop.f32.mrf.mxu0
      %3291 = vmatprep.mubr.f32.mxu0 0.0
      %3292 = vmatmul.mubr.f32.gmra.mxu0 %v896
      %v3293 = vpop.f32.mrf.mxu0
      %v3294 = vadd.f32 %v3180, %v3293
      %v3295 = vpop.f32.mrf.mxu0
      %3296 = vmatprep.mubr.f32.mxu0 0.0
      %3297 = vmatmul.mubr.f32.gmra.mxu0 %v897
      %v3298 = vpop.f32.mrf.mxu0
      %v3299 = vadd.f32 %v3180, %v3298
      %v3300 = vpop.f32.mrf.mxu0
      %3301 = vmatprep.mubr.f32.mxu0 0.0
      %3302 = vmatmul.mubr.f32.gmra.mxu0 %v898
      %v3303 = vpop.f32.mrf.mxu0
      %v3304 = vadd.f32 %v3180, %v3303
      %v3305 = vpop.f32.mrf.mxu0
      %3306 = vmatprep.mubr.f32.mxu0 0.0
      %3307 = vmatmul.mubr.f32.gmra.mxu0 %v899
      %v3308 = vpop.f32.mrf.mxu0
      %v3309 = vadd.f32 %v3180, %v3308
      %v3310 = vpop.f32.mrf.mxu0
      %3311 = vmatprep.mubr.f32.mxu0 0.0
      %3312 = vmatmul.mubr.f32.gmra.mxu0 %v900
      %v3313 = vpop.f32.mrf.mxu0
      %v3314 = vadd.f32 %v3180, %v3313
      %v3315 = vpop.f32.mrf.mxu0
      %3316 = vmatprep.mubr.f32.mxu0 0.0
      %3317 = vmatmul.mubr.f32.gmra.mxu0 %v901
      %v3318 = vpop.f32.mrf.mxu0
      %v3319 = vadd.f32 %v3180, %v3318
      %v3320 = vpop.f32.mrf.mxu0
      %3321 = vmatprep.mubr.f32.mxu0 0.0
      %3322 = vmatmul.mubr.f32.gmra.mxu0 %v902
      %v3323 = vpop.f32.mrf.mxu0
      %v3324 = vadd.f32 %v3180, %v3323
      %v3325 = vpop.f32.mrf.mxu0
      %3326 = vdwg.mxu0
      %v3327 = vld [vmem:[#allocation12 + $0x28] sm:$0xff]
      %v3328 = vld [vmem:[#allocation12 + $0x58] sm:$0xff]
      %v3329 = vld [vmem:[#allocation12 + $0x88] sm:$0xff]
      %v3330 = vld [vmem:[#allocation12 + $0xb8] sm:$0xff]
      %v3331 = vld [vmem:[#allocation12 + $0xe8] sm:$0xff]
      %v3332 = vld [vmem:[#allocation12 + $0x118] sm:$0xff]
      %v3333 = vld [vmem:[#allocation12 + $0x148] sm:$0xff]
      %v3334 = vld [vmem:[#allocation12 + $0x178] sm:$0xff]
      %v3335 = vld [vmem:[#allocation12 + $0x1a8] sm:$0xff]
      %v3336 = vld [vmem:[#allocation12 + $0x1d8] sm:$0xff]
      %v3337 = vld [vmem:[#allocation12 + $0x208] sm:$0xff]
      %v3338 = vld [vmem:[#allocation12 + $0x238] sm:$0xff]
      %v3339 = vld [vmem:[#allocation12 + $0x268] sm:$0xff]
      %v3340 = vld [vmem:[#allocation12 + $0x298] sm:$0xff]
      %v3341 = vld [vmem:[#allocation12 + $0x2c8] sm:$0xff]
      %v3342 = vld [vmem:[#allocation12 + $0x2f8] sm:$0xff]
      %v3343 = vld [vmem:[%s11 + $0x5] sm:$0x1]
      %v3345 = vlaneseq
      %v3346 = vshrl.u32 %v3345, 7
      %v3347 = vsub.s32 0, %v3346
      %v3348 = vrot.slane %v3343, %v3347
      %3350 = vmatprep.subr.mxu0 0.0
      %3351 = vmatpush1.msra.mxu0 %v3342
      %3352 = vmatprep.subr.mxu0 0.0
      %3353 = vmatpush1.msra.mxu0 %v3341
      %3354 = vmatprep.subr.mxu0 0.0
      %3355 = vmatpush1.msra.mxu0 %v3340
      %3356 = vmatprep.subr.mxu0 0.0
      %3357 = vmatpush1.msra.mxu0 %v3339
      %3358 = vmatprep.subr.mxu0 0.0
      %3359 = vmatpush1.msra.mxu0 %v3338
      %3360 = vmatprep.subr.mxu0 0.0
      %3361 = vmatpush1.msra.mxu0 %v3337
      %3362 = vmatprep.subr.mxu0 0.0
      %3363 = vmatpush1.msra.mxu0 %v3336
      %3364 = vmatprep.subr.mxu0 0.0
      %3365 = vmatpush1.msra.mxu0 %v3335
      %3366 = vmatprep.subr.mxu0 0.0
      %3367 = vmatpush1.msra.mxu0 %v3334
      %3368 = vmatprep.subr.mxu0 0.0
      %3369 = vmatpush1.msra.mxu0 %v3333
      %3370 = vmatprep.subr.mxu0 0.0
      %3371 = vmatpush1.msra.mxu0 %v3332
      %3372 = vmatprep.subr.mxu0 0.0
      %3373 = vmatpush1.msra.mxu0 %v3331
      %3374 = vmatprep.subr.mxu0 0.0
      %3375 = vmatpush1.msra.mxu0 %v3330
      %3376 = vmatprep.subr.mxu0 0.0
      %3377 = vmatpush1.msra.mxu0 %v3329
      %3378 = vmatprep.subr.mxu0 0.0
      %3379 = vmatpush1.msra.mxu0 %v3328
      %3380 = vmatprep.subr.mxu0 0.0
      %3381 = vmatpush1.msra.mxu0 %v3327
      %3382 = vmatprep.subr.mxu0 0.0
      %3383 = vmatpush2.msra.mxu0 0.0
      %3384 = vmatprep.subr.mxu0 0.0
      %3385 = vmatpush2.msra.mxu0 0.0
      %3386 = vmatprep.subr.mxu0 0.0
      %3387 = vmatpush2.msra.mxu0 0.0
      %3388 = vmatprep.subr.mxu0 0.0
      %3389 = vmatpush2.msra.mxu0 0.0
      %3390 = vmatprep.subr.mxu0 0.0
      %3391 = vmatpush2.msra.mxu0 0.0
      %3392 = vmatprep.subr.mxu0 0.0
      %3393 = vmatpush2.msra.mxu0 0.0
      %3394 = vmatprep.subr.mxu0 0.0
      %3395 = vmatpush2.msra.mxu0 0.0
      %3396 = vmatprep.subr.mxu0 0.0
      %3397 = vmatpush2.msra.mxu0 0.0
      %3398 = vmatprep.subr.mxu0 0.0
      %3399 = vmatpush2.msra.mxu0 0.0
      %3400 = vmatprep.subr.mxu0 0.0
      %3401 = vmatpush2.msra.mxu0 0.0
      %3402 = vmatprep.subr.mxu0 0.0
      %3403 = vmatpush2.msra.mxu0 0.0
      %3404 = vmatprep.subr.mxu0 0.0
      %3405 = vmatpush2.msra.mxu0 0.0
      %3406 = vmatprep.subr.mxu0 0.0
      %3407 = vmatpush2.msra.mxu0 0.0
      %3408 = vmatprep.subr.mxu0 0.0
      %3409 = vmatpush2.msra.mxu0 0.0
      %3410 = vmatprep.subr.mxu0 0.0
      %3411 = vmatpush2.msra.mxu0 0.0
      %3412 = vmatprep.subr.mxu0 0.0
      %3413 = vmatpush2.msra.mxu0 0.0
      %3414 = vmatprep.mubr.f32.mxu0 0.0
      %3415 = vmatmul.mubr.f32.gmra.mxu0 %v599
      %v3416 = vpop.f32.mrf.mxu0
      %v3417 = vadd.f32 %v3348, %v3416
      %v3418 = vpop.f32.mrf.mxu0
      %3419 = vmatprep.mubr.f32.mxu0 0.0
      %3420 = vmatmul.mubr.f32.gmra.mxu0 %v600
      %v3421 = vpop.f32.mrf.mxu0
      %v3422 = vadd.f32 %v3348, %v3421
      %v3423 = vpop.f32.mrf.mxu0
      %3424 = vmatprep.mubr.f32.mxu0 0.0
      %3425 = vmatmul.mubr.f32.gmra.mxu0 %v601
      %v3426 = vpop.f32.mrf.mxu0
      %v3427 = vadd.f32 %v3348, %v3426
      %v3428 = vpop.f32.mrf.mxu0
      %3429 = vmatprep.mubr.f32.mxu0 0.0
      %3430 = vmatmul.mubr.f32.gmra.mxu0 %v602
      %v3431 = vpop.f32.mrf.mxu0
      %v3432 = vadd.f32 %v3348, %v3431
      %v3433 = vpop.f32.mrf.mxu0
      %3434 = vmatprep.mubr.f32.mxu0 0.0
      %3435 = vmatmul.mubr.f32.gmra.mxu0 %v603
      %v3436 = vpop.f32.mrf.mxu0
      %v3437 = vadd.f32 %v3348, %v3436
      %v3438 = vpop.f32.mrf.mxu0
      %3439 = vmatprep.mubr.f32.mxu0 0.0
      %3440 = vmatmul.mubr.f32.gmra.mxu0 %v604
      %v3441 = vpop.f32.mrf.mxu0
      %v3442 = vadd.f32 %v3348, %v3441
      %v3443 = vpop.f32.mrf.mxu0
      %3444 = vmatprep.mubr.f32.mxu0 0.0
      %3445 = vmatmul.mubr.f32.gmra.mxu0 %v605
      %v3446 = vpop.f32.mrf.mxu0
      %v3447 = vadd.f32 %v3348, %v3446
      %v3448 = vpop.f32.mrf.mxu0
      %3449 = vmatprep.mubr.f32.mxu0 0.0
      %3450 = vmatmul.mubr.f32.gmra.mxu0 %v606
      %v3451 = vpop.f32.mrf.mxu0
      %v3452 = vadd.f32 %v3348, %v3451
      %v3453 = vpop.f32.mrf.mxu0
      %3454 = vmatprep.mubr.f32.mxu0 0.0
      %3455 = vmatmul.mubr.f32.gmra.mxu0 %v607
      %v3456 = vpop.f32.mrf.mxu0
      %v3457 = vadd.f32 %v3348, %v3456
      %v3458 = vpop.f32.mrf.mxu0
      %3459 = vmatprep.mubr.f32.mxu0 0.0
      %3460 = vmatmul.mubr.f32.gmra.mxu0 %v608
      %v3461 = vpop.f32.mrf.mxu0
      %v3462 = vadd.f32 %v3348, %v3461
      %v3463 = vpop.f32.mrf.mxu0
      %3464 = vmatprep.mubr.f32.mxu0 0.0
      %3465 = vmatmul.mubr.f32.gmra.mxu0 %v609
      %v3466 = vpop.f32.mrf.mxu0
      %v3467 = vadd.f32 %v3348, %v3466
      %v3468 = vpop.f32.mrf.mxu0
      %3469 = vmatprep.mubr.f32.mxu0 0.0
      %3470 = vmatmul.mubr.f32.gmra.mxu0 %v610
      %v3471 = vpop.f32.mrf.mxu0
      %v3472 = vadd.f32 %v3348, %v3471
      %v3473 = vpop.f32.mrf.mxu0
      %3474 = vmatprep.mubr.f32.mxu0 0.0
      %3475 = vmatmul.mubr.f32.gmra.mxu0 %v611
      %v3476 = vpop.f32.mrf.mxu0
      %v3477 = vadd.f32 %v3348, %v3476
      %v3478 = vpop.f32.mrf.mxu0
      %3479 = vmatprep.mubr.f32.mxu0 0.0
      %3480 = vmatmul.mubr.f32.gmra.mxu0 %v612
      %v3481 = vpop.f32.mrf.mxu0
      %v3482 = vadd.f32 %v3348, %v3481
      %v3483 = vpop.f32.mrf.mxu0
      %3484 = vmatprep.mubr.f32.mxu0 0.0
      %3485 = vmatmul.mubr.f32.gmra.mxu0 %v613
      %v3486 = vpop.f32.mrf.mxu0
      %v3487 = vadd.f32 %v3348, %v3486
      %v3488 = vpop.f32.mrf.mxu0
      %3489 = vmatprep.mubr.f32.mxu0 0.0
      %3490 = vmatmul.mubr.f32.gmra.mxu0 %v614
      %v3491 = vpop.f32.mrf.mxu0
      %v3492 = vadd.f32 %v3348, %v3491
      %v3493 = vpop.f32.mrf.mxu0
      %3494 = vdwg.mxu0
      %v3495 = vmul.f32 %v2680, %v3417
      %v3496 = vmul.f32 %v2682, %v3422
      %v3497 = vmul.f32 %v2684, %v3427
      %v3498 = vmul.f32 %v2686, %v3432
      %v3499 = vmul.f32 %v2688, %v3437
      %v3500 = vmul.f32 %v2690, %v3442
      %v3501 = vmul.f32 %v2692, %v3447
      %v3502 = vmul.f32 %v2694, %v3452
      %v3503 = vmul.f32 %v2696, %v3457
      %v3504 = vmul.f32 %v2698, %v3462
      %v3505 = vmul.f32 %v2700, %v3467
      %v3506 = vmul.f32 %v2702, %v3472
      %v3507 = vmul.f32 %v2704, %v3477
      %v3508 = vmul.f32 %v2706, %v3482
      %v3509 = vmul.f32 %v2708, %v3487
      %v3510 = vmul.f32 %v2710, %v3492
      %v3511 = vadd.f32 %v3249, %v3495
      %v3512 = vadd.f32 %v3254, %v3496
      %v3513 = vadd.f32 %v3259, %v3497
      %v3514 = vadd.f32 %v3264, %v3498
      %v3515 = vadd.f32 %v3269, %v3499
      %v3516 = vadd.f32 %v3274, %v3500
      %v3517 = vadd.f32 %v3279, %v3501
      %v3518 = vadd.f32 %v3284, %v3502
      %v3519 = vadd.f32 %v3289, %v3503
      %v3520 = vadd.f32 %v3294, %v3504
      %v3521 = vadd.f32 %v3299, %v3505
      %v3522 = vadd.f32 %v3304, %v3506
      %v3523 = vadd.f32 %v3309, %v3507
      %v3524 = vadd.f32 %v3314, %v3508
      %v3525 = vadd.f32 %v3319, %v3509
      %v3526 = vadd.f32 %v3324, %v3510
      %v3527 = vtanh.pop %v3511
      %v3528 = vtanh.pop %v3512
      %v3529 = vtanh.pop %v3513
      %v3530 = vtanh.pop %v3514
      %v3531 = vtanh.pop %v3515
      %v3532 = vtanh.pop %v3516
      %v3533 = vtanh.pop %v3517
      %v3534 = vtanh.pop %v3518
      %v3535 = vtanh.pop %v3519
      %v3536 = vtanh.pop %v3520
      %v3537 = vtanh.pop %v3521
      %v3538 = vtanh.pop %v3522
      %v3539 = vtanh.pop %v3523
      %v3540 = vtanh.pop %v3524
      %v3541 = vtanh.pop %v3525
      %v3542 = vtanh.pop %v3526
      %v3543 = vsub.f32 1.0, %v3128
      %v3544 = vsub.f32 1.0, %v3130
      %v3545 = vsub.f32 1.0, %v3132
      %v3546 = vsub.f32 1.0, %v3134
      %v3547 = vsub.f32 1.0, %v3136
      %v3548 = vsub.f32 1.0, %v3138
      %v3549 = vsub.f32 1.0, %v3140
      %v3550 = vsub.f32 1.0, %v3142
      %v3551 = vsub.f32 1.0, %v3144
      %v3552 = vsub.f32 1.0, %v3146
      %v3553 = vsub.f32 1.0, %v3148
      %v3554 = vsub.f32 1.0, %v3150
      %v3555 = vsub.f32 1.0, %v3152
      %v3556 = vsub.f32 1.0, %v3154
      %v3557 = vsub.f32 1.0, %v3156
      %v3558 = vsub.f32 1.0, %v3158
      %v3559 = vmul.f32 %v3543, %v3527
      %v3560 = vmul.f32 %v3544, %v3528
      %v3561 = vmul.f32 %v3545, %v3529
      %v3562 = vmul.f32 %v3546, %v3530
      %v3563 = vmul.f32 %v3547, %v3531
      %v3564 = vmul.f32 %v3548, %v3532
      %v3565 = vmul.f32 %v3549, %v3533
      %v3566 = vmul.f32 %v3550, %v3534
      %v3567 = vmul.f32 %v3551, %v3535
      %v3568 = vmul.f32 %v3552, %v3536
      %v3569 = vmul.f32 %v3553, %v3537
      %v3570 = vmul.f32 %v3554, %v3538
      %v3571 = vmul.f32 %v3555, %v3539
      %v3572 = vmul.f32 %v3556, %v3540
      %v3573 = vmul.f32 %v3557, %v3541
      %v3574 = vmul.f32 %v3558, %v3542
      %v3575 = vmul.f32 %v3128, %v599
      %v3576 = vmul.f32 %v3130, %v600
      %v3577 = vmul.f32 %v3132, %v601
      %v3578 = vmul.f32 %v3134, %v602
      %v3579 = vmul.f32 %v3136, %v603
      %v3580 = vmul.f32 %v3138, %v604
      %v3581 = vmul.f32 %v3140, %v605
      %v3582 = vmul.f32 %v3142, %v606
      %v3583 = vmul.f32 %v3144, %v607
      %v3584 = vmul.f32 %v3146, %v608
      %v3585 = vmul.f32 %v3148, %v609
      %v3586 = vmul.f32 %v3150, %v610
      %v3587 = vmul.f32 %v3152, %v611
      %v3588 = vmul.f32 %v3154, %v612
      %v3589 = vmul.f32 %v3156, %v613
      %v3590 = vmul.f32 %v3158, %v614
      %v3591 = vadd.f32 %v3559, %v3575
      %v3592 = vadd.f32 %v3560, %v3576
      %v3593 = vadd.f32 %v3561, %v3577
      %v3594 = vadd.f32 %v3562, %v3578
      %v3595 = vadd.f32 %v3563, %v3579
      %v3596 = vadd.f32 %v3564, %v3580
      %v3597 = vadd.f32 %v3565, %v3581
      %v3598 = vadd.f32 %v3566, %v3582
      %v3599 = vadd.f32 %v3567, %v3583
      %v3600 = vadd.f32 %v3568, %v3584
      %v3601 = vadd.f32 %v3569, %v3585
      %v3602 = vadd.f32 %v3570, %v3586
      %v3603 = vadd.f32 %v3571, %v3587
      %v3604 = vadd.f32 %v3572, %v3588
      %v3605 = vadd.f32 %v3573, %v3589
      %v3606 = vadd.f32 %v3574, %v3590
      %v3607 = vmul.f32 %v666, %v3591
      %v3608 = vmul.f32 %v671, %v3592
      %v3609 = vmul.f32 %v676, %v3593
      %v3610 = vmul.f32 %v681, %v3594
      %v3611 = vmul.f32 %v686, %v3595
      %v3612 = vmul.f32 %v691, %v3596
      %v3613 = vmul.f32 %v696, %v3597
      %v3614 = vmul.f32 %v701, %v3598
      %v3615 = vmul.f32 %v706, %v3599
      %v3616 = vmul.f32 %v711, %v3600
      %v3617 = vmul.f32 %v716, %v3601
      %v3618 = vmul.f32 %v721, %v3602
      %v3619 = vmul.f32 %v726, %v3603
      %v3620 = vmul.f32 %v731, %v3604
      %v3621 = vmul.f32 %v736, %v3605
      %v3622 = vmul.f32 %v741, %v3606
      %v3623 = vadd.f32 %v2247, %v3607
      %v3624 = vadd.f32 %v2248, %v3608
      %v3625 = vadd.f32 %v2249, %v3609
      %v3626 = vadd.f32 %v2250, %v3610
      %v3627 = vadd.f32 %v2251, %v3611
      %v3628 = vadd.f32 %v2252, %v3612
      %v3629 = vadd.f32 %v2253, %v3613
      %v3630 = vadd.f32 %v2254, %v3614
      %v3631 = vadd.f32 %v2255, %v3615
      %v3632 = vadd.f32 %v2256, %v3616
      %v3633 = vadd.f32 %v2257, %v3617
      %v3634 = vadd.f32 %v2258, %v3618
      %v3635 = vadd.f32 %v2259, %v3619
      %v3636 = vadd.f32 %v2260, %v3620
      %v3637 = vadd.f32 %v2261, %v3621
      %v3638 = vadd.f32 %v2262, %v3622
      %3639 = vst [vmem:[#allocation13] sm:$0xff] %v3623
      %3640 = vst [vmem:[#allocation13 + $0x8] sm:$0xff] %v3624
      %3641 = vst [vmem:[#allocation13 + $0x10] sm:$0xff] %v3625
      %3642 = vst [vmem:[#allocation13 + $0x18] sm:$0xff] %v3626
      %3643 = vst [vmem:[#allocation13 + $0x20] sm:$0xff] %v3627
      %3644 = vst [vmem:[#allocation13 + $0x28] sm:$0xff] %v3628
      %3645 = vst [vmem:[#allocation13 + $0x30] sm:$0xff] %v3629
      %3646 = vst [vmem:[#allocation13 + $0x38] sm:$0xff] %v3630
      %3647 = vst [vmem:[#allocation13 + $0x40] sm:$0xff] %v3631
      %3648 = vst [vmem:[#allocation13 + $0x48] sm:$0xff] %v3632
      %3649 = vst [vmem:[#allocation13 + $0x50] sm:$0xff] %v3633
      %3650 = vst [vmem:[#allocation13 + $0x58] sm:$0xff] %v3634
      %3651 = vst [vmem:[#allocation13 + $0x60] sm:$0xff] %v3635
      %3652 = vst [vmem:[#allocation13 + $0x68] sm:$0xff] %v3636
      %3653 = vst [vmem:[#allocation13 + $0x70] sm:$0xff] %v3637
      %3654 = vst [vmem:[#allocation13 + $0x78] sm:$0xff] %v3638
    $region77: #{tpu_custom_call.1} parent=1 // pred_fallthru
      _
    // Predicated region
    $region78: #{tpu_custom_call.1} parent=1 // pred_check
      _
    $region79: #{tpu_custom_call.1} parent=1 // pred_check_branch
      %3656 = sbr.rel (0) target = $region81
    $region80: #{tpu_custom_call.1} parent=1 // pred_region
      %s3658 = ssub.s32 2048, 2048
      %3659 = vsyncadd [#allocation6], %s3658
      %s3660 = sshll.u32 [#allocation13], 4
      %s3661 = int_to_ptr.vmem [resolvable:$true] %s3660
      %3666 = dma.vmem_to_hbm [thread:$0]  %s3661, 2048, %s12, [#allocation6], 128, 128, 8
    $region81: #{tpu_custom_call.1} parent=1 // pred_fallthru
      _
    // Predicated region
    $region82: #{tpu_custom_call.1} parent=1 // pred_check
      _
    $region83: #{tpu_custom_call.1} parent=1 // pred_check_branch
      %3668 = sbr.rel (0) target = $region85
    $region84: #{tpu_custom_call.1} parent=1 // pred_region
      %3669 = dma.done [#allocation6], 2048
    $region85: #{tpu_custom_call.1} parent=1 // pred_fallthru
      _
    %3670 = vsyncpa [#allocation5], 1
    %3671 = vsyncpa [#allocation8], 1
    %3672 = vsyncpa [#allocation11], 1
    %3673 = vsyncpa [#allocation6], 1

</llo_original>
